<compile_context>
chip_gen: v7x
topology: tpu7x:2x2x1
jax: 0.10.0
libtpu: 0.0.40
codegen_flags: <defaults>
</compile_context>

<pallas_src>
import functools
import math

import numpy as np

import jax
import jax.numpy as jnp
from jax.experimental import pallas as pl
from jax.experimental.pallas import tpu as pltpu

TILE_V = 512   # destination-node tile (multiple of 8 and 128)
TILE_U = 512   # source-node tile
LANE = 128     # feature dim padded to a multiple of the lane width


def _round_up(x, m):
    return (x + m - 1) // m * m


# --------------------------------------------------------------------------------------
# Kernel
# --------------------------------------------------------------------------------------
def gcn_layer_kernel(cnt_ref, blk_ref, adj_ref, h_ref, w_ref, b_ref, out_ref, acc_ref):
    i = pl.program_id(0)
    k = pl.program_id(1)

    @pl.when(k == 0)
    def _():
        acc_ref[...] = jnp.zeros_like(acc_ref)

    # Aggregate only over real (nonzero) source blocks; padded schedule slots are skipped.
    @pl.when(k < cnt_ref[i])
    def _():
        acc_ref[...] += jnp.dot(adj_ref[...], h_ref[...],
                                preferred_element_type=jnp.float32)

    @pl.when(k == pl.num_programs(1) - 1)
    def _():
        agg = acc_ref[...].astype(w_ref.dtype)
        out_ref[...] = (jnp.dot(agg, w_ref[...], preferred_element_type=jnp.float32)
                        + b_ref[...]).astype(out_ref.dtype)


def gcn_layer(adj, h, w, b, blk_cnt, blk_idx, *, tile_v, tile_u, out_dtype):
    np_, dp = h.shape
    assert adj.shape == (np_, np_)
    assert np_ % tile_v == 0 and np_ % tile_u == 0 and dp % LANE == 0
    n_i = np_ // tile_v
    max_k = blk_idx.shape[0] // n_i
    grid = (n_i, max_k)

    def nbytes(a):
        return int(a.size) * jnp.dtype(a.dtype).itemsize

    cost = pl.CostEstimate(
        flops=2 * np_ * np_ * dp + 2 * np_ * dp * dp,
        transcendentals=0,
        bytes_accessed=(nbytes(adj) + n_i * nbytes(h) + nbytes(w) + nbytes(b)
                        + np_ * dp * jnp.dtype(out_dtype).itemsize),
    )

    return pl.pallas_call(
        gcn_layer_kernel,
        out_shape=jax.ShapeDtypeStruct((np_, dp), out_dtype),
        grid_spec=pltpu.PrefetchScalarGridSpec(
            num_scalar_prefetch=2,   # blk_cnt, blk_idx -> SMEM, drive the index_maps
            grid=grid,
            in_specs=[
                # A-hat tile: destination tile i, gathered nonzero source block.
                pl.BlockSpec((tile_v, tile_u),
                             lambda i, k, cnt, blk: (i, blk[i * max_k + k])),
                # Source-node features for that block.
                pl.BlockSpec((tile_u, dp),
                             lambda i, k, cnt, blk: (blk[i * max_k + k], 0)),
                # W: VMEM-resident across the whole grid.
                pl.BlockSpec((dp, dp), lambda i, k, cnt, blk: (0, 0)),
                # bias (kept f32).
                pl.BlockSpec((1, dp), lambda i, k, cnt, blk: (0, 0)),
            ],
            out_specs=pl.BlockSpec((tile_v, dp), lambda i, k, cnt, blk: (i, 0)),
            scratch_shapes=[pltpu.VMEM((tile_v, dp), jnp.float32)],
        ),
        compiler_params=pltpu.CompilerParams(
            dimension_semantics=("parallel", "arbitrary"),
            vmem_limit_bytes=32 * 1024 * 1024,
        ),
        cost_estimate=cost,
    )(blk_cnt, blk_idx, adj, h, w, b)


# --------------------------------------------------------------------------------------
# Host-side graph preprocessing (the PyTorch module's create_graph step)
# --------------------------------------------------------------------------------------
def build_normalized_adjacency(src, dst, num_nodes, padded_nodes):
    """Dense D^-1/2 (A_bidirected + I) D^-1/2, zero-padded to (padded_nodes, padded_nodes)."""
    adj = jnp.zeros((padded_nodes, padded_nodes), jnp.float32)
    src = jnp.asarray(src, jnp.int32)
    dst = jnp.asarray(dst, jnp.int32)
    adj = adj.at[dst, src].set(1.0)                      # edge u -> v
    adj = adj.at[src, dst].set(1.0)                      # bidirected
    idx = jnp.arange(num_nodes)
    adj = adj.at[idx, idx].set(1.0)                      # self loops
    deg = jnp.maximum(jnp.sum(adj, axis=1), 1.0)         # clamp(min=1), matching DGL
    dinv = 1.0 / jnp.sqrt(deg)
    return adj * dinv[:, None] * dinv[None, :]


def build_block_schedule(adj_norm, tile_v, tile_u):
    """Per destination tile: count + (flattened, padded) list of nonzero source-block indices."""
    a = np.asarray(adj_norm)
    np_ = a.shape[0]
    n_i, n_k = np_ // tile_v, np_ // tile_u
    blocks = a.reshape(n_i, tile_v, n_k, tile_u)
    nonzero = np.abs(blocks).sum(axis=(1, 3)) > 0.0          # (n_i, n_k)
    counts = nonzero.sum(axis=1).astype(np.int32)            # (n_i,)
    max_k = max(int(counts.max()), 1)
    idx = np.zeros((n_i, max_k), np.int32)                   # pad with 0 (valid, gated off)
    for i in range(n_i):
        ks = np.nonzero(nonzero[i])[0]
        idx[i, :len(ks)] = ks
    return jnp.asarray(counts), jnp.asarray(idx.reshape(-1))


def init_gcn_params(key, latent_dim, num_layers):
    params = []
    for layer in range(num_layers):
        k = jax.random.fold_in(key, layer)
        k1, k2 = jax.random.split(k)
        params.append(dict(
            w=jax.random.normal(k1, (latent_dim, latent_dim), jnp.float32) * 0.1,
            b=jax.random.normal(k2, (latent_dim,), jnp.float32) * 0.01,
        ))
    return params


# --------------------------------------------------------------------------------------
# Forward
# --------------------------------------------------------------------------------------
@functools.partial(jax.jit, static_argnames=("tile_v", "tile_u", "use_bf16"))
def gcn_forward(h, params, adj, blk_cnt, blk_idx, *, tile_v, tile_u, use_bf16=True):
    n, d = h.shape
    np_ = adj.shape[0]
    dp = _round_up(max(d, LANE), LANE)
    compute_dtype = jnp.bfloat16 if use_bf16 else jnp.float32

    adj = adj.astype(compute_dtype)   # no-op if already stored in the compute dtype
    # Pad nodes/features once; padded rows/cols of A-hat are zero so they never influence
    # real nodes (padded output rows come out equal to the bias and are sliced off below).
    hp = jnp.zeros((np_, dp), compute_dtype).at[:n, :d].set(h.astype(compute_dtype))

    num_layers = len(params)
    for li, p in enumerate(params):
        wp = jnp.zeros((dp, dp), compute_dtype).at[:d, :d].set(p["w"].astype(compute_dtype))
        bp = jnp.zeros((1, dp), jnp.float32).at[0, :d].set(p["b"])
        out_dtype = jnp.float32 if li == num_layers - 1 else compute_dtype
        hp = gcn_layer(adj, hp, wp, bp, blk_cnt, blk_idx,
                       tile_v=tile_v, tile_u=tile_u, out_dtype=out_dtype)
    return hp[:n, :d]


def gcn_reference(h, params, adj_norm_unpadded):
    ref = h
    for p in params:
        ref = adj_norm_unpadded @ ref @ p["w"] + p["b"][None, :]
    return ref


# --------------------------------------------------------------------------------------
# Test
# --------------------------------------------------------------------------------------
if __name__ == "__main__":
    latent_dim = 32
    num_layers = 2
    num_nodes = 600          # pads to 1024 -> 2x2 node-tile grid: exercises k-accumulation,
    num_edges = 2000         # init/finalize pl.when paths, block gather, and megacore split.
    tile_v = tile_u = TILE_V

    key = jax.random.PRNGKey(0)
    kh, kp, ke1, ke2 = jax.random.split(key, 4)
    src = jax.random.randint(ke1, (num_edges,), 0, num_nodes, dtype=jnp.int32)
    dst = jax.random.randint(ke2, (num_edges,), 0, num_nodes, dtype=jnp.int32)

    h = jax.random.normal(kh, (num_nodes, latent_dim), jnp.float32)
    params = init_gcn_params(kp, latent_dim, num_layers)

    padded_nodes = _round_up(num_nodes, math.lcm(tile_v, tile_u))
    adj_f32 = build_normalized_adjacency(src, dst, num_nodes, padded_nodes)
    blk_cnt, blk_idx = build_block_schedule(adj_f32, tile_v, tile_u)

    # A-hat lives in HBM as bf16 (cast once here, not per grid step inside the kernel).
    adj_bf16 = adj_f32.astype(jnp.bfloat16)

    ref = gcn_reference(h, params, adj_f32[:num_nodes, :num_nodes])

    # bf16 production path.
    out = gcn_forward(h, params, adj_bf16, blk_cnt, blk_idx,
                      tile_v=tile_v, tile_u=tile_u, use_bf16=True)
    jax.block_until_ready(out)
    assert out.shape == (num_nodes, latent_dim)
    assert jnp.allclose(out, ref, rtol=5e-2, atol=3e-2), "bf16 kernel/reference mismatch"

    # f32 escape hatch (accuracy check of the kernel structure itself).
    out_f32 = gcn_forward(h, params, adj_f32, blk_cnt, blk_idx,
                          tile_v=tile_v, tile_u=tile_u, use_bf16=False)
    jax.block_until_ready(out_f32)
    assert jnp.allclose(out_f32, ref, rtol=1e-2, atol=1e-2), "f32 kernel/reference mismatch"

    print("KERNEL_OK")
</pallas_src>

<mosaic_0001>
module attributes {stable_mosaic.version = 11 : i64} {
  func.func @gcn_layer_kernel(%arg0: i32, %arg1: i32, %arg2: memref<2xi32, #tpu.memory_space<smem>>, %arg3: memref<4xi32, #tpu.memory_space<smem>>, %arg4: memref<512x512xbf16, #tpu.memory_space<vmem>>, %arg5: memref<512x128xbf16, #tpu.memory_space<vmem>>, %arg6: memref<128x128xbf16, #tpu.memory_space<vmem>>, %arg7: memref<1x128xf32, #tpu.memory_space<vmem>>, %arg8: memref<512x128xf32, #tpu.memory_space<vmem>>, %arg9: memref<512x128xf32, #tpu.memory_space<vmem>>) attributes {dimension_semantics = [#tpu.dimension_semantics<parallel>, #tpu.dimension_semantics<arbitrary>], iteration_bounds = array<i64: 2, 2>, scalar_prefetch = 2 : i64, scratch_operands = 1 : i64, tpu.core_type = #tpu.core_type<tc>, window_params = [{transform_indices = @transform_0, window_bounds = array<i64: 512, 512>}, {transform_indices = @transform_1, window_bounds = array<i64: 512, 128>}, {pipeline_mode = #tpu.pipeline_mode<synchronous>, transform_indices = @transform_2, window_bounds = array<i64: 128, 128>}, {pipeline_mode = #tpu.pipeline_mode<synchronous>, transform_indices = @transform_3, window_bounds = array<i64: 1, 128>}, {transform_indices = @transform_4, window_bounds = array<i64: 512, 128>}]} {
    %c0_i32 = arith.constant 0 : i32
    %0 = arith.cmpi eq, %arg1, %c0_i32 : i32
    %1 = arith.extui %0 : i1 to i32
    %c0_i32_0 = arith.constant 0 : i32
    %2 = arith.cmpi ne, %1, %c0_i32_0 : i32
    scf.if %2 {
      %cst = arith.constant 0.000000e+00 : f32
      %11 = vector.broadcast %cst : f32 to vector<512x128xf32>
      %c0 = arith.constant 0 : index
      %c0_3 = arith.constant 0 : index
      %12 = vector.load %arg9[%c0, %c0_3] : memref<512x128xf32, #tpu.memory_space<vmem>>, vector<512x128xf32>
      tpu.vector_store %arg9[%c0, %c0_3], %11 {strides = array<i32>} : memref<512x128xf32, #tpu.memory_space<vmem>>, vector<512x128xf32>,
    } else {
    }
    %3 = arith.index_cast %arg0 : i32 to index
    %4 = memref.load %arg2[%3] : memref<2xi32, #tpu.memory_space<smem>>
    %5 = arith.cmpi slt, %arg1, %4 : i32
    %6 = arith.extui %5 : i1 to i32
    %c0_i32_1 = arith.constant 0 : i32
    %7 = arith.cmpi ne, %6, %c0_i32_1 : i32
    scf.if %7 {
      %c0 = arith.constant 0 : index
      %c0_3 = arith.constant 0 : index
      %11 = vector.load %arg9[%c0, %c0_3] : memref<512x128xf32, #tpu.memory_space<vmem>>, vector<512x128xf32>
      %c0_4 = arith.constant 0 : index
      %c0_5 = arith.constant 0 : index
      %12 = vector.load %arg4[%c0_4, %c0_5] : memref<512x512xbf16, #tpu.memory_space<vmem>>, vector<512x512xbf16>
      %c0_6 = arith.constant 0 : index
      %c0_7 = arith.constant 0 : index
      %13 = vector.load %arg5[%c0_6, %c0_7] : memref<512x128xbf16, #tpu.memory_space<vmem>>, vector<512x128xbf16>
      %cst = arith.constant dense<0.000000e+00> : vector<512x128xf32>
      %14 = tpu.matmul %12, %13, %cst {dimension_numbers = #tpu.dot_dimension_numbers<[1], [0], [0], [1], [0, 0, 1, 1], [], []>} : vector<512x512xbf16>, vector<512x128xbf16>, vector<512x128xf32> -> vector<512x128xf32>
      %15 = arith.addf %11, %14 : vector<512x128xf32>
      %c0_8 = arith.constant 0 : index
      %c0_9 = arith.constant 0 : index
      %16 = vector.load %arg9[%c0_8, %c0_9] : memref<512x128xf32, #tpu.memory_space<vmem>>, vector<512x128xf32>
      tpu.vector_store %arg9[%c0_8, %c0_9], %15 {strides = array<i32>} : memref<512x128xf32, #tpu.memory_space<vmem>>, vector<512x128xf32>,
    } else {
    }
    %c1_i32 = arith.constant 1 : i32
    %8 = arith.cmpi eq, %arg1, %c1_i32 : i32
    %9 = arith.extui %8 : i1 to i32
    %c0_i32_2 = arith.constant 0 : i32
    %10 = arith.cmpi ne, %9, %c0_i32_2 : i32
    scf.if %10 {
      %c0 = arith.constant 0 : index
      %c0_3 = arith.constant 0 : index
      %11 = vector.load %arg9[%c0, %c0_3] : memref<512x128xf32, #tpu.memory_space<vmem>>, vector<512x128xf32>
      %12 = arith.truncf %11 : vector<512x128xf32> to vector<512x128xbf16>
      %c0_4 = arith.constant 0 : index
      %c0_5 = arith.constant 0 : index
      %13 = vector.load %arg6[%c0_4, %c0_5] : memref<128x128xbf16, #tpu.memory_space<vmem>>, vector<128x128xbf16>
      %cst = arith.constant dense<0.000000e+00> : vector<512x128xf32>
      %14 = tpu.matmul %12, %13, %cst {dimension_numbers = #tpu.dot_dimension_numbers<[1], [0], [0], [1], [0, 0, 1, 1], [], []>} : vector<512x128xbf16>, vector<128x128xbf16>, vector<512x128xf32> -> vector<512x128xf32>
      %c0_6 = arith.constant 0 : index
      %c0_7 = arith.constant 0 : index
      %15 = vector.load %arg7[%c0_6, %c0_7] : memref<1x128xf32, #tpu.memory_space<vmem>>, vector<1x128xf32>
      %16 = vector.broadcast %15 : vector<1x128xf32> to vector<512x128xf32>
      %17 = arith.addf %14, %16 : vector<512x128xf32>
      %c0_8 = arith.constant 0 : index
      %c0_9 = arith.constant 0 : index
      %18 = vector.load %arg8[%c0_8, %c0_9] : memref<512x128xf32, #tpu.memory_space<vmem>>, vector<512x128xf32>
      tpu.vector_store %arg8[%c0_8, %c0_9], %17 {strides = array<i32>} : memref<512x128xf32, #tpu.memory_space<vmem>>, vector<512x128xf32>,
    } else {
    }
    return
  }
  func.func @transform_0(%arg0: i32, %arg1: i32, %arg2: memref<2xi32, #tpu.memory_space<smem>>, %arg3: memref<4xi32, #tpu.memory_space<smem>>) -> (i32, i32) {
    %c2_i32 = arith.constant 2 : i32
    %0 = arith.muli %arg0, %c2_i32 : i32
    %1 = arith.addi %0, %arg1 : i32
    %2 = arith.index_cast %1 : i32 to index
    %3 = memref.load %arg3[%2] : memref<4xi32, #tpu.memory_space<smem>>
    %c0_i32 = arith.constant 0 : i32
    return %arg0, %3 : i32, i32
  }
  func.func @transform_1(%arg0: i32, %arg1: i32, %arg2: memref<2xi32, #tpu.memory_space<smem>>, %arg3: memref<4xi32, #tpu.memory_space<smem>>) -> (i32, i32) {
    %c2_i32 = arith.constant 2 : i32
    %0 = arith.muli %arg0, %c2_i32 : i32
    %1 = arith.addi %0, %arg1 : i32
    %2 = arith.index_cast %1 : i32 to index
    %3 = memref.load %arg3[%2] : memref<4xi32, #tpu.memory_space<smem>>
    %c0_i32 = arith.constant 0 : i32
    %c0_i32_0 = arith.constant 0 : i32
    return %3, %c0_i32 : i32, i32
  }
  func.func @transform_2(%arg0: i32, %arg1: i32, %arg2: memref<2xi32, #tpu.memory_space<smem>>, %arg3: memref<4xi32, #tpu.memory_space<smem>>) -> (i32, i32) {
    %c0_i32 = arith.constant 0 : i32
    %c0_i32_0 = arith.constant 0 : i32
    %c0_i32_1 = arith.constant 0 : i32
    return %c0_i32, %c0_i32_0 : i32, i32
  }
  func.func @transform_3(%arg0: i32, %arg1: i32, %arg2: memref<2xi32, #tpu.memory_space<smem>>, %arg3: memref<4xi32, #tpu.memory_space<smem>>) -> (i32, i32) {
    %c0_i32 = arith.constant 0 : i32
    %c0_i32_0 = arith.constant 0 : i32
    %c0_i32_1 = arith.constant 0 : i32
    return %c0_i32, %c0_i32_0 : i32, i32
  }
  func.func @transform_4(%arg0: i32, %arg1: i32, %arg2: memref<2xi32, #tpu.memory_space<smem>>, %arg3: memref<4xi32, #tpu.memory_space<smem>>) -> (i32, i32) {
    %c0_i32 = arith.constant 0 : i32
    %c0_i32_0 = arith.constant 0 : i32
    return %arg0, %c0_i32 : i32, i32
  }
}

module attributes {stable_mosaic.version = 11 : i64} {
  func.func @gcn_layer_kernel(%arg0: i32, %arg1: i32, %arg2: memref<2xi32, #tpu.memory_space<smem>>, %arg3: memref<4xi32, #tpu.memory_space<smem>>, %arg4: memref<512x512xbf16, #tpu.memory_space<vmem>>, %arg5: memref<512x128xbf16, #tpu.memory_space<vmem>>, %arg6: memref<128x128xbf16, #tpu.memory_space<vmem>>, %arg7: memref<1x128xf32, #tpu.memory_space<vmem>>, %arg8: memref<512x128xbf16, #tpu.memory_space<vmem>>, %arg9: memref<512x128xf32, #tpu.memory_space<vmem>>) attributes {dimension_semantics = [#tpu.dimension_semantics<parallel>, #tpu.dimension_semantics<arbitrary>], iteration_bounds = array<i64: 2, 2>, scalar_prefetch = 2 : i64, scratch_operands = 1 : i64, tpu.core_type = #tpu.core_type<tc>, window_params = [{transform_indices = @transform_0, window_bounds = array<i64: 512, 512>}, {transform_indices = @transform_1, window_bounds = array<i64: 512, 128>}, {pipeline_mode = #tpu.pipeline_mode<synchronous>, transform_indices = @transform_2, window_bounds = array<i64: 128, 128>}, {pipeline_mode = #tpu.pipeline_mode<synchronous>, transform_indices = @transform_3, window_bounds = array<i64: 1, 128>}, {transform_indices = @transform_4, window_bounds = array<i64: 512, 128>}]} {
    %c0_i32 = arith.constant 0 : i32
    %0 = arith.cmpi eq, %arg1, %c0_i32 : i32
    %1 = arith.extui %0 : i1 to i32
    %c0_i32_0 = arith.constant 0 : i32
    %2 = arith.cmpi ne, %1, %c0_i32_0 : i32
    scf.if %2 {
      %cst = arith.constant 0.000000e+00 : f32
      %11 = vector.broadcast %cst : f32 to vector<512x128xf32>
      %c0 = arith.constant 0 : index
      %c0_3 = arith.constant 0 : index
      %12 = vector.load %arg9[%c0, %c0_3] : memref<512x128xf32, #tpu.memory_space<vmem>>, vector<512x128xf32>
      tpu.vector_store %arg9[%c0, %c0_3], %11 {strides = array<i32>} : memref<512x128xf32, #tpu.memory_space<vmem>>, vector<512x128xf32>,
    } else {
    }
    %3 = arith.index_cast %arg0 : i32 to index
    %4 = memref.load %arg2[%3] : memref<2xi32, #tpu.memory_space<smem>>
    %5 = arith.cmpi slt, %arg1, %4 : i32
    %6 = arith.extui %5 : i1 to i32
    %c0_i32_1 = arith.constant 0 : i32
    %7 = arith.cmpi ne, %6, %c0_i32_1 : i32
    scf.if %7 {
      %c0 = arith.constant 0 : index
      %c0_3 = arith.constant 0 : index
      %11 = vector.load %arg9[%c0, %c0_3] : memref<512x128xf32, #tpu.memory_space<vmem>>, vector<512x128xf32>
      %c0_4 = arith.constant 0 : index
      %c0_5 = arith.constant 0 : index
      %12 = vector.load %arg4[%c0_4, %c0_5] : memref<512x512xbf16, #tpu.memory_space<vmem>>, vector<512x512xbf16>
      %c0_6 = arith.constant 0 : index
      %c0_7 = arith.constant 0 : index
      %13 = vector.load %arg5[%c0_6, %c0_7] : memref<512x128xbf16, #tpu.memory_space<vmem>>, vector<512x128xbf16>
      %cst = arith.constant dense<0.000000e+00> : vector<512x128xf32>
      %14 = tpu.matmul %12, %13, %cst {dimension_numbers = #tpu.dot_dimension_numbers<[1], [0], [0], [1], [0, 0, 1, 1], [], []>} : vector<512x512xbf16>, vector<512x128xbf16>, vector<512x128xf32> -> vector<512x128xf32>
      %15 = arith.addf %11, %14 : vector<512x128xf32>
      %c0_8 = arith.constant 0 : index
      %c0_9 = arith.constant 0 : index
      %16 = vector.load %arg9[%c0_8, %c0_9] : memref<512x128xf32, #tpu.memory_space<vmem>>, vector<512x128xf32>
      tpu.vector_store %arg9[%c0_8, %c0_9], %15 {strides = array<i32>} : memref<512x128xf32, #tpu.memory_space<vmem>>, vector<512x128xf32>,
    } else {
    }
    %c1_i32 = arith.constant 1 : i32
    %8 = arith.cmpi eq, %arg1, %c1_i32 : i32
    %9 = arith.extui %8 : i1 to i32
    %c0_i32_2 = arith.constant 0 : i32
    %10 = arith.cmpi ne, %9, %c0_i32_2 : i32
    scf.if %10 {
      %c0 = arith.constant 0 : index
      %c0_3 = arith.constant 0 : index
      %11 = vector.load %arg9[%c0, %c0_3] : memref<512x128xf32, #tpu.memory_space<vmem>>, vector<512x128xf32>
      %12 = arith.truncf %11 : vector<512x128xf32> to vector<512x128xbf16>
      %c0_4 = arith.constant 0 : index
      %c0_5 = arith.constant 0 : index
      %13 = vector.load %arg6[%c0_4, %c0_5] : memref<128x128xbf16, #tpu.memory_space<vmem>>, vector<128x128xbf16>
      %cst = arith.constant dense<0.000000e+00> : vector<512x128xf32>
      %14 = tpu.matmul %12, %13, %cst {dimension_numbers = #tpu.dot_dimension_numbers<[1], [0], [0], [1], [0, 0, 1, 1], [], []>} : vector<512x128xbf16>, vector<128x128xbf16>, vector<512x128xf32> -> vector<512x128xf32>
      %c0_6 = arith.constant 0 : index
      %c0_7 = arith.constant 0 : index
      %15 = vector.load %arg7[%c0_6, %c0_7] : memref<1x128xf32, #tpu.memory_space<vmem>>, vector<1x128xf32>
      %16 = vector.broadcast %15 : vector<1x128xf32> to vector<512x128xf32>
      %17 = arith.addf %14, %16 : vector<512x128xf32>
      %18 = arith.truncf %17 : vector<512x128xf32> to vector<512x128xbf16>
      %c0_8 = arith.constant 0 : index
      %c0_9 = arith.constant 0 : index
      %19 = vector.load %arg8[%c0_8, %c0_9] : memref<512x128xbf16, #tpu.memory_space<vmem>>, vector<512x128xbf16>
      tpu.vector_store %arg8[%c0_8, %c0_9], %18 {strides = array<i32>} : memref<512x128xbf16, #tpu.memory_space<vmem>>, vector<512x128xbf16>,
    } else {
    }
    return
  }
  func.func @transform_0(%arg0: i32, %arg1: i32, %arg2: memref<2xi32, #tpu.memory_space<smem>>, %arg3: memref<4xi32, #tpu.memory_space<smem>>) -> (i32, i32) {
    %c2_i32 = arith.constant 2 : i32
    %0 = arith.muli %arg0, %c2_i32 : i32
    %1 = arith.addi %0, %arg1 : i32
    %2 = arith.index_cast %1 : i32 to index
    %3 = memref.load %arg3[%2] : memref<4xi32, #tpu.memory_space<smem>>
    %c0_i32 = arith.constant 0 : i32
    return %arg0, %3 : i32, i32
  }
  func.func @transform_1(%arg0: i32, %arg1: i32, %arg2: memref<2xi32, #tpu.memory_space<smem>>, %arg3: memref<4xi32, #tpu.memory_space<smem>>) -> (i32, i32) {
    %c2_i32 = arith.constant 2 : i32
    %0 = arith.muli %arg0, %c2_i32 : i32
    %1 = arith.addi %0, %arg1 : i32
    %2 = arith.index_cast %1 : i32 to index
    %3 = memref.load %arg3[%2] : memref<4xi32, #tpu.memory_space<smem>>
    %c0_i32 = arith.constant 0 : i32
    %c0_i32_0 = arith.constant 0 : i32
    return %3, %c0_i32 : i32, i32
  }
  func.func @transform_2(%arg0: i32, %arg1: i32, %arg2: memref<2xi32, #tpu.memory_space<smem>>, %arg3: memref<4xi32, #tpu.memory_space<smem>>) -> (i32, i32) {
    %c0_i32 = arith.constant 0 : i32
    %c0_i32_0 = arith.constant 0 : i32
    %c0_i32_1 = arith.constant 0 : i32
    return %c0_i32, %c0_i32_0 : i32, i32
  }
  func.func @transform_3(%arg0: i32, %arg1: i32, %arg2: memref<2xi32, #tpu.memory_space<smem>>, %arg3: memref<4xi32, #tpu.memory_space<smem>>) -> (i32, i32) {
    %c0_i32 = arith.constant 0 : i32
    %c0_i32_0 = arith.constant 0 : i32
    %c0_i32_1 = arith.constant 0 : i32
    return %c0_i32, %c0_i32_0 : i32, i32
  }
  func.func @transform_4(%arg0: i32, %arg1: i32, %arg2: memref<2xi32, #tpu.memory_space<smem>>, %arg3: memref<4xi32, #tpu.memory_space<smem>>) -> (i32, i32) {
    %c0_i32 = arith.constant 0 : i32
    %c0_i32_0 = arith.constant 0 : i32
    return %arg0, %c0_i32 : i32, i32
  }
}

</mosaic_0001>

<llo_original>
// kernel: gcn_forward.3
$region0: #{gcn_forward.3}
  #allocation0 [shape = 'u32[]', space=smem, size = 0x4, offset = 0x4, fixed_abs, tag = 'smem constant byte address 0x4 - core index']
  #allocation1 [shape = 'u32[144,128]{1,0:T(1,128)}', space=vmem, size = 0x12000, scoped, tag = 'internal scratch']
  #allocation2 [shape = 'f32[512,128]{1,0:T(8,128)}', space=vmem, size = 0x40000, scoped, tag = 'scratch operand']
  #allocation3 [shape = 's32[1]{0}', space=sflag, size = 0x4, scoped, tag = 'scoped memory for gcn_forward.3']
  #allocation4 [shape = 'u8[512]{0}', space=smem, size = 0x200, scoped, tag = 'prefetched SMEM operand 0']
  #allocation5 [shape = 'u8[512]{0}', space=smem, size = 0x200, scoped, tag = 'prefetched SMEM operand 1']
  %s0 = inlined_call_operand.vmem [shape: s32[2], index: 0, kind: input, shape index: {}]
  %s1 = inlined_call_operand.vmem [shape: s32[4], index: 1, kind: input, shape index: {}]
  %s2 = inlined_call_operand.vmem [shape: bf16[1024,1024], index: 2, kind: input, shape index: {}]
  %s3 = inlined_call_operand.vmem [shape: bf16[1024,128], index: 3, kind: input, shape index: {}]
  %s4 = inlined_call_operand.vmem [shape: bf16[128,128], index: 4, kind: input, shape index: {}]
  %s5 = inlined_call_operand.vmem [shape: f32[1,128], index: 5, kind: input, shape index: {}]
  %s6 = inlined_call_operand.vmem [shape: f32[1024,128], index: 6, kind: output, shape index: {}]
  %s7 = sld [smem:[#allocation0]]
  $region84: #{gcn_forward.3} parent=0
    _
  %s9 = ssub.s32 1, %s7
  %s10 = scalar_select 0, %s9, %s7
  %s11 = sshll.u32 %s0, 4
  %s12 = int_to_ptr.vmem [resolvable:$true] %s11
  %14 = dma.vmem_to_smem %s12, 16, [#allocation4], [#allocation3]
  %s15 = sshll.u32 %s1, 4
  %s16 = int_to_ptr.vmem [resolvable:$true] %s15
  %18 = dma.vmem_to_smem %s16, 16, [#allocation5], [#allocation3]
  %19 = dma.done [#allocation3], 32
  %20 = sfence
  $region1: #{gcn_forward.3} parent=0
    #allocation6 [shape = 'u8[1048576]{0}', space=vmem, size = 0x100000, scoped, tag = 'input window, operand 2']
    loop: start=0, step=1, limit=6
    $region2: #{gcn_forward.3} parent=1 // loop_pre_header
      _
    $region3: #{gcn_forward.3} parent=1 // loop_header
      %s22 = sphi 0, %s26
      %p23 = scmp.ge.s32.totalorder %s22, 6
      %s29 = sphi 0, %s41
      %s30 = sphi 0, %s37
      %s31 = sphi 0, %s29
      %s32 = sphi 0, %s30
      %s33 = sphi 0, %s31
      %s34 = sphi 0, %s32
      %s52 = sphi 0, %s54
      %s55 = sphi 0, %s52
      %s56 = sphi 0, %s55
      %s72 = sphi 0, %s56
      %s84 = sphi 0, %s86
      %s87 = sphi 0, %s84
      %s88 = sphi 0, %s87
      %s104 = sphi 0, %s88
      %s108 = sphi 0, %s108
      %s110 = sphi 0, %s108
      %s111 = sphi 0, %s110
      %s125 = sphi 0, %s111
      %s129 = sphi 0, %s129
      %s131 = sphi 0, %s129
      %s132 = sphi 0, %s131
      %s146 = sphi 0, %s132
      %s152 = sphi 0, %s154
      %s155 = sphi 0, %s152
      %s156 = sphi 0, %s155
      %s172 = sphi 0, %s156
    $region4: #{gcn_forward.3} parent=1 // loop_header_branch
      %25 = sbr.rel (%p23) target = $region8
    $region5: #{gcn_forward.3} parent=1 // loop_body
      %s27 = ssub.s32 %s22, 1
      %s28 = ssub.s32 %s22, 2
      %s35 = sadd.s32 1, %s30
      %p36 = scmp.ge.s32.totalorder %s35, 2
      %s37 = scalar_select %p36, 0, %s35
      %s38 = sadd.s32 1, %s29
      %s39 = scalar_select %p36, %s38, %s29
      %p40 = scmp.ge.s32.totalorder %s39, 2
      %s41 = scalar_select %p40, 0, %s39
      %s42 = smul.u32 %s29, 2
      %s43 = sadd.s32 %s42, %s30
      %s44 = sld [smem:[#allocation5 + %s43]]
      %s45 = smul.u32 %s41, 2
      %s46 = sadd.s32 %s45, %s37
      %s47 = sld [smem:[#allocation5 + %s46]]
      %s48 = ssub.s32 %s29, %s41
      %s49 = ssub.s32 %s44, %s47
      %s50 = sor.u32 %s48, %s49
      %p51 = scmp.eq.s32.totalorder %s50, 0
      %s53 = sadd.s32 %s52, 1
      %s54 = scalar_select %p51, %s52, %s53
      %p57 = pneg %p51
      %p58 = scmp.eq.s32.totalorder %s22, 3
      %p59 = por %p57, %p58
      %p60 = scmp.ne.s32.totalorder %s52, %s55
      %p61 = scmp.eq.s32.totalorder %s22, 0
      %p62 = por %p60, %p61
      %p63 = scmp.ne.s32.totalorder %s52, %s55
      %p64 = scmp.eq.s32.totalorder %s27, 3
      %p65 = por %p63, %p64
      %p66 = scmp.ne.s32.totalorder %s55, %s56
      %p67 = scmp.eq.s32.totalorder %s27, 0
      %p68 = por %p66, %p67
      %p69 = scmp.ne.s32.totalorder %s55, %s56
      %p70 = scmp.eq.s32.totalorder %s28, 3
      %p71 = por %p69, %p70
      %p73 = scmp.ne.s32.totalorder %s56, %s72
      %p74 = scmp.eq.s32.totalorder %s28, 0
      %p75 = por %p73, %p74
      %s76 = smul.u32 %s29, 2
      %s77 = sadd.s32 %s76, %s30
      %s78 = sld [smem:[#allocation5 + %s77]]
      %s79 = smul.u32 %s41, 2
      %s80 = sadd.s32 %s79, %s37
      %s81 = sld [smem:[#allocation5 + %s80]]
      %s82 = ssub.s32 %s78, %s81
      %p83 = scmp.eq.s32.totalorder %s82, 0
      %s85 = sadd.s32 %s84, 1
      %s86 = scalar_select %p83, %s84, %s85
      %p89 = pneg %p83
      %p90 = scmp.eq.s32.totalorder %s22, 3
      %p91 = por %p89, %p90
      %p92 = scmp.ne.s32.totalorder %s84, %s87
      %p93 = scmp.eq.s32.totalorder %s22, 0
      %p94 = por %p92, %p93
      %p95 = scmp.ne.s32.totalorder %s84, %s87
      %p96 = scmp.eq.s32.totalorder %s27, 3
      %p97 = por %p95, %p96
      %p98 = scmp.ne.s32.totalorder %s87, %s88
      %p99 = scmp.eq.s32.totalorder %s27, 0
      %p100 = por %p98, %p99
      %p101 = scmp.ne.s32.totalorder %s87, %s88
      %p102 = scmp.eq.s32.totalorder %s28, 3
      %p103 = por %p101, %p102
      %p105 = scmp.ne.s32.totalorder %s88, %s104
      %p106 = scmp.eq.s32.totalorder %s28, 0
      %p107 = por %p105, %p106
      %s109 = sadd.s32 %s108, 1
      %p112 = scmp.eq.s32.totalorder %s22, 3
      %p113 = scmp.ne.s32.totalorder %s108, %s110
      %p114 = scmp.eq.s32.totalorder %s22, 0
      %p115 = por %p113, %p114
      %p116 = scmp.ne.s32.totalorder %s108, %s110
      %p117 = scmp.eq.s32.totalorder %s27, 3
      %p118 = por %p116, %p117
      %p119 = scmp.ne.s32.totalorder %s110, %s111
      %p120 = scmp.eq.s32.totalorder %s27, 0
      %p121 = por %p119, %p120
      %p122 = scmp.ne.s32.totalorder %s110, %s111
      %p123 = scmp.eq.s32.totalorder %s28, 3
      %p124 = por %p122, %p123
      %p126 = scmp.ne.s32.totalorder %s111, %s125
      %p127 = scmp.eq.s32.totalorder %s28, 0
      %p128 = por %p126, %p127
      %s130 = sadd.s32 %s129, 1
      %p133 = scmp.eq.s32.totalorder %s22, 3
      %p134 = scmp.ne.s32.totalorder %s129, %s131
      %p135 = scmp.eq.s32.totalorder %s22, 0
      %p136 = por %p134, %p135
      %p137 = scmp.ne.s32.totalorder %s129, %s131
      %p138 = scmp.eq.s32.totalorder %s27, 3
      %p139 = por %p137, %p138
      %p140 = scmp.ne.s32.totalorder %s131, %s132
      %p141 = scmp.eq.s32.totalorder %s27, 0
      %p142 = por %p140, %p141
      %p143 = scmp.ne.s32.totalorder %s131, %s132
      %p144 = scmp.eq.s32.totalorder %s28, 3
      %p145 = por %p143, %p144
      %p147 = scmp.ne.s32.totalorder %s132, %s146
      %p148 = scmp.eq.s32.totalorder %s28, 0
      %p149 = por %p147, %p148
      %s150 = ssub.s32 %s29, %s41
      %p151 = scmp.eq.s32.totalorder %s150, 0
      %s153 = sadd.s32 %s152, 1
      %s154 = scalar_select %p151, %s152, %s153
      %p157 = pneg %p151
      %p158 = scmp.eq.s32.totalorder %s22, 3
      %p159 = por %p157, %p158
      %p160 = scmp.ne.s32.totalorder %s152, %s155
      %p161 = scmp.eq.s32.totalorder %s22, 0
      %p162 = por %p160, %p161
      %p163 = scmp.ne.s32.totalorder %s152, %s155
      %p164 = scmp.eq.s32.totalorder %s27, 3
      %p165 = por %p163, %p164
      %p166 = scmp.ne.s32.totalorder %s155, %s156
      %p167 = scmp.eq.s32.totalorder %s27, 0
      %p168 = por %p166, %p167
      %p169 = scmp.ne.s32.totalorder %s155, %s156
      %p170 = scmp.eq.s32.totalorder %s28, 3
      %p171 = por %p169, %p170
      %p173 = scmp.ne.s32.totalorder %s156, %s172
      %p174 = scmp.eq.s32.totalorder %s28, 0
      %p175 = por %p173, %p174
      %p176 = scmp.le.s32.totalorder 1, %s22
      %p177 = scmp.lt.s32.totalorder %s22, 5
      %p178 = pnand %p176, %p177
      %p179 = pneg %p178
      // Predicated region
      $region9: #{gcn_forward.3} parent=5 // pred_check
        _
      $region10: #{gcn_forward.3} parent=5 // pred_check_branch
        %181 = sbr.rel (%p178) target = $region12
      $region11: #{gcn_forward.3} parent=5 // pred_region
        %s182 = ssub.s32 %s22, 1
        // Predicated region
        $region13: #{gcn_forward.3} parent=11 // pred_check
          %p183 = pneg %p121
        $region14: #{gcn_forward.3} parent=11 // pred_check_branch
          %185 = sbr.rel (%p183) target = $region16
        $region15: #{gcn_forward.3} parent=11 // pred_region
          _
        $region16: #{gcn_forward.3} parent=11 // pred_fallthru
          _
        // Predicated region
        $region17: #{gcn_forward.3} parent=11 // pred_check
          %p186 = pneg %p142
        $region18: #{gcn_forward.3} parent=11 // pred_check_branch
          %188 = sbr.rel (%p186) target = $region20
        $region19: #{gcn_forward.3} parent=11 // pred_region
          _
        $region20: #{gcn_forward.3} parent=11 // pred_fallthru
          _
      $region12: #{gcn_forward.3} parent=5 // pred_fallthru
        _
      %p189 = scmp.lt.s32.totalorder %s22, 4
      // Predicated region
      $region21: #{gcn_forward.3} parent=5 // pred_check
        %p190 = pneg %p189
      $region22: #{gcn_forward.3} parent=5 // pred_check_branch
        %192 = sbr.rel (%p190) target = $region24
      $region23: #{gcn_forward.3} parent=5 // pred_region
        // Predicated region
        $region25: #{gcn_forward.3} parent=23 // pred_check
          %p193 = pneg %p62
        $region26: #{gcn_forward.3} parent=23 // pred_check_branch
          %195 = sbr.rel (%p193) target = $region28
        $region27: #{gcn_forward.3} parent=23 // pred_region
          %s196 = sand.u32 %s52, 1
          %s197 = sand.u32 %s52, 1
          %s198 = smul.addr %s197, 1024
          %s199 = scalar_lea.vmem [#allocation6], %s198
          %s200 = smul.u32 %s29, 2
          %s201 = sadd.s32 %s200, %s30
          %s202 = sld [smem:[#allocation5 + %s201]]
          %s203 = smul.u32 64, %s29
          %s204 = smul.u32 4, %s202
          %s205 = smul.addr %s203, 8
          %s206 = sadd.s32 %s204, %s205
          %s207 = smul.addr %s206, 4
          %s208 = scalar_lea.vmem %s2, %s207
          // Predicated region
          $region29: #{gcn_forward.3} parent=27 // pred_check
            _
          $region30: #{gcn_forward.3} parent=27 // pred_check_branch
            %210 = sbr.rel (0) target = $region32
          $region31: #{gcn_forward.3} parent=27 // pred_region
            // Predicated region
            $region33: #{gcn_forward.3} parent=31 // pred_check
              _
            $region34: #{gcn_forward.3} parent=31 // pred_check_branch
              %212 = sbr.rel (0) target = $region36
            $region35: #{gcn_forward.3} parent=31 // pred_region
              loop: start=0, step=1, limit=1
              $region37: #{gcn_forward.3} parent=35 // loop_pre_header
                _
              $region38: #{gcn_forward.3} parent=35 // loop_header
                %s214 = sphi 0, %s218
                %p215 = scmp.ge.s32.totalorder %s214, 1
                %s219 = sphi %s208, %s208
                %s220 = sphi %s199, %s199
              $region39: #{gcn_forward.3} parent=35 // loop_header_branch
                %217 = sbr.rel (%p215) target = $region43
              $region40: #{gcn_forward.3} parent=35 // loop_body
                %v221 = vld [vmem:[%s219] sm:$0xff]
                %222 = vst [vmem:[%s220] sm:$0xff] %v221
                %v223 = vld [vmem:[%s219 + $0x8] sm:$0xff]
                %224 = vst [vmem:[%s220 + $0x8] sm:$0xff] %v223
                %v225 = vld [vmem:[%s219 + $0x20] sm:$0xff]
                %226 = vst [vmem:[%s220 + $0x10] sm:$0xff] %v225
                %v227 = vld [vmem:[%s219 + $0x28] sm:$0xff]
                %228 = vst [vmem:[%s220 + $0x18] sm:$0xff] %v227
                %v229 = vld [vmem:[%s219 + $0x40] sm:$0xff]
                %230 = vst [vmem:[%s220 + $0x20] sm:$0xff] %v229
                %v231 = vld [vmem:[%s219 + $0x48] sm:$0xff]
                %232 = vst [vmem:[%s220 + $0x28] sm:$0xff] %v231
                %v233 = vld [vmem:[%s219 + $0x60] sm:$0xff]
                %234 = vst [vmem:[%s220 + $0x30] sm:$0xff] %v233
                %v235 = vld [vmem:[%s219 + $0x68] sm:$0xff]
                %236 = vst [vmem:[%s220 + $0x38] sm:$0xff] %v235
                %v237 = vld [vmem:[%s219 + $0x80] sm:$0xff]
                %238 = vst [vmem:[%s220 + $0x40] sm:$0xff] %v237
                %v239 = vld [vmem:[%s219 + $0x88] sm:$0xff]
                %240 = vst [vmem:[%s220 + $0x48] sm:$0xff] %v239
                %v241 = vld [vmem:[%s219 + $0xa0] sm:$0xff]
                %242 = vst [vmem:[%s220 + $0x50] sm:$0xff] %v241
                %v243 = vld [vmem:[%s219 + $0xa8] sm:$0xff]
                %244 = vst [vmem:[%s220 + $0x58] sm:$0xff] %v243
                %v245 = vld [vmem:[%s219 + $0xc0] sm:$0xff]
                %246 = vst [vmem:[%s220 + $0x60] sm:$0xff] %v245
                %v247 = vld [vmem:[%s219 + $0xc8] sm:$0xff]
                %248 = vst [vmem:[%s220 + $0x68] sm:$0xff] %v247
                %v249 = vld [vmem:[%s219 + $0xe0] sm:$0xff]
                %250 = vst [vmem:[%s220 + $0x70] sm:$0xff] %v249
                %v251 = vld [vmem:[%s219 + $0xe8] sm:$0xff]
                %252 = vst [vmem:[%s220 + $0x78] sm:$0xff] %v251
                %v253 = vld [vmem:[%s219 + $0x100] sm:$0xff]
                %254 = vst [vmem:[%s220 + $0x80] sm:$0xff] %v253
                %v255 = vld [vmem:[%s219 + $0x108] sm:$0xff]
                %256 = vst [vmem:[%s220 + $0x88] sm:$0xff] %v255
                %v257 = vld [vmem:[%s219 + $0x120] sm:$0xff]
                %258 = vst [vmem:[%s220 + $0x90] sm:$0xff] %v257
                %v259 = vld [vmem:[%s219 + $0x128] sm:$0xff]
                %260 = vst [vmem:[%s220 + $0x98] sm:$0xff] %v259
                %v261 = vld [vmem:[%s219 + $0x140] sm:$0xff]
                %262 = vst [vmem:[%s220 + $0xa0] sm:$0xff] %v261
                %v263 = vld [vmem:[%s219 + $0x148] sm:$0xff]
                %264 = vst [vmem:[%s220 + $0xa8] sm:$0xff] %v263
                %v265 = vld [vmem:[%s219 + $0x160] sm:$0xff]
                %266 = vst [vmem:[%s220 + $0xb0] sm:$0xff] %v265
                %v267 = vld [vmem:[%s219 + $0x168] sm:$0xff]
                %268 = vst [vmem:[%s220 + $0xb8] sm:$0xff] %v267
                %v269 = vld [vmem:[%s219 + $0x180] sm:$0xff]
                %270 = vst [vmem:[%s220 + $0xc0] sm:$0xff] %v269
                %v271 = vld [vmem:[%s219 + $0x188] sm:$0xff]
                %272 = vst [vmem:[%s220 + $0xc8] sm:$0xff] %v271
                %v273 = vld [vmem:[%s219 + $0x1a0] sm:$0xff]
                %274 = vst [vmem:[%s220 + $0xd0] sm:$0xff] %v273
                %v275 = vld [vmem:[%s219 + $0x1a8] sm:$0xff]
                %276 = vst [vmem:[%s220 + $0xd8] sm:$0xff] %v275
                %v277 = vld [vmem:[%s219 + $0x1c0] sm:$0xff]
                %278 = vst [vmem:[%s220 + $0xe0] sm:$0xff] %v277
                %v279 = vld [vmem:[%s219 + $0x1c8] sm:$0xff]
                %280 = vst [vmem:[%s220 + $0xe8] sm:$0xff] %v279
                %v281 = vld [vmem:[%s219 + $0x1e0] sm:$0xff]
                %282 = vst [vmem:[%s220 + $0xf0] sm:$0xff] %v281
                %v283 = vld [vmem:[%s219 + $0x1e8] sm:$0xff]
                %284 = vst [vmem:[%s220 + $0xf8] sm:$0xff] %v283
                %v285 = vld [vmem:[%s219 + $0x200] sm:$0xff]
                %286 = vst [vmem:[%s220 + $0x100] sm:$0xff] %v285
                %v287 = vld [vmem:[%s219 + $0x208] sm:$0xff]
                %288 = vst [vmem:[%s220 + $0x108] sm:$0xff] %v287
                %v289 = vld [vmem:[%s219 + $0x220] sm:$0xff]
                %290 = vst [vmem:[%s220 + $0x110] sm:$0xff] %v289
                %v291 = vld [vmem:[%s219 + $0x228] sm:$0xff]
                %292 = vst [vmem:[%s220 + $0x118] sm:$0xff] %v291
                %v293 = vld [vmem:[%s219 + $0x240] sm:$0xff]
                %294 = vst [vmem:[%s220 + $0x120] sm:$0xff] %v293
                %v295 = vld [vmem:[%s219 + $0x248] sm:$0xff]
                %296 = vst [vmem:[%s220 + $0x128] sm:$0xff] %v295
                %v297 = vld [vmem:[%s219 + $0x260] sm:$0xff]
                %298 = vst [vmem:[%s220 + $0x130] sm:$0xff] %v297
                %v299 = vld [vmem:[%s219 + $0x268] sm:$0xff]
                %300 = vst [vmem:[%s220 + $0x138] sm:$0xff] %v299
                %v301 = vld [vmem:[%s219 + $0x280] sm:$0xff]
                %302 = vst [vmem:[%s220 + $0x140] sm:$0xff] %v301
                %v303 = vld [vmem:[%s219 + $0x288] sm:$0xff]
                %304 = vst [vmem:[%s220 + $0x148] sm:$0xff] %v303
                %v305 = vld [vmem:[%s219 + $0x2a0] sm:$0xff]
                %306 = vst [vmem:[%s220 + $0x150] sm:$0xff] %v305
                %v307 = vld [vmem:[%s219 + $0x2a8] sm:$0xff]
                %308 = vst [vmem:[%s220 + $0x158] sm:$0xff] %v307
                %v309 = vld [vmem:[%s219 + $0x2c0] sm:$0xff]
                %310 = vst [vmem:[%s220 + $0x160] sm:$0xff] %v309
                %v311 = vld [vmem:[%s219 + $0x2c8] sm:$0xff]
                %312 = vst [vmem:[%s220 + $0x168] sm:$0xff] %v311
                %v313 = vld [vmem:[%s219 + $0x2e0] sm:$0xff]
                %314 = vst [vmem:[%s220 + $0x170] sm:$0xff] %v313
                %v315 = vld [vmem:[%s219 + $0x2e8] sm:$0xff]
                %316 = vst [vmem:[%s220 + $0x178] sm:$0xff] %v315
                %v317 = vld [vmem:[%s219 + $0x300] sm:$0xff]
                %318 = vst [vmem:[%s220 + $0x180] sm:$0xff] %v317
                %v319 = vld [vmem:[%s219 + $0x308] sm:$0xff]
                %320 = vst [vmem:[%s220 + $0x188] sm:$0xff] %v319
                %v321 = vld [vmem:[%s219 + $0x320] sm:$0xff]
                %322 = vst [vmem:[%s220 + $0x190] sm:$0xff] %v321
                %v323 = vld [vmem:[%s219 + $0x328] sm:$0xff]
                %324 = vst [vmem:[%s220 + $0x198] sm:$0xff] %v323
                %v325 = vld [vmem:[%s219 + $0x340] sm:$0xff]
                %326 = vst [vmem:[%s220 + $0x1a0] sm:$0xff] %v325
                %v327 = vld [vmem:[%s219 + $0x348] sm:$0xff]
                %328 = vst [vmem:[%s220 + $0x1a8] sm:$0xff] %v327
                %v329 = vld [vmem:[%s219 + $0x360] sm:$0xff]
                %330 = vst [vmem:[%s220 + $0x1b0] sm:$0xff] %v329
                %v331 = vld [vmem:[%s219 + $0x368] sm:$0xff]
                %332 = vst [vmem:[%s220 + $0x1b8] sm:$0xff] %v331
                %v333 = vld [vmem:[%s219 + $0x380] sm:$0xff]
                %334 = vst [vmem:[%s220 + $0x1c0] sm:$0xff] %v333
                %v335 = vld [vmem:[%s219 + $0x388] sm:$0xff]
                %336 = vst [vmem:[%s220 + $0x1c8] sm:$0xff] %v335
                %v337 = vld [vmem:[%s219 + $0x3a0] sm:$0xff]
                %338 = vst [vmem:[%s220 + $0x1d0] sm:$0xff] %v337
                %v339 = vld [vmem:[%s219 + $0x3a8] sm:$0xff]
                %340 = vst [vmem:[%s220 + $0x1d8] sm:$0xff] %v339
                %v341 = vld [vmem:[%s219 + $0x3c0] sm:$0xff]
                %342 = vst [vmem:[%s220 + $0x1e0] sm:$0xff] %v341
                %v343 = vld [vmem:[%s219 + $0x3c8] sm:$0xff]
                %344 = vst [vmem:[%s220 + $0x1e8] sm:$0xff] %v343
                %v345 = vld [vmem:[%s219 + $0x3e0] sm:$0xff]
                %346 = vst [vmem:[%s220 + $0x1f0] sm:$0xff] %v345
                %v347 = vld [vmem:[%s219 + $0x3e8] sm:$0xff]
                %348 = vst [vmem:[%s220 + $0x1f8] sm:$0xff] %v347
                %v349 = vld [vmem:[%s219 + $0x400] sm:$0xff]
                %350 = vst [vmem:[%s220 + $0x200] sm:$0xff] %v349
                %v351 = vld [vmem:[%s219 + $0x408] sm:$0xff]
                %352 = vst [vmem:[%s220 + $0x208] sm:$0xff] %v351
                %v353 = vld [vmem:[%s219 + $0x420] sm:$0xff]
                %354 = vst [vmem:[%s220 + $0x210] sm:$0xff] %v353
                %v355 = vld [vmem:[%s219 + $0x428] sm:$0xff]
                %356 = vst [vmem:[%s220 + $0x218] sm:$0xff] %v355
                %v357 = vld [vmem:[%s219 + $0x440] sm:$0xff]
                %358 = vst [vmem:[%s220 + $0x220] sm:$0xff] %v357
                %v359 = vld [vmem:[%s219 + $0x448] sm:$0xff]
                %360 = vst [vmem:[%s220 + $0x228] sm:$0xff] %v359
                %v361 = vld [vmem:[%s219 + $0x460] sm:$0xff]
                %362 = vst [vmem:[%s220 + $0x230] sm:$0xff] %v361
                %v363 = vld [vmem:[%s219 + $0x468] sm:$0xff]
                %364 = vst [vmem:[%s220 + $0x238] sm:$0xff] %v363
                %v365 = vld [vmem:[%s219 + $0x480] sm:$0xff]
                %366 = vst [vmem:[%s220 + $0x240] sm:$0xff] %v365
                %v367 = vld [vmem:[%s219 + $0x488] sm:$0xff]
                %368 = vst [vmem:[%s220 + $0x248] sm:$0xff] %v367
                %v369 = vld [vmem:[%s219 + $0x4a0] sm:$0xff]
                %370 = vst [vmem:[%s220 + $0x250] sm:$0xff] %v369
                %v371 = vld [vmem:[%s219 + $0x4a8] sm:$0xff]
                %372 = vst [vmem:[%s220 + $0x258] sm:$0xff] %v371
                %v373 = vld [vmem:[%s219 + $0x4c0] sm:$0xff]
                %374 = vst [vmem:[%s220 + $0x260] sm:$0xff] %v373
                %v375 = vld [vmem:[%s219 + $0x4c8] sm:$0xff]
                %376 = vst [vmem:[%s220 + $0x268] sm:$0xff] %v375
                %v377 = vld [vmem:[%s219 + $0x4e0] sm:$0xff]
                %378 = vst [vmem:[%s220 + $0x270] sm:$0xff] %v377
                %v379 = vld [vmem:[%s219 + $0x4e8] sm:$0xff]
                %380 = vst [vmem:[%s220 + $0x278] sm:$0xff] %v379
                %v381 = vld [vmem:[%s219 + $0x500] sm:$0xff]
                %382 = vst [vmem:[%s220 + $0x280] sm:$0xff] %v381
                %v383 = vld [vmem:[%s219 + $0x508] sm:$0xff]
                %384 = vst [vmem:[%s220 + $0x288] sm:$0xff] %v383
                %v385 = vld [vmem:[%s219 + $0x520] sm:$0xff]
                %386 = vst [vmem:[%s220 + $0x290] sm:$0xff] %v385
                %v387 = vld [vmem:[%s219 + $0x528] sm:$0xff]
                %388 = vst [vmem:[%s220 + $0x298] sm:$0xff] %v387
                %v389 = vld [vmem:[%s219 + $0x540] sm:$0xff]
                %390 = vst [vmem:[%s220 + $0x2a0] sm:$0xff] %v389
                %v391 = vld [vmem:[%s219 + $0x548] sm:$0xff]
                %392 = vst [vmem:[%s220 + $0x2a8] sm:$0xff] %v391
                %v393 = vld [vmem:[%s219 + $0x560] sm:$0xff]
                %394 = vst [vmem:[%s220 + $0x2b0] sm:$0xff] %v393
                %v395 = vld [vmem:[%s219 + $0x568] sm:$0xff]
                %396 = vst [vmem:[%s220 + $0x2b8] sm:$0xff] %v395
                %v397 = vld [vmem:[%s219 + $0x580] sm:$0xff]
                %398 = vst [vmem:[%s220 + $0x2c0] sm:$0xff] %v397
                %v399 = vld [vmem:[%s219 + $0x588] sm:$0xff]
                %400 = vst [vmem:[%s220 + $0x2c8] sm:$0xff] %v399
                %v401 = vld [vmem:[%s219 + $0x5a0] sm:$0xff]
                %402 = vst [vmem:[%s220 + $0x2d0] sm:$0xff] %v401
                %v403 = vld [vmem:[%s219 + $0x5a8] sm:$0xff]
                %404 = vst [vmem:[%s220 + $0x2d8] sm:$0xff] %v403
                %v405 = vld [vmem:[%s219 + $0x5c0] sm:$0xff]
                %406 = vst [vmem:[%s220 + $0x2e0] sm:$0xff] %v405
                %v407 = vld [vmem:[%s219 + $0x5c8] sm:$0xff]
                %408 = vst [vmem:[%s220 + $0x2e8] sm:$0xff] %v407
                %v409 = vld [vmem:[%s219 + $0x5e0] sm:$0xff]
                %410 = vst [vmem:[%s220 + $0x2f0] sm:$0xff] %v409
                %v411 = vld [vmem:[%s219 + $0x5e8] sm:$0xff]
                %412 = vst [vmem:[%s220 + $0x2f8] sm:$0xff] %v411
                %v413 = vld [vmem:[%s219 + $0x600] sm:$0xff]
                %414 = vst [vmem:[%s220 + $0x300] sm:$0xff] %v413
                %v415 = vld [vmem:[%s219 + $0x608] sm:$0xff]
                %416 = vst [vmem:[%s220 + $0x308] sm:$0xff] %v415
                %v417 = vld [vmem:[%s219 + $0x620] sm:$0xff]
                %418 = vst [vmem:[%s220 + $0x310] sm:$0xff] %v417
                %v419 = vld [vmem:[%s219 + $0x628] sm:$0xff]
                %420 = vst [vmem:[%s220 + $0x318] sm:$0xff] %v419
                %v421 = vld [vmem:[%s219 + $0x640] sm:$0xff]
                %422 = vst [vmem:[%s220 + $0x320] sm:$0xff] %v421
                %v423 = vld [vmem:[%s219 + $0x648] sm:$0xff]
                %424 = vst [vmem:[%s220 + $0x328] sm:$0xff] %v423
                %v425 = vld [vmem:[%s219 + $0x660] sm:$0xff]
                %426 = vst [vmem:[%s220 + $0x330] sm:$0xff] %v425
                %v427 = vld [vmem:[%s219 + $0x668] sm:$0xff]
                %428 = vst [vmem:[%s220 + $0x338] sm:$0xff] %v427
                %v429 = vld [vmem:[%s219 + $0x680] sm:$0xff]
                %430 = vst [vmem:[%s220 + $0x340] sm:$0xff] %v429
                %v431 = vld [vmem:[%s219 + $0x688] sm:$0xff]
                %432 = vst [vmem:[%s220 + $0x348] sm:$0xff] %v431
                %v433 = vld [vmem:[%s219 + $0x6a0] sm:$0xff]
                %434 = vst [vmem:[%s220 + $0x350] sm:$0xff] %v433
                %v435 = vld [vmem:[%s219 + $0x6a8] sm:$0xff]
                %436 = vst [vmem:[%s220 + $0x358] sm:$0xff] %v435
                %v437 = vld [vmem:[%s219 + $0x6c0] sm:$0xff]
                %438 = vst [vmem:[%s220 + $0x360] sm:$0xff] %v437
                %v439 = vld [vmem:[%s219 + $0x6c8] sm:$0xff]
                %440 = vst [vmem:[%s220 + $0x368] sm:$0xff] %v439
                %v441 = vld [vmem:[%s219 + $0x6e0] sm:$0xff]
                %442 = vst [vmem:[%s220 + $0x370] sm:$0xff] %v441
                %v443 = vld [vmem:[%s219 + $0x6e8] sm:$0xff]
                %444 = vst [vmem:[%s220 + $0x378] sm:$0xff] %v443
                %v445 = vld [vmem:[%s219 + $0x700] sm:$0xff]
                %446 = vst [vmem:[%s220 + $0x380] sm:$0xff] %v445
                %v447 = vld [vmem:[%s219 + $0x708] sm:$0xff]
                %448 = vst [vmem:[%s220 + $0x388] sm:$0xff] %v447
                %v449 = vld [vmem:[%s219 + $0x720] sm:$0xff]
                %450 = vst [vmem:[%s220 + $0x390] sm:$0xff] %v449
                %v451 = vld [vmem:[%s219 + $0x728] sm:$0xff]
                %452 = vst [vmem:[%s220 + $0x398] sm:$0xff] %v451
                %v453 = vld [vmem:[%s219 + $0x740] sm:$0xff]
                %454 = vst [vmem:[%s220 + $0x3a0] sm:$0xff] %v453
                %v455 = vld [vmem:[%s219 + $0x748] sm:$0xff]
                %456 = vst [vmem:[%s220 + $0x3a8] sm:$0xff] %v455
                %v457 = vld [vmem:[%s219 + $0x760] sm:$0xff]
                %458 = vst [vmem:[%s220 + $0x3b0] sm:$0xff] %v457
                %v459 = vld [vmem:[%s219 + $0x768] sm:$0xff]
                %460 = vst [vmem:[%s220 + $0x3b8] sm:$0xff] %v459
                %v461 = vld [vmem:[%s219 + $0x780] sm:$0xff]
                %462 = vst [vmem:[%s220 + $0x3c0] sm:$0xff] %v461
                %v463 = vld [vmem:[%s219 + $0x788] sm:$0xff]
                %464 = vst [vmem:[%s220 + $0x3c8] sm:$0xff] %v463
                %v465 = vld [vmem:[%s219 + $0x7a0] sm:$0xff]
                %466 = vst [vmem:[%s220 + $0x3d0] sm:$0xff] %v465
                %v467 = vld [vmem:[%s219 + $0x7a8] sm:$0xff]
                %468 = vst [vmem:[%s220 + $0x3d8] sm:$0xff] %v467
                %v469 = vld [vmem:[%s219 + $0x7c0] sm:$0xff]
                %470 = vst [vmem:[%s220 + $0x3e0] sm:$0xff] %v469
                %v471 = vld [vmem:[%s219 + $0x7c8] sm:$0xff]
                %472 = vst [vmem:[%s220 + $0x3e8] sm:$0xff] %v471
                %v473 = vld [vmem:[%s219 + $0x7e0] sm:$0xff]
                %474 = vst [vmem:[%s220 + $0x3f0] sm:$0xff] %v473
                %v475 = vld [vmem:[%s219 + $0x7e8] sm:$0xff]
                %476 = vst [vmem:[%s220 + $0x3f8] sm:$0xff] %v475
              $region41: #{gcn_forward.3} parent=35 // loop_footer
                %s218 = sadd.s32 1, %s214
              $region42: #{gcn_forward.3} parent=35 // loop_footer_branch
                %213 = sbr.rel target = $region38
              $region43: #{gcn_forward.3} parent=35 // loop_exit
                _
            $region36: #{gcn_forward.3} parent=31 // pred_fallthru
              _
            // Predicated region
            $region44: #{gcn_forward.3} parent=31 // pred_check
              _
            $region45: #{gcn_forward.3} parent=31 // pred_check_branch
              %478 = sbr.rel target = $region47
            $region46: #{gcn_forward.3} parent=31 // pred_region
              _
            $region47: #{gcn_forward.3} parent=31 // pred_fallthru
              _
          $region32: #{gcn_forward.3} parent=27 // pred_fallthru
            _
          %479 = vnop
        $region28: #{gcn_forward.3} parent=23 // pred_fallthru
          _
        // Predicated region
        $region48: #{gcn_forward.3} parent=23 // pred_check
          %p480 = pneg %p94
        $region49: #{gcn_forward.3} parent=23 // pred_check_branch
          %482 = sbr.rel (%p480) target = $region51
        $region50: #{gcn_forward.3} parent=23 // pred_region
          %s483 = smul.u32 %s29, 2
          %s484 = sadd.s32 %s483, %s30
          %s485 = sld [smem:[#allocation5 + %s484]]
          %s486 = smul.u32 64, %s485
          %p487 = scmp.lt.s32.totalorder %s486, 127
          %s488 = scalar_select %p487, %s486, 127
          %s489 = smul.addr %s488, 4
          %s490 = scalar_lea.vmem %s3, %s489
          %s491 = smul.u32 %s29, 2
          %s492 = sadd.s32 %s491, %s30
          %s493 = sld [smem:[#allocation5 + %s492]]
          %s494 = smul.u32 64, %s493
        $region51: #{gcn_forward.3} parent=23 // pred_fallthru
          _
      $region24: #{gcn_forward.3} parent=5 // pred_fallthru
        _
      %p495 = scmp.le.s32.totalorder 1, %s22
      %p496 = scmp.lt.s32.totalorder %s22, 5
      %p497 = pnand %p495, %p496
      %p498 = pneg %p497
      // Predicated region
      $region52: #{gcn_forward.3} parent=5 // pred_check
        _
      $region53: #{gcn_forward.3} parent=5 // pred_check_branch
        %500 = sbr.rel (%p497) target = $region55
      $region54: #{gcn_forward.3} parent=5 // pred_region
        %s501 = ssub.s32 %s22, 1
        %s502 = sand.u32 %s55, 1
        %s503 = sand.u32 %s55, 1
        %s504 = smul.addr %s503, 1024
        %s505 = scalar_lea.vmem [#allocation6], %s504
        // Predicated region
        $region56: #{gcn_forward.3} parent=54 // pred_check
          %p506 = pneg %p68
        $region57: #{gcn_forward.3} parent=54 // pred_check_branch
          %508 = sbr.rel (%p506) target = $region59
        $region58: #{gcn_forward.3} parent=54 // pred_region
          _
        $region59: #{gcn_forward.3} parent=54 // pred_fallthru
          _
        %s509 = sand.u32 %s55, 1
        %s510 = sand.u32 %s55, 1
        %s511 = smul.addr %s510, 1024
        %s512 = scalar_lea.vmem [#allocation6], %s511
        %p513 = pneg %p68
        %p514 = pneg %p65
        %s515 = smul.u32 %s31, 2
        %s516 = sadd.s32 %s515, %s32
        %s517 = sld [smem:[#allocation5 + %s516]]
        %s518 = smul.u32 64, %s517
        %p519 = scmp.lt.s32.totalorder %s518, 127
        %s520 = scalar_select %p519, %s518, 127
        %s521 = smul.addr %s520, 4
        %s522 = scalar_lea.vmem %s3, %s521
        %p523 = pneg %p100
        %p524 = pneg %p97
        %p525 = pneg %p121
        %p526 = pneg %p118
        %p527 = pneg %p142
        %p528 = pneg %p139
        %p529 = pneg %p168
        %p530 = pneg %p165
        %s531 = smul.u32 64, %s31
        %p532 = scmp.lt.s32.totalorder %s531, 127
        %s533 = scalar_select %p532, %s531, 127
        %s534 = smul.addr %s533, 8
        %s535 = scalar_lea.vmem %s6, %s534
        %s536 = smul.u32 %s31, 2
        %s537 = sadd.s32 %s536, %s32
        %s538 = sld [smem:[#allocation5 + %s537]]
        %s539 = smul.u32 64, %s31
        %s540 = smul.u32 4, %s538
        %s541 = smul.u32 %s31, 2
        %s542 = sadd.s32 %s541, %s32
        %s543 = sld [smem:[#allocation5 + %s542]]
        %s544 = smul.u32 64, %s543
        %p545 = scmp.lt.s32.totalorder %s544, 127
        %s546 = scalar_select %p545, %s544, 127
        %s547 = smul.addr %s546, 4
        %s548 = scalar_lea.vmem %s3, %s547
        %s549 = smul.u32 %s31, 2
        %s550 = sadd.s32 %s549, %s32
        %s551 = sld [smem:[#allocation5 + %s550]]
        %s552 = smul.u32 64, %s551
        %s553 = smul.u32 64, %s31
        %p554 = scmp.lt.s32.totalorder %s553, 127
        %s555 = scalar_select %p554, %s553, 127
        %s556 = smul.addr %s555, 8
        %s557 = scalar_lea.vmem %s6, %s556
        %s558 = smul.u32 64, %s31
        %p560 = scmp.eq.s32.totalorder %s32, 0
        // Predicated region
        $region60: #{gcn_forward.3} parent=54 // pred_check
          %p561 = pneg %p560
        $region61: #{gcn_forward.3} parent=54 // pred_check_branch
          %563 = sbr.rel (%p561) target = $region63
        $region62: #{gcn_forward.3} parent=54 // pred_region
          %564 = vst [vmem:[#allocation2] sm:$0xff] 0.0
          %565 = vst [vmem:[#allocation2 + $0x8] sm:$0xff] 0.0
          %566 = vst [vmem:[#allocation2 + $0x10] sm:$0xff] 0.0
          %567 = vst [vmem:[#allocation2 + $0x18] sm:$0xff] 0.0
          %568 = vst [vmem:[#allocation2 + $0x20] sm:$0xff] 0.0
          %569 = vst [vmem:[#allocation2 + $0x28] sm:$0xff] 0.0
          %570 = vst [vmem:[#allocation2 + $0x30] sm:$0xff] 0.0
          %571 = vst [vmem:[#allocation2 + $0x38] sm:$0xff] 0.0
          %572 = vst [vmem:[#allocation2 + $0x40] sm:$0xff] 0.0
          %573 = vst [vmem:[#allocation2 + $0x48] sm:$0xff] 0.0
          %574 = vst [vmem:[#allocation2 + $0x50] sm:$0xff] 0.0
          %575 = vst [vmem:[#allocation2 + $0x58] sm:$0xff] 0.0
          %576 = vst [vmem:[#allocation2 + $0x60] sm:$0xff] 0.0
          %577 = vst [vmem:[#allocation2 + $0x68] sm:$0xff] 0.0
          %578 = vst [vmem:[#allocation2 + $0x70] sm:$0xff] 0.0
          %579 = vst [vmem:[#allocation2 + $0x78] sm:$0xff] 0.0
          %580 = vst [vmem:[#allocation2 + $0x80] sm:$0xff] 0.0
          %581 = vst [vmem:[#allocation2 + $0x88] sm:$0xff] 0.0
          %582 = vst [vmem:[#allocation2 + $0x90] sm:$0xff] 0.0
          %583 = vst [vmem:[#allocation2 + $0x98] sm:$0xff] 0.0
          %584 = vst [vmem:[#allocation2 + $0xa0] sm:$0xff] 0.0
          %585 = vst [vmem:[#allocation2 + $0xa8] sm:$0xff] 0.0
          %586 = vst [vmem:[#allocation2 + $0xb0] sm:$0xff] 0.0
          %587 = vst [vmem:[#allocation2 + $0xb8] sm:$0xff] 0.0
          %588 = vst [vmem:[#allocation2 + $0xc0] sm:$0xff] 0.0
          %589 = vst [vmem:[#allocation2 + $0xc8] sm:$0xff] 0.0
          %590 = vst [vmem:[#allocation2 + $0xd0] sm:$0xff] 0.0
          %591 = vst [vmem:[#allocation2 + $0xd8] sm:$0xff] 0.0
          %592 = vst [vmem:[#allocation2 + $0xe0] sm:$0xff] 0.0
          %593 = vst [vmem:[#allocation2 + $0xe8] sm:$0xff] 0.0
          %594 = vst [vmem:[#allocation2 + $0xf0] sm:$0xff] 0.0
          %595 = vst [vmem:[#allocation2 + $0xf8] sm:$0xff] 0.0
          %596 = vst [vmem:[#allocation2 + $0x100] sm:$0xff] 0.0
          %597 = vst [vmem:[#allocation2 + $0x108] sm:$0xff] 0.0
          %598 = vst [vmem:[#allocation2 + $0x110] sm:$0xff] 0.0
          %599 = vst [vmem:[#allocation2 + $0x118] sm:$0xff] 0.0
          %600 = vst [vmem:[#allocation2 + $0x120] sm:$0xff] 0.0
          %601 = vst [vmem:[#allocation2 + $0x128] sm:$0xff] 0.0
          %602 = vst [vmem:[#allocation2 + $0x130] sm:$0xff] 0.0
          %603 = vst [vmem:[#allocation2 + $0x138] sm:$0xff] 0.0
          %604 = vst [vmem:[#allocation2 + $0x140] sm:$0xff] 0.0
          %605 = vst [vmem:[#allocation2 + $0x148] sm:$0xff] 0.0
          %606 = vst [vmem:[#allocation2 + $0x150] sm:$0xff] 0.0
          %607 = vst [vmem:[#allocation2 + $0x158] sm:$0xff] 0.0
          %608 = vst [vmem:[#allocation2 + $0x160] sm:$0xff] 0.0
          %609 = vst [vmem:[#allocation2 + $0x168] sm:$0xff] 0.0
          %610 = vst [vmem:[#allocation2 + $0x170] sm:$0xff] 0.0
          %611 = vst [vmem:[#allocation2 + $0x178] sm:$0xff] 0.0
          %612 = vst [vmem:[#allocation2 + $0x180] sm:$0xff] 0.0
          %613 = vst [vmem:[#allocation2 + $0x188] sm:$0xff] 0.0
          %614 = vst [vmem:[#allocation2 + $0x190] sm:$0xff] 0.0
          %615 = vst [vmem:[#allocation2 + $0x198] sm:$0xff] 0.0
          %616 = vst [vmem:[#allocation2 + $0x1a0] sm:$0xff] 0.0
          %617 = vst [vmem:[#allocation2 + $0x1a8] sm:$0xff] 0.0
          %618 = vst [vmem:[#allocation2 + $0x1b0] sm:$0xff] 0.0
          %619 = vst [vmem:[#allocation2 + $0x1b8] sm:$0xff] 0.0
          %620 = vst [vmem:[#allocation2 + $0x1c0] sm:$0xff] 0.0
          %621 = vst [vmem:[#allocation2 + $0x1c8] sm:$0xff] 0.0
          %622 = vst [vmem:[#allocation2 + $0x1d0] sm:$0xff] 0.0
          %623 = vst [vmem:[#allocation2 + $0x1d8] sm:$0xff] 0.0
          %624 = vst [vmem:[#allocation2 + $0x1e0] sm:$0xff] 0.0
          %625 = vst [vmem:[#allocation2 + $0x1e8] sm:$0xff] 0.0
          %626 = vst [vmem:[#allocation2 + $0x1f0] sm:$0xff] 0.0
          %627 = vst [vmem:[#allocation2 + $0x1f8] sm:$0xff] 0.0
        $region63: #{gcn_forward.3} parent=54 // pred_fallthru
          _
        %s628 = sld [smem:[#allocation4 + %s31]]
        %p629 = scmp.lt.s32.totalorder %s32, %s628
        // Predicated region
        $region64: #{gcn_forward.3} parent=54 // pred_check
          %p630 = pneg %p629
        $region65: #{gcn_forward.3} parent=54 // pred_check_branch
          %632 = sbr.rel (%p630) target = $region67
        $region66: #{gcn_forward.3} parent=54 // pred_region
          %v633 = vld [vmem:[#allocation2] sm:$0xff]
          %v634 = vld [vmem:[#allocation2 + $0x8] sm:$0xff]
          %v635 = vld [vmem:[#allocation2 + $0x10] sm:$0xff]
          %v636 = vld [vmem:[#allocation2 + $0x18] sm:$0xff]
          %v637 = vld [vmem:[#allocation2 + $0x20] sm:$0xff]
          %v638 = vld [vmem:[#allocation2 + $0x28] sm:$0xff]
          %v639 = vld [vmem:[#allocation2 + $0x30] sm:$0xff]
          %v640 = vld [vmem:[#allocation2 + $0x38] sm:$0xff]
          %v641 = vld [vmem:[#allocation2 + $0x40] sm:$0xff]
          %v642 = vld [vmem:[#allocation2 + $0x48] sm:$0xff]
          %v643 = vld [vmem:[#allocation2 + $0x50] sm:$0xff]
          %v644 = vld [vmem:[#allocation2 + $0x58] sm:$0xff]
          %v645 = vld [vmem:[#allocation2 + $0x60] sm:$0xff]
          %v646 = vld [vmem:[#allocation2 + $0x68] sm:$0xff]
          %v647 = vld [vmem:[#allocation2 + $0x70] sm:$0xff]
          %v648 = vld [vmem:[#allocation2 + $0x78] sm:$0xff]
          %v649 = vld [vmem:[#allocation2 + $0x80] sm:$0xff]
          %v650 = vld [vmem:[#allocation2 + $0x88] sm:$0xff]
          %v651 = vld [vmem:[#allocation2 + $0x90] sm:$0xff]
          %v652 = vld [vmem:[#allocation2 + $0x98] sm:$0xff]
          %v653 = vld [vmem:[#allocation2 + $0xa0] sm:$0xff]
          %v654 = vld [vmem:[#allocation2 + $0xa8] sm:$0xff]
          %v655 = vld [vmem:[#allocation2 + $0xb0] sm:$0xff]
          %v656 = vld [vmem:[#allocation2 + $0xb8] sm:$0xff]
          %v657 = vld [vmem:[#allocation2 + $0xc0] sm:$0xff]
          %v658 = vld [vmem:[#allocation2 + $0xc8] sm:$0xff]
          %v659 = vld [vmem:[#allocation2 + $0xd0] sm:$0xff]
          %v660 = vld [vmem:[#allocation2 + $0xd8] sm:$0xff]
          %v661 = vld [vmem:[#allocation2 + $0xe0] sm:$0xff]
          %v662 = vld [vmem:[#allocation2 + $0xe8] sm:$0xff]
          %v663 = vld [vmem:[#allocation2 + $0xf0] sm:$0xff]
          %v664 = vld [vmem:[#allocation2 + $0xf8] sm:$0xff]
          %v665 = vld [vmem:[#allocation2 + $0x100] sm:$0xff]
          %v666 = vld [vmem:[#allocation2 + $0x108] sm:$0xff]
          %v667 = vld [vmem:[#allocation2 + $0x110] sm:$0xff]
          %v668 = vld [vmem:[#allocation2 + $0x118] sm:$0xff]
          %v669 = vld [vmem:[#allocation2 + $0x120] sm:$0xff]
          %v670 = vld [vmem:[#allocation2 + $0x128] sm:$0xff]
          %v671 = vld [vmem:[#allocation2 + $0x130] sm:$0xff]
          %v672 = vld [vmem:[#allocation2 + $0x138] sm:$0xff]
          %v673 = vld [vmem:[#allocation2 + $0x140] sm:$0xff]
          %v674 = vld [vmem:[#allocation2 + $0x148] sm:$0xff]
          %v675 = vld [vmem:[#allocation2 + $0x150] sm:$0xff]
          %v676 = vld [vmem:[#allocation2 + $0x158] sm:$0xff]
          %v677 = vld [vmem:[#allocation2 + $0x160] sm:$0xff]
          %v678 = vld [vmem:[#allocation2 + $0x168] sm:$0xff]
          %v679 = vld [vmem:[#allocation2 + $0x170] sm:$0xff]
          %v680 = vld [vmem:[#allocation2 + $0x178] sm:$0xff]
          %v681 = vld [vmem:[#allocation2 + $0x180] sm:$0xff]
          %v682 = vld [vmem:[#allocation2 + $0x188] sm:$0xff]
          %v683 = vld [vmem:[#allocation2 + $0x190] sm:$0xff]
          %v684 = vld [vmem:[#allocation2 + $0x198] sm:$0xff]
          %v685 = vld [vmem:[#allocation2 + $0x1a0] sm:$0xff]
          %v686 = vld [vmem:[#allocation2 + $0x1a8] sm:$0xff]
          %v687 = vld [vmem:[#allocation2 + $0x1b0] sm:$0xff]
          %v688 = vld [vmem:[#allocation2 + $0x1b8] sm:$0xff]
          %v689 = vld [vmem:[#allocation2 + $0x1c0] sm:$0xff]
          %v690 = vld [vmem:[#allocation2 + $0x1c8] sm:$0xff]
          %v691 = vld [vmem:[#allocation2 + $0x1d0] sm:$0xff]
          %v692 = vld [vmem:[#allocation2 + $0x1d8] sm:$0xff]
          %v693 = vld [vmem:[#allocation2 + $0x1e0] sm:$0xff]
          %v694 = vld [vmem:[#allocation2 + $0x1e8] sm:$0xff]
          %v695 = vld [vmem:[#allocation2 + $0x1f0] sm:$0xff]
          %v696 = vld [vmem:[#allocation2 + $0x1f8] sm:$0xff]
          %v697 = vld [vmem:[%s505] sm:$0xff]
          %v698 = vld [vmem:[%s505 + $0x8] sm:$0xff]
          %v699 = vld [vmem:[%s505 + $0x10] sm:$0xff]
          %v700 = vld [vmem:[%s505 + $0x18] sm:$0xff]
          %v701 = vld [vmem:[%s505 + $0x20] sm:$0xff]
          %v702 = vld [vmem:[%s505 + $0x28] sm:$0xff]
          %v703 = vld [vmem:[%s505 + $0x30] sm:$0xff]
          %v704 = vld [vmem:[%s505 + $0x38] sm:$0xff]
          %v705 = vld [vmem:[%s505 + $0x40] sm:$0xff]
          %v706 = vld [vmem:[%s505 + $0x48] sm:$0xff]
          %v707 = vld [vmem:[%s505 + $0x50] sm:$0xff]
          %v708 = vld [vmem:[%s505 + $0x58] sm:$0xff]
          %v709 = vld [vmem:[%s505 + $0x60] sm:$0xff]
          %v710 = vld [vmem:[%s505 + $0x68] sm:$0xff]
          %v711 = vld [vmem:[%s505 + $0x70] sm:$0xff]
          %v712 = vld [vmem:[%s505 + $0x78] sm:$0xff]
          %v713 = vld [vmem:[%s505 + $0x80] sm:$0xff]
          %v714 = vld [vmem:[%s505 + $0x88] sm:$0xff]
          %v715 = vld [vmem:[%s505 + $0x90] sm:$0xff]
          %v716 = vld [vmem:[%s505 + $0x98] sm:$0xff]
          %v717 = vld [vmem:[%s505 + $0xa0] sm:$0xff]
          %v718 = vld [vmem:[%s505 + $0xa8] sm:$0xff]
          %v719 = vld [vmem:[%s505 + $0xb0] sm:$0xff]
          %v720 = vld [vmem:[%s505 + $0xb8] sm:$0xff]
          %v721 = vld [vmem:[%s505 + $0xc0] sm:$0xff]
          %v722 = vld [vmem:[%s505 + $0xc8] sm:$0xff]
          %v723 = vld [vmem:[%s505 + $0xd0] sm:$0xff]
          %v724 = vld [vmem:[%s505 + $0xd8] sm:$0xff]
          %v725 = vld [vmem:[%s505 + $0xe0] sm:$0xff]
          %v726 = vld [vmem:[%s505 + $0xe8] sm:$0xff]
          %v727 = vld [vmem:[%s505 + $0xf0] sm:$0xff]
          %v728 = vld [vmem:[%s505 + $0xf8] sm:$0xff]
          %v729 = vld [vmem:[%s505 + $0x100] sm:$0xff]
          %v730 = vld [vmem:[%s505 + $0x108] sm:$0xff]
          %v731 = vld [vmem:[%s505 + $0x110] sm:$0xff]
          %v732 = vld [vmem:[%s505 + $0x118] sm:$0xff]
          %v733 = vld [vmem:[%s505 + $0x120] sm:$0xff]
          %v734 = vld [vmem:[%s505 + $0x128] sm:$0xff]
          %v735 = vld [vmem:[%s505 + $0x130] sm:$0xff]
          %v736 = vld [vmem:[%s505 + $0x138] sm:$0xff]
          %v737 = vld [vmem:[%s505 + $0x140] sm:$0xff]
          %v738 = vld [vmem:[%s505 + $0x148] sm:$0xff]
          %v739 = vld [vmem:[%s505 + $0x150] sm:$0xff]
          %v740 = vld [vmem:[%s505 + $0x158] sm:$0xff]
          %v741 = vld [vmem:[%s505 + $0x160] sm:$0xff]
          %v742 = vld [vmem:[%s505 + $0x168] sm:$0xff]
          %v743 = vld [vmem:[%s505 + $0x170] sm:$0xff]
          %v744 = vld [vmem:[%s505 + $0x178] sm:$0xff]
          %v745 = vld [vmem:[%s505 + $0x180] sm:$0xff]
          %v746 = vld [vmem:[%s505 + $0x188] sm:$0xff]
          %v747 = vld [vmem:[%s505 + $0x190] sm:$0xff]
          %v748 = vld [vmem:[%s505 + $0x198] sm:$0xff]
          %v749 = vld [vmem:[%s505 + $0x1a0] sm:$0xff]
          %v750 = vld [vmem:[%s505 + $0x1a8] sm:$0xff]
          %v751 = vld [vmem:[%s505 + $0x1b0] sm:$0xff]
          %v752 = vld [vmem:[%s505 + $0x1b8] sm:$0xff]
          %v753 = vld [vmem:[%s505 + $0x1c0] sm:$0xff]
          %v754 = vld [vmem:[%s505 + $0x1c8] sm:$0xff]
          %v755 = vld [vmem:[%s505 + $0x1d0] sm:$0xff]
          %v756 = vld [vmem:[%s505 + $0x1d8] sm:$0xff]
          %v757 = vld [vmem:[%s505 + $0x1e0] sm:$0xff]
          %v758 = vld [vmem:[%s505 + $0x1e8] sm:$0xff]
          %v759 = vld [vmem:[%s505 + $0x1f0] sm:$0xff]
          %v760 = vld [vmem:[%s505 + $0x1f8] sm:$0xff]
          %v761 = vld [vmem:[%s505 + $0x200] sm:$0xff]
          %v762 = vld [vmem:[%s505 + $0x208] sm:$0xff]
          %v763 = vld [vmem:[%s505 + $0x210] sm:$0xff]
          %v764 = vld [vmem:[%s505 + $0x218] sm:$0xff]
          %v765 = vld [vmem:[%s505 + $0x220] sm:$0xff]
          %v766 = vld [vmem:[%s505 + $0x228] sm:$0xff]
          %v767 = vld [vmem:[%s505 + $0x230] sm:$0xff]
          %v768 = vld [vmem:[%s505 + $0x238] sm:$0xff]
          %v769 = vld [vmem:[%s505 + $0x240] sm:$0xff]
          %v770 = vld [vmem:[%s505 + $0x248] sm:$0xff]
          %v771 = vld [vmem:[%s505 + $0x250] sm:$0xff]
          %v772 = vld [vmem:[%s505 + $0x258] sm:$0xff]
          %v773 = vld [vmem:[%s505 + $0x260] sm:$0xff]
          %v774 = vld [vmem:[%s505 + $0x268] sm:$0xff]
          %v775 = vld [vmem:[%s505 + $0x270] sm:$0xff]
          %v776 = vld [vmem:[%s505 + $0x278] sm:$0xff]
          %v777 = vld [vmem:[%s505 + $0x280] sm:$0xff]
          %v778 = vld [vmem:[%s505 + $0x288] sm:$0xff]
          %v779 = vld [vmem:[%s505 + $0x290] sm:$0xff]
          %v780 = vld [vmem:[%s505 + $0x298] sm:$0xff]
          %v781 = vld [vmem:[%s505 + $0x2a0] sm:$0xff]
          %v782 = vld [vmem:[%s505 + $0x2a8] sm:$0xff]
          %v783 = vld [vmem:[%s505 + $0x2b0] sm:$0xff]
          %v784 = vld [vmem:[%s505 + $0x2b8] sm:$0xff]
          %v785 = vld [vmem:[%s505 + $0x2c0] sm:$0xff]
          %v786 = vld [vmem:[%s505 + $0x2c8] sm:$0xff]
          %v787 = vld [vmem:[%s505 + $0x2d0] sm:$0xff]
          %v788 = vld [vmem:[%s505 + $0x2d8] sm:$0xff]
          %v789 = vld [vmem:[%s505 + $0x2e0] sm:$0xff]
          %v790 = vld [vmem:[%s505 + $0x2e8] sm:$0xff]
          %v791 = vld [vmem:[%s505 + $0x2f0] sm:$0xff]
          %v792 = vld [vmem:[%s505 + $0x2f8] sm:$0xff]
          %v793 = vld [vmem:[%s505 + $0x300] sm:$0xff]
          %v794 = vld [vmem:[%s505 + $0x308] sm:$0xff]
          %v795 = vld [vmem:[%s505 + $0x310] sm:$0xff]
          %v796 = vld [vmem:[%s505 + $0x318] sm:$0xff]
          %v797 = vld [vmem:[%s505 + $0x320] sm:$0xff]
          %v798 = vld [vmem:[%s505 + $0x328] sm:$0xff]
          %v799 = vld [vmem:[%s505 + $0x330] sm:$0xff]
          %v800 = vld [vmem:[%s505 + $0x338] sm:$0xff]
          %v801 = vld [vmem:[%s505 + $0x340] sm:$0xff]
          %v802 = vld [vmem:[%s505 + $0x348] sm:$0xff]
          %v803 = vld [vmem:[%s505 + $0x350] sm:$0xff]
          %v804 = vld [vmem:[%s505 + $0x358] sm:$0xff]
          %v805 = vld [vmem:[%s505 + $0x360] sm:$0xff]
          %v806 = vld [vmem:[%s505 + $0x368] sm:$0xff]
          %v807 = vld [vmem:[%s505 + $0x370] sm:$0xff]
          %v808 = vld [vmem:[%s505 + $0x378] sm:$0xff]
          %v809 = vld [vmem:[%s505 + $0x380] sm:$0xff]
          %v810 = vld [vmem:[%s505 + $0x388] sm:$0xff]
          %v811 = vld [vmem:[%s505 + $0x390] sm:$0xff]
          %v812 = vld [vmem:[%s505 + $0x398] sm:$0xff]
          %v813 = vld [vmem:[%s505 + $0x3a0] sm:$0xff]
          %v814 = vld [vmem:[%s505 + $0x3a8] sm:$0xff]
          %v815 = vld [vmem:[%s505 + $0x3b0] sm:$0xff]
          %v816 = vld [vmem:[%s505 + $0x3b8] sm:$0xff]
          %v817 = vld [vmem:[%s505 + $0x3c0] sm:$0xff]
          %v818 = vld [vmem:[%s505 + $0x3c8] sm:$0xff]
          %v819 = vld [vmem:[%s505 + $0x3d0] sm:$0xff]
          %v820 = vld [vmem:[%s505 + $0x3d8] sm:$0xff]
          %v821 = vld [vmem:[%s505 + $0x3e0] sm:$0xff]
          %v822 = vld [vmem:[%s505 + $0x3e8] sm:$0xff]
          %v823 = vld [vmem:[%s505 + $0x3f0] sm:$0xff]
          %v824 = vld [vmem:[%s505 + $0x3f8] sm:$0xff]
          %v825 = vld [vmem:[%s548] sm:$0xf]
          %v826 = vld [vmem:[%s548 + $0x4] sm:$0xf]
          %v827 = vld [vmem:[%s548 + $0x8] sm:$0xf]
          %v828 = vld [vmem:[%s548 + $0xc] sm:$0xf]
          %v829 = vld [vmem:[%s548 + $0x10] sm:$0xf]
          %v830 = vld [vmem:[%s548 + $0x14] sm:$0xf]
          %v831 = vld [vmem:[%s548 + $0x18] sm:$0xf]
          %v832 = vld [vmem:[%s548 + $0x1c] sm:$0xf]
          %v833 = vld [vmem:[%s548 + $0x20] sm:$0xf]
          %v834 = vld [vmem:[%s548 + $0x24] sm:$0xf]
          %v835 = vld [vmem:[%s548 + $0x28] sm:$0xf]
          %v836 = vld [vmem:[%s548 + $0x2c] sm:$0xf]
          %v837 = vld [vmem:[%s548 + $0x30] sm:$0xf]
          %v838 = vld [vmem:[%s548 + $0x34] sm:$0xf]
          %v839 = vld [vmem:[%s548 + $0x38] sm:$0xf]
          %v840 = vld [vmem:[%s548 + $0x3c] sm:$0xf]
          %v841 = vld [vmem:[%s548 + $0x40] sm:$0xf]
          %v842 = vld [vmem:[%s548 + $0x44] sm:$0xf]
          %v843 = vld [vmem:[%s548 + $0x48] sm:$0xf]
          %v844 = vld [vmem:[%s548 + $0x4c] sm:$0xf]
          %v845 = vld [vmem:[%s548 + $0x50] sm:$0xf]
          %v846 = vld [vmem:[%s548 + $0x54] sm:$0xf]
          %v847 = vld [vmem:[%s548 + $0x58] sm:$0xf]
          %v848 = vld [vmem:[%s548 + $0x5c] sm:$0xf]
          %v849 = vld [vmem:[%s548 + $0x60] sm:$0xf]
          %v850 = vld [vmem:[%s548 + $0x64] sm:$0xf]
          %v851 = vld [vmem:[%s548 + $0x68] sm:$0xf]
          %v852 = vld [vmem:[%s548 + $0x6c] sm:$0xf]
          %v853 = vld [vmem:[%s548 + $0x70] sm:$0xf]
          %v854 = vld [vmem:[%s548 + $0x74] sm:$0xf]
          %v855 = vld [vmem:[%s548 + $0x78] sm:$0xf]
          %v856 = vld [vmem:[%s548 + $0x7c] sm:$0xf]
          %v857 = vld [vmem:[%s548 + $0x80] sm:$0xf]
          %v858 = vld [vmem:[%s548 + $0x84] sm:$0xf]
          %v859 = vld [vmem:[%s548 + $0x88] sm:$0xf]
          %v860 = vld [vmem:[%s548 + $0x8c] sm:$0xf]
          %v861 = vld [vmem:[%s548 + $0x90] sm:$0xf]
          %v862 = vld [vmem:[%s548 + $0x94] sm:$0xf]
          %v863 = vld [vmem:[%s548 + $0x98] sm:$0xf]
          %v864 = vld [vmem:[%s548 + $0x9c] sm:$0xf]
          %v865 = vld [vmem:[%s548 + $0xa0] sm:$0xf]
          %v866 = vld [vmem:[%s548 + $0xa4] sm:$0xf]
          %v867 = vld [vmem:[%s548 + $0xa8] sm:$0xf]
          %v868 = vld [vmem:[%s548 + $0xac] sm:$0xf]
          %v869 = vld [vmem:[%s548 + $0xb0] sm:$0xf]
          %v870 = vld [vmem:[%s548 + $0xb4] sm:$0xf]
          %v871 = vld [vmem:[%s548 + $0xb8] sm:$0xf]
          %v872 = vld [vmem:[%s548 + $0xbc] sm:$0xf]
          %v873 = vld [vmem:[%s548 + $0xc0] sm:$0xf]
          %v874 = vld [vmem:[%s548 + $0xc4] sm:$0xf]
          %v875 = vld [vmem:[%s548 + $0xc8] sm:$0xf]
          %v876 = vld [vmem:[%s548 + $0xcc] sm:$0xf]
          %v877 = vld [vmem:[%s548 + $0xd0] sm:$0xf]
          %v878 = vld [vmem:[%s548 + $0xd4] sm:$0xf]
          %v879 = vld [vmem:[%s548 + $0xd8] sm:$0xf]
          %v880 = vld [vmem:[%s548 + $0xdc] sm:$0xf]
          %v881 = vld [vmem:[%s548 + $0xe0] sm:$0xf]
          %v882 = vld [vmem:[%s548 + $0xe4] sm:$0xf]
          %v883 = vld [vmem:[%s548 + $0xe8] sm:$0xf]
          %v884 = vld [vmem:[%s548 + $0xec] sm:$0xf]
          %v885 = vld [vmem:[%s548 + $0xf0] sm:$0xf]
          %v886 = vld [vmem:[%s548 + $0xf4] sm:$0xf]
          %v887 = vld [vmem:[%s548 + $0xf8] sm:$0xf]
          %v888 = vld [vmem:[%s548 + $0xfc] sm:$0xf]
          %v1017 = vunpack.c.l.b16 %v697
          %v1018 = vunpack.c.h.b16 %v697
          %v1019 = vunpack.c.l.b16 %v698
          %v1020 = vunpack.c.h.b16 %v698
          %v1021 = vunpack.c.l.b16 %v699
          %v1022 = vunpack.c.h.b16 %v699
          %v1023 = vunpack.c.l.b16 %v700
          %v1024 = vunpack.c.h.b16 %v700
          %v1025 = vunpack.c.l.b16 %v701
          %v1026 = vunpack.c.h.b16 %v701
          %v1027 = vunpack.c.l.b16 %v702
          %v1028 = vunpack.c.h.b16 %v702
          %v1029 = vunpack.c.l.b16 %v703
          %v1030 = vunpack.c.h.b16 %v703
          %v1031 = vunpack.c.l.b16 %v704
          %v1032 = vunpack.c.h.b16 %v704
          %v1033 = vunpack.c.l.b16 %v705
          %v1034 = vunpack.c.h.b16 %v705
          %v1035 = vunpack.c.l.b16 %v706
          %v1036 = vunpack.c.h.b16 %v706
          %v1037 = vunpack.c.l.b16 %v707
          %v1038 = vunpack.c.h.b16 %v707
          %v1039 = vunpack.c.l.b16 %v708
          %v1040 = vunpack.c.h.b16 %v708
          %v1041 = vunpack.c.l.b16 %v709
          %v1042 = vunpack.c.h.b16 %v709
          %v1043 = vunpack.c.l.b16 %v710
          %v1044 = vunpack.c.h.b16 %v710
          %v1045 = vunpack.c.l.b16 %v711
          %v1046 = vunpack.c.h.b16 %v711
          %v1047 = vunpack.c.l.b16 %v712
          %v1048 = vunpack.c.h.b16 %v712
          %v1049 = vunpack.c.l.b16 %v713
          %v1050 = vunpack.c.h.b16 %v713
          %v1051 = vunpack.c.l.b16 %v714
          %v1052 = vunpack.c.h.b16 %v714
          %v1053 = vunpack.c.l.b16 %v715
          %v1054 = vunpack.c.h.b16 %v715
          %v1055 = vunpack.c.l.b16 %v716
          %v1056 = vunpack.c.h.b16 %v716
          %v1057 = vunpack.c.l.b16 %v717
          %v1058 = vunpack.c.h.b16 %v717
          %v1059 = vunpack.c.l.b16 %v718
          %v1060 = vunpack.c.h.b16 %v718
          %v1061 = vunpack.c.l.b16 %v719
          %v1062 = vunpack.c.h.b16 %v719
          %v1063 = vunpack.c.l.b16 %v720
          %v1064 = vunpack.c.h.b16 %v720
          %v1065 = vunpack.c.l.b16 %v721
          %v1066 = vunpack.c.h.b16 %v721
          %v1067 = vunpack.c.l.b16 %v722
          %v1068 = vunpack.c.h.b16 %v722
          %v1069 = vunpack.c.l.b16 %v723
          %v1070 = vunpack.c.h.b16 %v723
          %v1071 = vunpack.c.l.b16 %v724
          %v1072 = vunpack.c.h.b16 %v724
          %v1073 = vunpack.c.l.b16 %v725
          %v1074 = vunpack.c.h.b16 %v725
          %v1075 = vunpack.c.l.b16 %v726
          %v1076 = vunpack.c.h.b16 %v726
          %v1077 = vunpack.c.l.b16 %v727
          %v1078 = vunpack.c.h.b16 %v727
          %v1079 = vunpack.c.l.b16 %v728
          %v1080 = vunpack.c.h.b16 %v728
          %v1081 = vunpack.c.l.b16 %v729
          %v1082 = vunpack.c.h.b16 %v729
          %v1083 = vunpack.c.l.b16 %v730
          %v1084 = vunpack.c.h.b16 %v730
          %v1085 = vunpack.c.l.b16 %v731
          %v1086 = vunpack.c.h.b16 %v731
          %v1087 = vunpack.c.l.b16 %v732
          %v1088 = vunpack.c.h.b16 %v732
          %v1089 = vunpack.c.l.b16 %v733
          %v1090 = vunpack.c.h.b16 %v733
          %v1091 = vunpack.c.l.b16 %v734
          %v1092 = vunpack.c.h.b16 %v734
          %v1093 = vunpack.c.l.b16 %v735
          %v1094 = vunpack.c.h.b16 %v735
          %v1095 = vunpack.c.l.b16 %v736
          %v1096 = vunpack.c.h.b16 %v736
          %v1097 = vunpack.c.l.b16 %v737
          %v1098 = vunpack.c.h.b16 %v737
          %v1099 = vunpack.c.l.b16 %v738
          %v1100 = vunpack.c.h.b16 %v738
          %v1101 = vunpack.c.l.b16 %v739
          %v1102 = vunpack.c.h.b16 %v739
          %v1103 = vunpack.c.l.b16 %v740
          %v1104 = vunpack.c.h.b16 %v740
          %v1105 = vunpack.c.l.b16 %v741
          %v1106 = vunpack.c.h.b16 %v741
          %v1107 = vunpack.c.l.b16 %v742
          %v1108 = vunpack.c.h.b16 %v742
          %v1109 = vunpack.c.l.b16 %v743
          %v1110 = vunpack.c.h.b16 %v743
          %v1111 = vunpack.c.l.b16 %v744
          %v1112 = vunpack.c.h.b16 %v744
          %v1113 = vunpack.c.l.b16 %v745
          %v1114 = vunpack.c.h.b16 %v745
          %v1115 = vunpack.c.l.b16 %v746
          %v1116 = vunpack.c.h.b16 %v746
          %v1117 = vunpack.c.l.b16 %v747
          %v1118 = vunpack.c.h.b16 %v747
          %v1119 = vunpack.c.l.b16 %v748
          %v1120 = vunpack.c.h.b16 %v748
          %v1121 = vunpack.c.l.b16 %v749
          %v1122 = vunpack.c.h.b16 %v749
          %v1123 = vunpack.c.l.b16 %v750
          %v1124 = vunpack.c.h.b16 %v750
          %v1125 = vunpack.c.l.b16 %v751
          %v1126 = vunpack.c.h.b16 %v751
          %v1127 = vunpack.c.l.b16 %v752
          %v1128 = vunpack.c.h.b16 %v752
          %v1129 = vunpack.c.l.b16 %v753
          %v1130 = vunpack.c.h.b16 %v753
          %v1131 = vunpack.c.l.b16 %v754
          %v1132 = vunpack.c.h.b16 %v754
          %v1133 = vunpack.c.l.b16 %v755
          %v1134 = vunpack.c.h.b16 %v755
          %v1135 = vunpack.c.l.b16 %v756
          %v1136 = vunpack.c.h.b16 %v756
          %v1137 = vunpack.c.l.b16 %v757
          %v1138 = vunpack.c.h.b16 %v757
          %v1139 = vunpack.c.l.b16 %v758
          %v1140 = vunpack.c.h.b16 %v758
          %v1141 = vunpack.c.l.b16 %v759
          %v1142 = vunpack.c.h.b16 %v759
          %v1143 = vunpack.c.l.b16 %v760
          %v1144 = vunpack.c.h.b16 %v760
          %v1145 = vunpack.c.l.b16 %v761
          %v1146 = vunpack.c.h.b16 %v761
          %v1147 = vunpack.c.l.b16 %v762
          %v1148 = vunpack.c.h.b16 %v762
          %v1149 = vunpack.c.l.b16 %v763
          %v1150 = vunpack.c.h.b16 %v763
          %v1151 = vunpack.c.l.b16 %v764
          %v1152 = vunpack.c.h.b16 %v764
          %v1153 = vunpack.c.l.b16 %v765
          %v1154 = vunpack.c.h.b16 %v765
          %v1155 = vunpack.c.l.b16 %v766
          %v1156 = vunpack.c.h.b16 %v766
          %v1157 = vunpack.c.l.b16 %v767
          %v1158 = vunpack.c.h.b16 %v767
          %v1159 = vunpack.c.l.b16 %v768
          %v1160 = vunpack.c.h.b16 %v768
          %v1161 = vunpack.c.l.b16 %v769
          %v1162 = vunpack.c.h.b16 %v769
          %v1163 = vunpack.c.l.b16 %v770
          %v1164 = vunpack.c.h.b16 %v770
          %v1165 = vunpack.c.l.b16 %v771
          %v1166 = vunpack.c.h.b16 %v771
          %v1167 = vunpack.c.l.b16 %v772
          %v1168 = vunpack.c.h.b16 %v772
          %v1169 = vunpack.c.l.b16 %v773
          %v1170 = vunpack.c.h.b16 %v773
          %v1171 = vunpack.c.l.b16 %v774
          %v1172 = vunpack.c.h.b16 %v774
          %v1173 = vunpack.c.l.b16 %v775
          %v1174 = vunpack.c.h.b16 %v775
          %v1175 = vunpack.c.l.b16 %v776
          %v1176 = vunpack.c.h.b16 %v776
          %v1177 = vunpack.c.l.b16 %v777
          %v1178 = vunpack.c.h.b16 %v777
          %v1179 = vunpack.c.l.b16 %v778
          %v1180 = vunpack.c.h.b16 %v778
          %v1181 = vunpack.c.l.b16 %v779
          %v1182 = vunpack.c.h.b16 %v779
          %v1183 = vunpack.c.l.b16 %v780
          %v1184 = vunpack.c.h.b16 %v780
          %v1185 = vunpack.c.l.b16 %v781
          %v1186 = vunpack.c.h.b16 %v781
          %v1187 = vunpack.c.l.b16 %v782
          %v1188 = vunpack.c.h.b16 %v782
          %v1189 = vunpack.c.l.b16 %v783
          %v1190 = vunpack.c.h.b16 %v783
          %v1191 = vunpack.c.l.b16 %v784
          %v1192 = vunpack.c.h.b16 %v784
          %v1193 = vunpack.c.l.b16 %v785
          %v1194 = vunpack.c.h.b16 %v785
          %v1195 = vunpack.c.l.b16 %v786
          %v1196 = vunpack.c.h.b16 %v786
          %v1197 = vunpack.c.l.b16 %v787
          %v1198 = vunpack.c.h.b16 %v787
          %v1199 = vunpack.c.l.b16 %v788
          %v1200 = vunpack.c.h.b16 %v788
          %v1201 = vunpack.c.l.b16 %v789
          %v1202 = vunpack.c.h.b16 %v789
          %v1203 = vunpack.c.l.b16 %v790
          %v1204 = vunpack.c.h.b16 %v790
          %v1205 = vunpack.c.l.b16 %v791
          %v1206 = vunpack.c.h.b16 %v791
          %v1207 = vunpack.c.l.b16 %v792
          %v1208 = vunpack.c.h.b16 %v792
          %v1209 = vunpack.c.l.b16 %v793
          %v1210 = vunpack.c.h.b16 %v793
          %v1211 = vunpack.c.l.b16 %v794
          %v1212 = vunpack.c.h.b16 %v794
          %v1213 = vunpack.c.l.b16 %v795
          %v1214 = vunpack.c.h.b16 %v795
          %v1215 = vunpack.c.l.b16 %v796
          %v1216 = vunpack.c.h.b16 %v796
          %v1217 = vunpack.c.l.b16 %v797
          %v1218 = vunpack.c.h.b16 %v797
          %v1219 = vunpack.c.l.b16 %v798
          %v1220 = vunpack.c.h.b16 %v798
          %v1221 = vunpack.c.l.b16 %v799
          %v1222 = vunpack.c.h.b16 %v799
          %v1223 = vunpack.c.l.b16 %v800
          %v1224 = vunpack.c.h.b16 %v800
          %v1225 = vunpack.c.l.b16 %v801
          %v1226 = vunpack.c.h.b16 %v801
          %v1227 = vunpack.c.l.b16 %v802
          %v1228 = vunpack.c.h.b16 %v802
          %v1229 = vunpack.c.l.b16 %v803
          %v1230 = vunpack.c.h.b16 %v803
          %v1231 = vunpack.c.l.b16 %v804
          %v1232 = vunpack.c.h.b16 %v804
          %v1233 = vunpack.c.l.b16 %v805
          %v1234 = vunpack.c.h.b16 %v805
          %v1235 = vunpack.c.l.b16 %v806
          %v1236 = vunpack.c.h.b16 %v806
          %v1237 = vunpack.c.l.b16 %v807
          %v1238 = vunpack.c.h.b16 %v807
          %v1239 = vunpack.c.l.b16 %v808
          %v1240 = vunpack.c.h.b16 %v808
          %v1241 = vunpack.c.l.b16 %v809
          %v1242 = vunpack.c.h.b16 %v809
          %v1243 = vunpack.c.l.b16 %v810
          %v1244 = vunpack.c.h.b16 %v810
          %v1245 = vunpack.c.l.b16 %v811
          %v1246 = vunpack.c.h.b16 %v811
          %v1247 = vunpack.c.l.b16 %v812
          %v1248 = vunpack.c.h.b16 %v812
          %v1249 = vunpack.c.l.b16 %v813
          %v1250 = vunpack.c.h.b16 %v813
          %v1251 = vunpack.c.l.b16 %v814
          %v1252 = vunpack.c.h.b16 %v814
          %v1253 = vunpack.c.l.b16 %v815
          %v1254 = vunpack.c.h.b16 %v815
          %v1255 = vunpack.c.l.b16 %v816
          %v1256 = vunpack.c.h.b16 %v816
          %v1257 = vunpack.c.l.b16 %v817
          %v1258 = vunpack.c.h.b16 %v817
          %v1259 = vunpack.c.l.b16 %v818
          %v1260 = vunpack.c.h.b16 %v818
          %v1261 = vunpack.c.l.b16 %v819
          %v1262 = vunpack.c.h.b16 %v819
          %v1263 = vunpack.c.l.b16 %v820
          %v1264 = vunpack.c.h.b16 %v820
          %v1265 = vunpack.c.l.b16 %v821
          %v1266 = vunpack.c.h.b16 %v821
          %v1267 = vunpack.c.l.b16 %v822
          %v1268 = vunpack.c.h.b16 %v822
          %v1269 = vunpack.c.l.b16 %v823
          %v1270 = vunpack.c.h.b16 %v823
          %v1271 = vunpack.c.l.b16 %v824
          %v1272 = vunpack.c.h.b16 %v824
          %v1273 = vpack.c.b16 %v1021, %v1017
          %v1274 = vpack.c.b16 %v1022, %v1018
          %v1275 = vpack.c.b16 %v1023, %v1019
          %v1276 = vpack.c.b16 %v1024, %v1020
          %v1277 = vpack.c.b16 %v1029, %v1025
          %v1278 = vpack.c.b16 %v1030, %v1026
          %v1279 = vpack.c.b16 %v1031, %v1027
          %v1280 = vpack.c.b16 %v1032, %v1028
          %v1281 = vpack.c.b16 %v1037, %v1033
          %v1282 = vpack.c.b16 %v1038, %v1034
          %v1283 = vpack.c.b16 %v1039, %v1035
          %v1284 = vpack.c.b16 %v1040, %v1036
          %v1285 = vpack.c.b16 %v1045, %v1041
          %v1286 = vpack.c.b16 %v1046, %v1042
          %v1287 = vpack.c.b16 %v1047, %v1043
          %v1288 = vpack.c.b16 %v1048, %v1044
          %v1289 = vpack.c.b16 %v1053, %v1049
          %v1290 = vpack.c.b16 %v1054, %v1050
          %v1291 = vpack.c.b16 %v1055, %v1051
          %v1292 = vpack.c.b16 %v1056, %v1052
          %v1293 = vpack.c.b16 %v1061, %v1057
          %v1294 = vpack.c.b16 %v1062, %v1058
          %v1295 = vpack.c.b16 %v1063, %v1059
          %v1296 = vpack.c.b16 %v1064, %v1060
          %v1297 = vpack.c.b16 %v1069, %v1065
          %v1298 = vpack.c.b16 %v1070, %v1066
          %v1299 = vpack.c.b16 %v1071, %v1067
          %v1300 = vpack.c.b16 %v1072, %v1068
          %v1301 = vpack.c.b16 %v1077, %v1073
          %v1302 = vpack.c.b16 %v1078, %v1074
          %v1303 = vpack.c.b16 %v1079, %v1075
          %v1304 = vpack.c.b16 %v1080, %v1076
          %v1305 = vpack.c.b16 %v1085, %v1081
          %v1306 = vpack.c.b16 %v1086, %v1082
          %v1307 = vpack.c.b16 %v1087, %v1083
          %v1308 = vpack.c.b16 %v1088, %v1084
          %v1309 = vpack.c.b16 %v1093, %v1089
          %v1310 = vpack.c.b16 %v1094, %v1090
          %v1311 = vpack.c.b16 %v1095, %v1091
          %v1312 = vpack.c.b16 %v1096, %v1092
          %v1313 = vpack.c.b16 %v1101, %v1097
          %v1314 = vpack.c.b16 %v1102, %v1098
          %v1315 = vpack.c.b16 %v1103, %v1099
          %v1316 = vpack.c.b16 %v1104, %v1100
          %v1317 = vpack.c.b16 %v1109, %v1105
          %v1318 = vpack.c.b16 %v1110, %v1106
          %v1319 = vpack.c.b16 %v1111, %v1107
          %v1320 = vpack.c.b16 %v1112, %v1108
          %v1321 = vpack.c.b16 %v1117, %v1113
          %v1322 = vpack.c.b16 %v1118, %v1114
          %v1323 = vpack.c.b16 %v1119, %v1115
          %v1324 = vpack.c.b16 %v1120, %v1116
          %v1325 = vpack.c.b16 %v1125, %v1121
          %v1326 = vpack.c.b16 %v1126, %v1122
          %v1327 = vpack.c.b16 %v1127, %v1123
          %v1328 = vpack.c.b16 %v1128, %v1124
          %v1329 = vpack.c.b16 %v1133, %v1129
          %v1330 = vpack.c.b16 %v1134, %v1130
          %v1331 = vpack.c.b16 %v1135, %v1131
          %v1332 = vpack.c.b16 %v1136, %v1132
          %v1333 = vpack.c.b16 %v1141, %v1137
          %v1334 = vpack.c.b16 %v1142, %v1138
          %v1335 = vpack.c.b16 %v1143, %v1139
          %v1336 = vpack.c.b16 %v1144, %v1140
          %v1337 = vpack.c.b16 %v1149, %v1145
          %v1338 = vpack.c.b16 %v1150, %v1146
          %v1339 = vpack.c.b16 %v1151, %v1147
          %v1340 = vpack.c.b16 %v1152, %v1148
          %v1341 = vpack.c.b16 %v1157, %v1153
          %v1342 = vpack.c.b16 %v1158, %v1154
          %v1343 = vpack.c.b16 %v1159, %v1155
          %v1344 = vpack.c.b16 %v1160, %v1156
          %v1345 = vpack.c.b16 %v1165, %v1161
          %v1346 = vpack.c.b16 %v1166, %v1162
          %v1347 = vpack.c.b16 %v1167, %v1163
          %v1348 = vpack.c.b16 %v1168, %v1164
          %v1349 = vpack.c.b16 %v1173, %v1169
          %v1350 = vpack.c.b16 %v1174, %v1170
          %v1351 = vpack.c.b16 %v1175, %v1171
          %v1352 = vpack.c.b16 %v1176, %v1172
          %v1353 = vpack.c.b16 %v1181, %v1177
          %v1354 = vpack.c.b16 %v1182, %v1178
          %v1355 = vpack.c.b16 %v1183, %v1179
          %v1356 = vpack.c.b16 %v1184, %v1180
          %v1357 = vpack.c.b16 %v1189, %v1185
          %v1358 = vpack.c.b16 %v1190, %v1186
          %v1359 = vpack.c.b16 %v1191, %v1187
          %v1360 = vpack.c.b16 %v1192, %v1188
          %v1361 = vpack.c.b16 %v1197, %v1193
          %v1362 = vpack.c.b16 %v1198, %v1194
          %v1363 = vpack.c.b16 %v1199, %v1195
          %v1364 = vpack.c.b16 %v1200, %v1196
          %v1365 = vpack.c.b16 %v1205, %v1201
          %v1366 = vpack.c.b16 %v1206, %v1202
          %v1367 = vpack.c.b16 %v1207, %v1203
          %v1368 = vpack.c.b16 %v1208, %v1204
          %v1369 = vpack.c.b16 %v1213, %v1209
          %v1370 = vpack.c.b16 %v1214, %v1210
          %v1371 = vpack.c.b16 %v1215, %v1211
          %v1372 = vpack.c.b16 %v1216, %v1212
          %v1373 = vpack.c.b16 %v1221, %v1217
          %v1374 = vpack.c.b16 %v1222, %v1218
          %v1375 = vpack.c.b16 %v1223, %v1219
          %v1376 = vpack.c.b16 %v1224, %v1220
          %v1377 = vpack.c.b16 %v1229, %v1225
          %v1378 = vpack.c.b16 %v1230, %v1226
          %v1379 = vpack.c.b16 %v1231, %v1227
          %v1380 = vpack.c.b16 %v1232, %v1228
          %v1381 = vpack.c.b16 %v1237, %v1233
          %v1382 = vpack.c.b16 %v1238, %v1234
          %v1383 = vpack.c.b16 %v1239, %v1235
          %v1384 = vpack.c.b16 %v1240, %v1236
          %v1385 = vpack.c.b16 %v1245, %v1241
          %v1386 = vpack.c.b16 %v1246, %v1242
          %v1387 = vpack.c.b16 %v1247, %v1243
          %v1388 = vpack.c.b16 %v1248, %v1244
          %v1389 = vpack.c.b16 %v1253, %v1249
          %v1390 = vpack.c.b16 %v1254, %v1250
          %v1391 = vpack.c.b16 %v1255, %v1251
          %v1392 = vpack.c.b16 %v1256, %v1252
          %v1393 = vpack.c.b16 %v1261, %v1257
          %v1394 = vpack.c.b16 %v1262, %v1258
          %v1395 = vpack.c.b16 %v1263, %v1259
          %v1396 = vpack.c.b16 %v1264, %v1260
          %v1397 = vpack.c.b16 %v1269, %v1265
          %v1398 = vpack.c.b16 %v1270, %v1266
          %v1399 = vpack.c.b16 %v1271, %v1267
          %v1400 = vpack.c.b16 %v1272, %v1268
          %v1593 = vunpack.c.l.b16 %v825
          %v1594 = vunpack.c.l.b16 %v826
          %v1595 = vunpack.c.l.b16 %v827
          %v1596 = vunpack.c.l.b16 %v828
          %v1597 = vunpack.c.l.b16 %v829
          %v1598 = vunpack.c.l.b16 %v830
          %v1599 = vunpack.c.l.b16 %v831
          %v1600 = vunpack.c.l.b16 %v832
          %v1601 = vunpack.c.l.b16 %v833
          %v1602 = vunpack.c.l.b16 %v834
          %v1603 = vunpack.c.l.b16 %v835
          %v1604 = vunpack.c.l.b16 %v836
          %v1605 = vunpack.c.l.b16 %v837
          %v1606 = vunpack.c.l.b16 %v838
          %v1607 = vunpack.c.l.b16 %v839
          %v1608 = vunpack.c.l.b16 %v840
          %v1609 = vunpack.c.l.b16 %v841
          %v1610 = vunpack.c.l.b16 %v842
          %v1611 = vunpack.c.l.b16 %v843
          %v1612 = vunpack.c.l.b16 %v844
          %v1613 = vunpack.c.l.b16 %v845
          %v1614 = vunpack.c.l.b16 %v846
          %v1615 = vunpack.c.l.b16 %v847
          %v1616 = vunpack.c.l.b16 %v848
          %v1617 = vunpack.c.l.b16 %v849
          %v1618 = vunpack.c.l.b16 %v850
          %v1619 = vunpack.c.l.b16 %v851
          %v1620 = vunpack.c.l.b16 %v852
          %v1621 = vunpack.c.l.b16 %v853
          %v1622 = vunpack.c.l.b16 %v854
          %v1623 = vunpack.c.l.b16 %v855
          %v1624 = vunpack.c.l.b16 %v856
          %v1625 = vunpack.c.l.b16 %v857
          %v1626 = vunpack.c.l.b16 %v858
          %v1627 = vunpack.c.l.b16 %v859
          %v1628 = vunpack.c.l.b16 %v860
          %v1629 = vunpack.c.l.b16 %v861
          %v1630 = vunpack.c.l.b16 %v862
          %v1631 = vunpack.c.l.b16 %v863
          %v1632 = vunpack.c.l.b16 %v864
          %v1633 = vunpack.c.l.b16 %v865
          %v1634 = vunpack.c.l.b16 %v866
          %v1635 = vunpack.c.l.b16 %v867
          %v1636 = vunpack.c.l.b16 %v868
          %v1637 = vunpack.c.l.b16 %v869
          %v1638 = vunpack.c.l.b16 %v870
          %v1639 = vunpack.c.l.b16 %v871
          %v1640 = vunpack.c.l.b16 %v872
          %v1641 = vunpack.c.l.b16 %v873
          %v1642 = vunpack.c.l.b16 %v874
          %v1643 = vunpack.c.l.b16 %v875
          %v1644 = vunpack.c.l.b16 %v876
          %v1645 = vunpack.c.l.b16 %v877
          %v1646 = vunpack.c.l.b16 %v878
          %v1647 = vunpack.c.l.b16 %v879
          %v1648 = vunpack.c.l.b16 %v880
          %v1649 = vunpack.c.l.b16 %v881
          %v1650 = vunpack.c.l.b16 %v882
          %v1651 = vunpack.c.l.b16 %v883
          %v1652 = vunpack.c.l.b16 %v884
          %v1653 = vunpack.c.l.b16 %v885
          %v1654 = vunpack.c.l.b16 %v886
          %v1655 = vunpack.c.l.b16 %v887
          %v1656 = vunpack.c.l.b16 %v888
          %v1657 = vpack.c.b16 %v1594, %v1593
          %v1658 = vpack.c.b16 %v1596, %v1595
          %v1659 = vpack.c.b16 %v1598, %v1597
          %v1660 = vpack.c.b16 %v1600, %v1599
          %v1661 = vpack.c.b16 %v1602, %v1601
          %v1662 = vpack.c.b16 %v1604, %v1603
          %v1663 = vpack.c.b16 %v1606, %v1605
          %v1664 = vpack.c.b16 %v1608, %v1607
          %v1665 = vpack.c.b16 %v1610, %v1609
          %v1666 = vpack.c.b16 %v1612, %v1611
          %v1667 = vpack.c.b16 %v1614, %v1613
          %v1668 = vpack.c.b16 %v1616, %v1615
          %v1669 = vpack.c.b16 %v1618, %v1617
          %v1670 = vpack.c.b16 %v1620, %v1619
          %v1671 = vpack.c.b16 %v1622, %v1621
          %v1672 = vpack.c.b16 %v1624, %v1623
          %v1673 = vpack.c.b16 %v1626, %v1625
          %v1674 = vpack.c.b16 %v1628, %v1627
          %v1675 = vpack.c.b16 %v1630, %v1629
          %v1676 = vpack.c.b16 %v1632, %v1631
          %v1677 = vpack.c.b16 %v1634, %v1633
          %v1678 = vpack.c.b16 %v1636, %v1635
          %v1679 = vpack.c.b16 %v1638, %v1637
          %v1680 = vpack.c.b16 %v1640, %v1639
          %v1681 = vpack.c.b16 %v1642, %v1641
          %v1682 = vpack.c.b16 %v1644, %v1643
          %v1683 = vpack.c.b16 %v1646, %v1645
          %v1684 = vpack.c.b16 %v1648, %v1647
          %v1685 = vpack.c.b16 %v1650, %v1649
          %v1686 = vpack.c.b16 %v1652, %v1651
          %v1687 = vpack.c.b16 %v1654, %v1653
          %v1688 = vpack.c.b16 %v1656, %v1655
          %1721 = vmatprep.subr.bf16.mxu0 0
          %1722 = vmatpush1.bf16.msra.mxu0 %v1657
          %1723 = vmatprep.subr.bf16.mxu0 0
          %1724 = vmatpush1.bf16.msra.mxu0 %v1658
          %1725 = vmatprep.subr.bf16.mxu0 0
          %1726 = vmatpush1.bf16.msra.mxu0 %v1659
          %1727 = vmatprep.subr.bf16.mxu0 0
          %1728 = vmatpush1.bf16.msra.mxu0 %v1660
          %1729 = vmatprep.subr.bf16.mxu0 0
          %1730 = vmatpush1.bf16.msra.mxu0 %v1661
          %1731 = vmatprep.subr.bf16.mxu0 0
          %1732 = vmatpush1.bf16.msra.mxu0 %v1662
          %1733 = vmatprep.subr.bf16.mxu0 0
          %1734 = vmatpush1.bf16.msra.mxu0 %v1663
          %1735 = vmatprep.subr.bf16.mxu0 0
          %1736 = vmatpush1.bf16.msra.mxu0 %v1664
          %1737 = vmatprep.subr.bf16.mxu0 0
          %1738 = vmatpush1.bf16.msra.mxu0 %v1665
          %1739 = vmatprep.subr.bf16.mxu0 0
          %1740 = vmatpush1.bf16.msra.mxu0 %v1666
          %1741 = vmatprep.subr.bf16.mxu0 0
          %1742 = vmatpush1.bf16.msra.mxu0 %v1667
          %1743 = vmatprep.subr.bf16.mxu0 0
          %1744 = vmatpush1.bf16.msra.mxu0 %v1668
          %1745 = vmatprep.subr.bf16.mxu0 0
          %1746 = vmatpush1.bf16.msra.mxu0 %v1669
          %1747 = vmatprep.subr.bf16.mxu0 0
          %1748 = vmatpush1.bf16.msra.mxu0 %v1670
          %1749 = vmatprep.subr.bf16.mxu0 0
          %1750 = vmatpush1.bf16.msra.mxu0 %v1671
          %1751 = vmatprep.subr.bf16.mxu0 0
          %1752 = vmatpush1.bf16.msra.mxu0 %v1672
          %1753 = vmatprep.mubr.bf16.mxu0 %v1274
          %1754 = vmatmul.mubr.bf16.gmra.mrb[0].mxu0 %v1273
          %v1755 = vpop.f32.mrb[0].mxu0
          %v1756 = vadd.f32 0.0, %v1755
          %v1757 = vpop.f32.mrb[0].mxu0
          %v1758 = vpop.f32.mrb[0].mxu0
          %v1759 = vadd.f32 0.0, %v1758
          %v1760 = vpop.f32.mrb[0].mxu0
          %1761 = vmatprep.mubr.bf16.mxu0 %v1278
          %1762 = vmatmul.mubr.bf16.gmra.mrb[0].mxu0 %v1277
          %v1763 = vpop.f32.mrb[0].mxu0
          %v1764 = vadd.f32 0.0, %v1763
          %v1765 = vpop.f32.mrb[0].mxu0
          %v1766 = vpop.f32.mrb[0].mxu0
          %v1767 = vadd.f32 0.0, %v1766
          %v1768 = vpop.f32.mrb[0].mxu0
          %1769 = vmatprep.mubr.bf16.mxu0 %v1282
          %1770 = vmatmul.mubr.bf16.gmra.mrb[0].mxu0 %v1281
          %v1771 = vpop.f32.mrb[0].mxu0
          %v1772 = vadd.f32 0.0, %v1771
          %v1773 = vpop.f32.mrb[0].mxu0
          %v1774 = vpop.f32.mrb[0].mxu0
          %v1775 = vadd.f32 0.0, %v1774
          %v1776 = vpop.f32.mrb[0].mxu0
          %1777 = vmatprep.mubr.bf16.mxu0 %v1286
          %1778 = vmatmul.mubr.bf16.gmra.mrb[0].mxu0 %v1285
          %v1779 = vpop.f32.mrb[0].mxu0
          %v1780 = vadd.f32 0.0, %v1779
          %v1781 = vpop.f32.mrb[0].mxu0
          %v1782 = vpop.f32.mrb[0].mxu0
          %v1783 = vadd.f32 0.0, %v1782
          %v1784 = vpop.f32.mrb[0].mxu0
          %1785 = vmatprep.mubr.bf16.mxu0 %v1290
          %1786 = vmatmul.mubr.bf16.gmra.mrb[0].mxu0 %v1289
          %v1787 = vpop.f32.mrb[0].mxu0
          %v1788 = vadd.f32 0.0, %v1787
          %v1789 = vpop.f32.mrb[0].mxu0
          %v1790 = vpop.f32.mrb[0].mxu0
          %v1791 = vadd.f32 0.0, %v1790
          %v1792 = vpop.f32.mrb[0].mxu0
          %1793 = vmatprep.mubr.bf16.mxu0 %v1294
          %1794 = vmatmul.mubr.bf16.gmra.mrb[0].mxu0 %v1293
          %v1795 = vpop.f32.mrb[0].mxu0
          %v1796 = vadd.f32 0.0, %v1795
          %v1797 = vpop.f32.mrb[0].mxu0
          %v1798 = vpop.f32.mrb[0].mxu0
          %v1799 = vadd.f32 0.0, %v1798
          %v1800 = vpop.f32.mrb[0].mxu0
          %1801 = vmatprep.mubr.bf16.mxu0 %v1298
          %1802 = vmatmul.mubr.bf16.gmra.mrb[0].mxu0 %v1297
          %v1803 = vpop.f32.mrb[0].mxu0
          %v1804 = vadd.f32 0.0, %v1803
          %v1805 = vpop.f32.mrb[0].mxu0
          %v1806 = vpop.f32.mrb[0].mxu0
          %v1807 = vadd.f32 0.0, %v1806
          %v1808 = vpop.f32.mrb[0].mxu0
          %1809 = vmatprep.mubr.bf16.mxu0 %v1302
          %1810 = vmatmul.mubr.bf16.gmra.mrb[0].mxu0 %v1301
          %v1811 = vpop.f32.mrb[0].mxu0
          %v1812 = vadd.f32 0.0, %v1811
          %v1813 = vpop.f32.mrb[0].mxu0
          %v1814 = vpop.f32.mrb[0].mxu0
          %v1815 = vadd.f32 0.0, %v1814
          %v1816 = vpop.f32.mrb[0].mxu0
          %1817 = vmatprep.mubr.bf16.mxu0 %v1306
          %1818 = vmatmul.mubr.bf16.gmra.mrb[0].mxu0 %v1305
          %v1819 = vpop.f32.mrb[0].mxu0
          %v1820 = vadd.f32 0.0, %v1819
          %v1821 = vpop.f32.mrb[0].mxu0
          %v1822 = vpop.f32.mrb[0].mxu0
          %v1823 = vadd.f32 0.0, %v1822
          %v1824 = vpop.f32.mrb[0].mxu0
          %1825 = vmatprep.mubr.bf16.mxu0 %v1310
          %1826 = vmatmul.mubr.bf16.gmra.mrb[0].mxu0 %v1309
          %v1827 = vpop.f32.mrb[0].mxu0
          %v1828 = vadd.f32 0.0, %v1827
          %v1829 = vpop.f32.mrb[0].mxu0
          %v1830 = vpop.f32.mrb[0].mxu0
          %v1831 = vadd.f32 0.0, %v1830
          %v1832 = vpop.f32.mrb[0].mxu0
          %1833 = vmatprep.mubr.bf16.mxu0 %v1314
          %1834 = vmatmul.mubr.bf16.gmra.mrb[0].mxu0 %v1313
          %v1835 = vpop.f32.mrb[0].mxu0
          %v1836 = vadd.f32 0.0, %v1835
          %v1837 = vpop.f32.mrb[0].mxu0
          %v1838 = vpop.f32.mrb[0].mxu0
          %v1839 = vadd.f32 0.0, %v1838
          %v1840 = vpop.f32.mrb[0].mxu0
          %1841 = vmatprep.mubr.bf16.mxu0 %v1318
          %1842 = vmatmul.mubr.bf16.gmra.mrb[0].mxu0 %v1317
          %v1843 = vpop.f32.mrb[0].mxu0
          %v1844 = vadd.f32 0.0, %v1843
          %v1845 = vpop.f32.mrb[0].mxu0
          %v1846 = vpop.f32.mrb[0].mxu0
          %v1847 = vadd.f32 0.0, %v1846
          %v1848 = vpop.f32.mrb[0].mxu0
          %1849 = vmatprep.mubr.bf16.mxu0 %v1322
          %1850 = vmatmul.mubr.bf16.gmra.mrb[0].mxu0 %v1321
          %v1851 = vpop.f32.mrb[0].mxu0
          %v1852 = vadd.f32 0.0, %v1851
          %v1853 = vpop.f32.mrb[0].mxu0
          %v1854 = vpop.f32.mrb[0].mxu0
          %v1855 = vadd.f32 0.0, %v1854
          %v1856 = vpop.f32.mrb[0].mxu0
          %1857 = vmatprep.mubr.bf16.mxu0 %v1326
          %1858 = vmatmul.mubr.bf16.gmra.mrb[0].mxu0 %v1325
          %v1859 = vpop.f32.mrb[0].mxu0
          %v1860 = vadd.f32 0.0, %v1859
          %v1861 = vpop.f32.mrb[0].mxu0
          %v1862 = vpop.f32.mrb[0].mxu0
          %v1863 = vadd.f32 0.0, %v1862
          %v1864 = vpop.f32.mrb[0].mxu0
          %1865 = vmatprep.mubr.bf16.mxu0 %v1330
          %1866 = vmatmul.mubr.bf16.gmra.mrb[0].mxu0 %v1329
          %v1867 = vpop.f32.mrb[0].mxu0
          %v1868 = vadd.f32 0.0, %v1867
          %v1869 = vpop.f32.mrb[0].mxu0
          %v1870 = vpop.f32.mrb[0].mxu0
          %v1871 = vadd.f32 0.0, %v1870
          %v1872 = vpop.f32.mrb[0].mxu0
          %1873 = vmatprep.mubr.bf16.mxu0 %v1334
          %1874 = vmatmul.mubr.bf16.gmra.mrb[0].mxu0 %v1333
          %v1875 = vpop.f32.mrb[0].mxu0
          %v1876 = vadd.f32 0.0, %v1875
          %v1877 = vpop.f32.mrb[0].mxu0
          %v1878 = vpop.f32.mrb[0].mxu0
          %v1879 = vadd.f32 0.0, %v1878
          %v1880 = vpop.f32.mrb[0].mxu0
          %1881 = vmatprep.mubr.bf16.mxu0 %v1338
          %1882 = vmatmul.mubr.bf16.gmra.mrb[0].mxu0 %v1337
          %v1883 = vpop.f32.mrb[0].mxu0
          %v1884 = vadd.f32 0.0, %v1883
          %v1885 = vpop.f32.mrb[0].mxu0
          %v1886 = vpop.f32.mrb[0].mxu0
          %v1887 = vadd.f32 0.0, %v1886
          %v1888 = vpop.f32.mrb[0].mxu0
          %1889 = vmatprep.mubr.bf16.mxu0 %v1342
          %1890 = vmatmul.mubr.bf16.gmra.mrb[0].mxu0 %v1341
          %v1891 = vpop.f32.mrb[0].mxu0
          %v1892 = vadd.f32 0.0, %v1891
          %v1893 = vpop.f32.mrb[0].mxu0
          %v1894 = vpop.f32.mrb[0].mxu0
          %v1895 = vadd.f32 0.0, %v1894
          %v1896 = vpop.f32.mrb[0].mxu0
          %1897 = vmatprep.mubr.bf16.mxu0 %v1346
          %1898 = vmatmul.mubr.bf16.gmra.mrb[0].mxu0 %v1345
          %v1899 = vpop.f32.mrb[0].mxu0
          %v1900 = vadd.f32 0.0, %v1899
          %v1901 = vpop.f32.mrb[0].mxu0
          %v1902 = vpop.f32.mrb[0].mxu0
          %v1903 = vadd.f32 0.0, %v1902
          %v1904 = vpop.f32.mrb[0].mxu0
          %1905 = vmatprep.mubr.bf16.mxu0 %v1350
          %1906 = vmatmul.mubr.bf16.gmra.mrb[0].mxu0 %v1349
          %v1907 = vpop.f32.mrb[0].mxu0
          %v1908 = vadd.f32 0.0, %v1907
          %v1909 = vpop.f32.mrb[0].mxu0
          %v1910 = vpop.f32.mrb[0].mxu0
          %v1911 = vadd.f32 0.0, %v1910
          %v1912 = vpop.f32.mrb[0].mxu0
          %1913 = vmatprep.mubr.bf16.mxu0 %v1354
          %1914 = vmatmul.mubr.bf16.gmra.mrb[0].mxu0 %v1353
          %v1915 = vpop.f32.mrb[0].mxu0
          %v1916 = vadd.f32 0.0, %v1915
          %v1917 = vpop.f32.mrb[0].mxu0
          %v1918 = vpop.f32.mrb[0].mxu0
          %v1919 = vadd.f32 0.0, %v1918
          %v1920 = vpop.f32.mrb[0].mxu0
          %1921 = vmatprep.mubr.bf16.mxu0 %v1358
          %1922 = vmatmul.mubr.bf16.gmra.mrb[0].mxu0 %v1357
          %v1923 = vpop.f32.mrb[0].mxu0
          %v1924 = vadd.f32 0.0, %v1923
          %v1925 = vpop.f32.mrb[0].mxu0
          %v1926 = vpop.f32.mrb[0].mxu0
          %v1927 = vadd.f32 0.0, %v1926
          %v1928 = vpop.f32.mrb[0].mxu0
          %1929 = vmatprep.mubr.bf16.mxu0 %v1362
          %1930 = vmatmul.mubr.bf16.gmra.mrb[0].mxu0 %v1361
          %v1931 = vpop.f32.mrb[0].mxu0
          %v1932 = vadd.f32 0.0, %v1931
          %v1933 = vpop.f32.mrb[0].mxu0
          %v1934 = vpop.f32.mrb[0].mxu0
          %v1935 = vadd.f32 0.0, %v1934
          %v1936 = vpop.f32.mrb[0].mxu0
          %1937 = vmatprep.mubr.bf16.mxu0 %v1366
          %1938 = vmatmul.mubr.bf16.gmra.mrb[0].mxu0 %v1365
          %v1939 = vpop.f32.mrb[0].mxu0
          %v1940 = vadd.f32 0.0, %v1939
          %v1941 = vpop.f32.mrb[0].mxu0
          %v1942 = vpop.f32.mrb[0].mxu0
          %v1943 = vadd.f32 0.0, %v1942
          %v1944 = vpop.f32.mrb[0].mxu0
          %1945 = vmatprep.mubr.bf16.mxu0 %v1370
          %1946 = vmatmul.mubr.bf16.gmra.mrb[0].mxu0 %v1369
          %v1947 = vpop.f32.mrb[0].mxu0
          %v1948 = vadd.f32 0.0, %v1947
          %v1949 = vpop.f32.mrb[0].mxu0
          %v1950 = vpop.f32.mrb[0].mxu0
          %v1951 = vadd.f32 0.0, %v1950
          %v1952 = vpop.f32.mrb[0].mxu0
          %1953 = vmatprep.mubr.bf16.mxu0 %v1374
          %1954 = vmatmul.mubr.bf16.gmra.mrb[0].mxu0 %v1373
          %v1955 = vpop.f32.mrb[0].mxu0
          %v1956 = vadd.f32 0.0, %v1955
          %v1957 = vpop.f32.mrb[0].mxu0
          %v1958 = vpop.f32.mrb[0].mxu0
          %v1959 = vadd.f32 0.0, %v1958
          %v1960 = vpop.f32.mrb[0].mxu0
          %1961 = vmatprep.mubr.bf16.mxu0 %v1378
          %1962 = vmatmul.mubr.bf16.gmra.mrb[0].mxu0 %v1377
          %v1963 = vpop.f32.mrb[0].mxu0
          %v1964 = vadd.f32 0.0, %v1963
          %v1965 = vpop.f32.mrb[0].mxu0
          %v1966 = vpop.f32.mrb[0].mxu0
          %v1967 = vadd.f32 0.0, %v1966
          %v1968 = vpop.f32.mrb[0].mxu0
          %1969 = vmatprep.mubr.bf16.mxu0 %v1382
          %1970 = vmatmul.mubr.bf16.gmra.mrb[0].mxu0 %v1381
          %v1971 = vpop.f32.mrb[0].mxu0
          %v1972 = vadd.f32 0.0, %v1971
          %v1973 = vpop.f32.mrb[0].mxu0
          %v1974 = vpop.f32.mrb[0].mxu0
          %v1975 = vadd.f32 0.0, %v1974
          %v1976 = vpop.f32.mrb[0].mxu0
          %1977 = vmatprep.mubr.bf16.mxu0 %v1386
          %1978 = vmatmul.mubr.bf16.gmra.mrb[0].mxu0 %v1385
          %v1979 = vpop.f32.mrb[0].mxu0
          %v1980 = vadd.f32 0.0, %v1979
          %v1981 = vpop.f32.mrb[0].mxu0
          %v1982 = vpop.f32.mrb[0].mxu0
          %v1983 = vadd.f32 0.0, %v1982
          %v1984 = vpop.f32.mrb[0].mxu0
          %1985 = vmatprep.mubr.bf16.mxu0 %v1390
          %1986 = vmatmul.mubr.bf16.gmra.mrb[0].mxu0 %v1389
          %v1987 = vpop.f32.mrb[0].mxu0
          %v1988 = vadd.f32 0.0, %v1987
          %v1989 = vpop.f32.mrb[0].mxu0
          %v1990 = vpop.f32.mrb[0].mxu0
          %v1991 = vadd.f32 0.0, %v1990
          %v1992 = vpop.f32.mrb[0].mxu0
          %1993 = vmatprep.mubr.bf16.mxu0 %v1394
          %1994 = vmatmul.mubr.bf16.gmra.mrb[0].mxu0 %v1393
          %v1995 = vpop.f32.mrb[0].mxu0
          %v1996 = vadd.f32 0.0, %v1995
          %v1997 = vpop.f32.mrb[0].mxu0
          %v1998 = vpop.f32.mrb[0].mxu0
          %v1999 = vadd.f32 0.0, %v1998
          %v2000 = vpop.f32.mrb[0].mxu0
          %2001 = vmatprep.mubr.bf16.mxu0 %v1398
          %2002 = vmatmul.mubr.bf16.gmra.mrb[0].mxu0 %v1397
          %v2003 = vpop.f32.mrb[0].mxu0
          %v2004 = vadd.f32 0.0, %v2003
          %v2005 = vpop.f32.mrb[0].mxu0
          %v2006 = vpop.f32.mrb[0].mxu0
          %v2007 = vadd.f32 0.0, %v2006
          %v2008 = vpop.f32.mrb[0].mxu0
          %2009 = vdwg.mxu0
          %2010 = vmatprep.subr.bf16.mxu0 0
          %2011 = vmatpush1.bf16.msra.mxu0 %v1673
          %2012 = vmatprep.subr.bf16.mxu0 0
          %2013 = vmatpush1.bf16.msra.mxu0 %v1674
          %2014 = vmatprep.subr.bf16.mxu0 0
          %2015 = vmatpush1.bf16.msra.mxu0 %v1675
          %2016 = vmatprep.subr.bf16.mxu0 0
          %2017 = vmatpush1.bf16.msra.mxu0 %v1676
          %2018 = vmatprep.subr.bf16.mxu0 0
          %2019 = vmatpush1.bf16.msra.mxu0 %v1677
          %2020 = vmatprep.subr.bf16.mxu0 0
          %2021 = vmatpush1.bf16.msra.mxu0 %v1678
          %2022 = vmatprep.subr.bf16.mxu0 0
          %2023 = vmatpush1.bf16.msra.mxu0 %v1679
          %2024 = vmatprep.subr.bf16.mxu0 0
          %2025 = vmatpush1.bf16.msra.mxu0 %v1680
          %2026 = vmatprep.subr.bf16.mxu0 0
          %2027 = vmatpush1.bf16.msra.mxu0 %v1681
          %2028 = vmatprep.subr.bf16.mxu0 0
          %2029 = vmatpush1.bf16.msra.mxu0 %v1682
          %2030 = vmatprep.subr.bf16.mxu0 0
          %2031 = vmatpush1.bf16.msra.mxu0 %v1683
          %2032 = vmatprep.subr.bf16.mxu0 0
          %2033 = vmatpush1.bf16.msra.mxu0 %v1684
          %2034 = vmatprep.subr.bf16.mxu0 0
          %2035 = vmatpush1.bf16.msra.mxu0 %v1685
          %2036 = vmatprep.subr.bf16.mxu0 0
          %2037 = vmatpush1.bf16.msra.mxu0 %v1686
          %2038 = vmatprep.subr.bf16.mxu0 0
          %2039 = vmatpush1.bf16.msra.mxu0 %v1687
          %2040 = vmatprep.subr.bf16.mxu0 0
          %2041 = vmatpush1.bf16.msra.mxu0 %v1688
          %2042 = vmatprep.mubr.bf16.mxu0 %v1276
          %2043 = vmatmul.mubr.bf16.gmra.mrb[0].mxu0 %v1275
          %v2044 = vpop.f32.mrb[0].mxu0
          %v2045 = vadd.f32 %v1756, %v2044
          %v2046 = vpop.f32.mrb[0].mxu0
          %v2047 = vpop.f32.mrb[0].mxu0
          %v2048 = vadd.f32 %v1759, %v2047
          %v2049 = vpop.f32.mrb[0].mxu0
          %2050 = vmatprep.mubr.bf16.mxu0 %v1280
          %2051 = vmatmul.mubr.bf16.gmra.mrb[0].mxu0 %v1279
          %v2052 = vpop.f32.mrb[0].mxu0
          %v2053 = vadd.f32 %v1764, %v2052
          %v2054 = vpop.f32.mrb[0].mxu0
          %v2055 = vpop.f32.mrb[0].mxu0
          %v2056 = vadd.f32 %v1767, %v2055
          %v2057 = vpop.f32.mrb[0].mxu0
          %2058 = vmatprep.mubr.bf16.mxu0 %v1284
          %2059 = vmatmul.mubr.bf16.gmra.mrb[0].mxu0 %v1283
          %v2060 = vpop.f32.mrb[0].mxu0
          %v2061 = vadd.f32 %v1772, %v2060
          %v2062 = vpop.f32.mrb[0].mxu0
          %v2063 = vpop.f32.mrb[0].mxu0
          %v2064 = vadd.f32 %v1775, %v2063
          %v2065 = vpop.f32.mrb[0].mxu0
          %2066 = vmatprep.mubr.bf16.mxu0 %v1288
          %2067 = vmatmul.mubr.bf16.gmra.mrb[0].mxu0 %v1287
          %v2068 = vpop.f32.mrb[0].mxu0
          %v2069 = vadd.f32 %v1780, %v2068
          %v2070 = vpop.f32.mrb[0].mxu0
          %v2071 = vpop.f32.mrb[0].mxu0
          %v2072 = vadd.f32 %v1783, %v2071
          %v2073 = vpop.f32.mrb[0].mxu0
          %2074 = vmatprep.mubr.bf16.mxu0 %v1292
          %2075 = vmatmul.mubr.bf16.gmra.mrb[0].mxu0 %v1291
          %v2076 = vpop.f32.mrb[0].mxu0
          %v2077 = vadd.f32 %v1788, %v2076
          %v2078 = vpop.f32.mrb[0].mxu0
          %v2079 = vpop.f32.mrb[0].mxu0
          %v2080 = vadd.f32 %v1791, %v2079
          %v2081 = vpop.f32.mrb[0].mxu0
          %2082 = vmatprep.mubr.bf16.mxu0 %v1296
          %2083 = vmatmul.mubr.bf16.gmra.mrb[0].mxu0 %v1295
          %v2084 = vpop.f32.mrb[0].mxu0
          %v2085 = vadd.f32 %v1796, %v2084
          %v2086 = vpop.f32.mrb[0].mxu0
          %v2087 = vpop.f32.mrb[0].mxu0
          %v2088 = vadd.f32 %v1799, %v2087
          %v2089 = vpop.f32.mrb[0].mxu0
          %2090 = vmatprep.mubr.bf16.mxu0 %v1300
          %2091 = vmatmul.mubr.bf16.gmra.mrb[0].mxu0 %v1299
          %v2092 = vpop.f32.mrb[0].mxu0
          %v2093 = vadd.f32 %v1804, %v2092
          %v2094 = vpop.f32.mrb[0].mxu0
          %v2095 = vpop.f32.mrb[0].mxu0
          %v2096 = vadd.f32 %v1807, %v2095
          %v2097 = vpop.f32.mrb[0].mxu0
          %2098 = vmatprep.mubr.bf16.mxu0 %v1304
          %2099 = vmatmul.mubr.bf16.gmra.mrb[0].mxu0 %v1303
          %v2100 = vpop.f32.mrb[0].mxu0
          %v2101 = vadd.f32 %v1812, %v2100
          %v2102 = vpop.f32.mrb[0].mxu0
          %v2103 = vpop.f32.mrb[0].mxu0
          %v2104 = vadd.f32 %v1815, %v2103
          %v2105 = vpop.f32.mrb[0].mxu0
          %2106 = vmatprep.mubr.bf16.mxu0 %v1308
          %2107 = vmatmul.mubr.bf16.gmra.mrb[0].mxu0 %v1307
          %v2108 = vpop.f32.mrb[0].mxu0
          %v2109 = vadd.f32 %v1820, %v2108
          %v2110 = vpop.f32.mrb[0].mxu0
          %v2111 = vpop.f32.mrb[0].mxu0
          %v2112 = vadd.f32 %v1823, %v2111
          %v2113 = vpop.f32.mrb[0].mxu0
          %2114 = vmatprep.mubr.bf16.mxu0 %v1312
          %2115 = vmatmul.mubr.bf16.gmra.mrb[0].mxu0 %v1311
          %v2116 = vpop.f32.mrb[0].mxu0
          %v2117 = vadd.f32 %v1828, %v2116
          %v2118 = vpop.f32.mrb[0].mxu0
          %v2119 = vpop.f32.mrb[0].mxu0
          %v2120 = vadd.f32 %v1831, %v2119
          %v2121 = vpop.f32.mrb[0].mxu0
          %2122 = vmatprep.mubr.bf16.mxu0 %v1316
          %2123 = vmatmul.mubr.bf16.gmra.mrb[0].mxu0 %v1315
          %v2124 = vpop.f32.mrb[0].mxu0
          %v2125 = vadd.f32 %v1836, %v2124
          %v2126 = vpop.f32.mrb[0].mxu0
          %v2127 = vpop.f32.mrb[0].mxu0
          %v2128 = vadd.f32 %v1839, %v2127
          %v2129 = vpop.f32.mrb[0].mxu0
          %2130 = vmatprep.mubr.bf16.mxu0 %v1320
          %2131 = vmatmul.mubr.bf16.gmra.mrb[0].mxu0 %v1319
          %v2132 = vpop.f32.mrb[0].mxu0
          %v2133 = vadd.f32 %v1844, %v2132
          %v2134 = vpop.f32.mrb[0].mxu0
          %v2135 = vpop.f32.mrb[0].mxu0
          %v2136 = vadd.f32 %v1847, %v2135
          %v2137 = vpop.f32.mrb[0].mxu0
          %2138 = vmatprep.mubr.bf16.mxu0 %v1324
          %2139 = vmatmul.mubr.bf16.gmra.mrb[0].mxu0 %v1323
          %v2140 = vpop.f32.mrb[0].mxu0
          %v2141 = vadd.f32 %v1852, %v2140
          %v2142 = vpop.f32.mrb[0].mxu0
          %v2143 = vpop.f32.mrb[0].mxu0
          %v2144 = vadd.f32 %v1855, %v2143
          %v2145 = vpop.f32.mrb[0].mxu0
          %2146 = vmatprep.mubr.bf16.mxu0 %v1328
          %2147 = vmatmul.mubr.bf16.gmra.mrb[0].mxu0 %v1327
          %v2148 = vpop.f32.mrb[0].mxu0
          %v2149 = vadd.f32 %v1860, %v2148
          %v2150 = vpop.f32.mrb[0].mxu0
          %v2151 = vpop.f32.mrb[0].mxu0
          %v2152 = vadd.f32 %v1863, %v2151
          %v2153 = vpop.f32.mrb[0].mxu0
          %2154 = vmatprep.mubr.bf16.mxu0 %v1332
          %2155 = vmatmul.mubr.bf16.gmra.mrb[0].mxu0 %v1331
          %v2156 = vpop.f32.mrb[0].mxu0
          %v2157 = vadd.f32 %v1868, %v2156
          %v2158 = vpop.f32.mrb[0].mxu0
          %v2159 = vpop.f32.mrb[0].mxu0
          %v2160 = vadd.f32 %v1871, %v2159
          %v2161 = vpop.f32.mrb[0].mxu0
          %2162 = vmatprep.mubr.bf16.mxu0 %v1336
          %2163 = vmatmul.mubr.bf16.gmra.mrb[0].mxu0 %v1335
          %v2164 = vpop.f32.mrb[0].mxu0
          %v2165 = vadd.f32 %v1876, %v2164
          %v2166 = vpop.f32.mrb[0].mxu0
          %v2167 = vpop.f32.mrb[0].mxu0
          %v2168 = vadd.f32 %v1879, %v2167
          %v2169 = vpop.f32.mrb[0].mxu0
          %2170 = vmatprep.mubr.bf16.mxu0 %v1340
          %2171 = vmatmul.mubr.bf16.gmra.mrb[0].mxu0 %v1339
          %v2172 = vpop.f32.mrb[0].mxu0
          %v2173 = vadd.f32 %v1884, %v2172
          %v2174 = vpop.f32.mrb[0].mxu0
          %v2175 = vpop.f32.mrb[0].mxu0
          %v2176 = vadd.f32 %v1887, %v2175
          %v2177 = vpop.f32.mrb[0].mxu0
          %2178 = vmatprep.mubr.bf16.mxu0 %v1344
          %2179 = vmatmul.mubr.bf16.gmra.mrb[0].mxu0 %v1343
          %v2180 = vpop.f32.mrb[0].mxu0
          %v2181 = vadd.f32 %v1892, %v2180
          %v2182 = vpop.f32.mrb[0].mxu0
          %v2183 = vpop.f32.mrb[0].mxu0
          %v2184 = vadd.f32 %v1895, %v2183
          %v2185 = vpop.f32.mrb[0].mxu0
          %2186 = vmatprep.mubr.bf16.mxu0 %v1348
          %2187 = vmatmul.mubr.bf16.gmra.mrb[0].mxu0 %v1347
          %v2188 = vpop.f32.mrb[0].mxu0
          %v2189 = vadd.f32 %v1900, %v2188
          %v2190 = vpop.f32.mrb[0].mxu0
          %v2191 = vpop.f32.mrb[0].mxu0
          %v2192 = vadd.f32 %v1903, %v2191
          %v2193 = vpop.f32.mrb[0].mxu0
          %2194 = vmatprep.mubr.bf16.mxu0 %v1352
          %2195 = vmatmul.mubr.bf16.gmra.mrb[0].mxu0 %v1351
          %v2196 = vpop.f32.mrb[0].mxu0
          %v2197 = vadd.f32 %v1908, %v2196
          %v2198 = vpop.f32.mrb[0].mxu0
          %v2199 = vpop.f32.mrb[0].mxu0
          %v2200 = vadd.f32 %v1911, %v2199
          %v2201 = vpop.f32.mrb[0].mxu0
          %2202 = vmatprep.mubr.bf16.mxu0 %v1356
          %2203 = vmatmul.mubr.bf16.gmra.mrb[0].mxu0 %v1355
          %v2204 = vpop.f32.mrb[0].mxu0
          %v2205 = vadd.f32 %v1916, %v2204
          %v2206 = vpop.f32.mrb[0].mxu0
          %v2207 = vpop.f32.mrb[0].mxu0
          %v2208 = vadd.f32 %v1919, %v2207
          %v2209 = vpop.f32.mrb[0].mxu0
          %2210 = vmatprep.mubr.bf16.mxu0 %v1360
          %2211 = vmatmul.mubr.bf16.gmra.mrb[0].mxu0 %v1359
          %v2212 = vpop.f32.mrb[0].mxu0
          %v2213 = vadd.f32 %v1924, %v2212
          %v2214 = vpop.f32.mrb[0].mxu0
          %v2215 = vpop.f32.mrb[0].mxu0
          %v2216 = vadd.f32 %v1927, %v2215
          %v2217 = vpop.f32.mrb[0].mxu0
          %2218 = vmatprep.mubr.bf16.mxu0 %v1364
          %2219 = vmatmul.mubr.bf16.gmra.mrb[0].mxu0 %v1363
          %v2220 = vpop.f32.mrb[0].mxu0
          %v2221 = vadd.f32 %v1932, %v2220
          %v2222 = vpop.f32.mrb[0].mxu0
          %v2223 = vpop.f32.mrb[0].mxu0
          %v2224 = vadd.f32 %v1935, %v2223
          %v2225 = vpop.f32.mrb[0].mxu0
          %2226 = vmatprep.mubr.bf16.mxu0 %v1368
          %2227 = vmatmul.mubr.bf16.gmra.mrb[0].mxu0 %v1367
          %v2228 = vpop.f32.mrb[0].mxu0
          %v2229 = vadd.f32 %v1940, %v2228
          %v2230 = vpop.f32.mrb[0].mxu0
          %v2231 = vpop.f32.mrb[0].mxu0
          %v2232 = vadd.f32 %v1943, %v2231
          %v2233 = vpop.f32.mrb[0].mxu0
          %2234 = vmatprep.mubr.bf16.mxu0 %v1372
          %2235 = vmatmul.mubr.bf16.gmra.mrb[0].mxu0 %v1371
          %v2236 = vpop.f32.mrb[0].mxu0
          %v2237 = vadd.f32 %v1948, %v2236
          %v2238 = vpop.f32.mrb[0].mxu0
          %v2239 = vpop.f32.mrb[0].mxu0
          %v2240 = vadd.f32 %v1951, %v2239
          %v2241 = vpop.f32.mrb[0].mxu0
          %2242 = vmatprep.mubr.bf16.mxu0 %v1376
          %2243 = vmatmul.mubr.bf16.gmra.mrb[0].mxu0 %v1375
          %v2244 = vpop.f32.mrb[0].mxu0
          %v2245 = vadd.f32 %v1956, %v2244
          %v2246 = vpop.f32.mrb[0].mxu0
          %v2247 = vpop.f32.mrb[0].mxu0
          %v2248 = vadd.f32 %v1959, %v2247
          %v2249 = vpop.f32.mrb[0].mxu0
          %2250 = vmatprep.mubr.bf16.mxu0 %v1380
          %2251 = vmatmul.mubr.bf16.gmra.mrb[0].mxu0 %v1379
          %v2252 = vpop.f32.mrb[0].mxu0
          %v2253 = vadd.f32 %v1964, %v2252
          %v2254 = vpop.f32.mrb[0].mxu0
          %v2255 = vpop.f32.mrb[0].mxu0
          %v2256 = vadd.f32 %v1967, %v2255
          %v2257 = vpop.f32.mrb[0].mxu0
          %2258 = vmatprep.mubr.bf16.mxu0 %v1384
          %2259 = vmatmul.mubr.bf16.gmra.mrb[0].mxu0 %v1383
          %v2260 = vpop.f32.mrb[0].mxu0
          %v2261 = vadd.f32 %v1972, %v2260
          %v2262 = vpop.f32.mrb[0].mxu0
          %v2263 = vpop.f32.mrb[0].mxu0
          %v2264 = vadd.f32 %v1975, %v2263
          %v2265 = vpop.f32.mrb[0].mxu0
          %2266 = vmatprep.mubr.bf16.mxu0 %v1388
          %2267 = vmatmul.mubr.bf16.gmra.mrb[0].mxu0 %v1387
          %v2268 = vpop.f32.mrb[0].mxu0
          %v2269 = vadd.f32 %v1980, %v2268
          %v2270 = vpop.f32.mrb[0].mxu0
          %v2271 = vpop.f32.mrb[0].mxu0
          %v2272 = vadd.f32 %v1983, %v2271
          %v2273 = vpop.f32.mrb[0].mxu0
          %2274 = vmatprep.mubr.bf16.mxu0 %v1392
          %2275 = vmatmul.mubr.bf16.gmra.mrb[0].mxu0 %v1391
          %v2276 = vpop.f32.mrb[0].mxu0
          %v2277 = vadd.f32 %v1988, %v2276
          %v2278 = vpop.f32.mrb[0].mxu0
          %v2279 = vpop.f32.mrb[0].mxu0
          %v2280 = vadd.f32 %v1991, %v2279
          %v2281 = vpop.f32.mrb[0].mxu0
          %2282 = vmatprep.mubr.bf16.mxu0 %v1396
          %2283 = vmatmul.mubr.bf16.gmra.mrb[0].mxu0 %v1395
          %v2284 = vpop.f32.mrb[0].mxu0
          %v2285 = vadd.f32 %v1996, %v2284
          %v2286 = vpop.f32.mrb[0].mxu0
          %v2287 = vpop.f32.mrb[0].mxu0
          %v2288 = vadd.f32 %v1999, %v2287
          %v2289 = vpop.f32.mrb[0].mxu0
          %2290 = vmatprep.mubr.bf16.mxu0 %v1400
          %2291 = vmatmul.mubr.bf16.gmra.mrb[0].mxu0 %v1399
          %v2292 = vpop.f32.mrb[0].mxu0
          %v2293 = vadd.f32 %v2004, %v2292
          %v2294 = vpop.f32.mrb[0].mxu0
          %v2295 = vpop.f32.mrb[0].mxu0
          %v2296 = vadd.f32 %v2007, %v2295
          %v2297 = vpop.f32.mrb[0].mxu0
          %2298 = vdwg.mxu0
          %v2299 = vadd.f32 %v633, %v2045
          %v2300 = vadd.f32 %v634, %v2048
          %v2301 = vadd.f32 %v635, %v2053
          %v2302 = vadd.f32 %v636, %v2056
          %v2303 = vadd.f32 %v637, %v2061
          %v2304 = vadd.f32 %v638, %v2064
          %v2305 = vadd.f32 %v639, %v2069
          %v2306 = vadd.f32 %v640, %v2072
          %v2307 = vadd.f32 %v641, %v2077
          %v2308 = vadd.f32 %v642, %v2080
          %v2309 = vadd.f32 %v643, %v2085
          %v2310 = vadd.f32 %v644, %v2088
          %v2311 = vadd.f32 %v645, %v2093
          %v2312 = vadd.f32 %v646, %v2096
          %v2313 = vadd.f32 %v647, %v2101
          %v2314 = vadd.f32 %v648, %v2104
          %v2315 = vadd.f32 %v649, %v2109
          %v2316 = vadd.f32 %v650, %v2112
          %v2317 = vadd.f32 %v651, %v2117
          %v2318 = vadd.f32 %v652, %v2120
          %v2319 = vadd.f32 %v653, %v2125
          %v2320 = vadd.f32 %v654, %v2128
          %v2321 = vadd.f32 %v655, %v2133
          %v2322 = vadd.f32 %v656, %v2136
          %v2323 = vadd.f32 %v657, %v2141
          %v2324 = vadd.f32 %v658, %v2144
          %v2325 = vadd.f32 %v659, %v2149
          %v2326 = vadd.f32 %v660, %v2152
          %v2327 = vadd.f32 %v661, %v2157
          %v2328 = vadd.f32 %v662, %v2160
          %v2329 = vadd.f32 %v663, %v2165
          %v2330 = vadd.f32 %v664, %v2168
          %v2331 = vadd.f32 %v665, %v2173
          %v2332 = vadd.f32 %v666, %v2176
          %v2333 = vadd.f32 %v667, %v2181
          %v2334 = vadd.f32 %v668, %v2184
          %v2335 = vadd.f32 %v669, %v2189
          %v2336 = vadd.f32 %v670, %v2192
          %v2337 = vadd.f32 %v671, %v2197
          %v2338 = vadd.f32 %v672, %v2200
          %v2339 = vadd.f32 %v673, %v2205
          %v2340 = vadd.f32 %v674, %v2208
          %v2341 = vadd.f32 %v675, %v2213
          %v2342 = vadd.f32 %v676, %v2216
          %v2343 = vadd.f32 %v677, %v2221
          %v2344 = vadd.f32 %v678, %v2224
          %v2345 = vadd.f32 %v679, %v2229
          %v2346 = vadd.f32 %v680, %v2232
          %v2347 = vadd.f32 %v681, %v2237
          %v2348 = vadd.f32 %v682, %v2240
          %v2349 = vadd.f32 %v683, %v2245
          %v2350 = vadd.f32 %v684, %v2248
          %v2351 = vadd.f32 %v685, %v2253
          %v2352 = vadd.f32 %v686, %v2256
          %v2353 = vadd.f32 %v687, %v2261
          %v2354 = vadd.f32 %v688, %v2264
          %v2355 = vadd.f32 %v689, %v2269
          %v2356 = vadd.f32 %v690, %v2272
          %v2357 = vadd.f32 %v691, %v2277
          %v2358 = vadd.f32 %v692, %v2280
          %v2359 = vadd.f32 %v693, %v2285
          %v2360 = vadd.f32 %v694, %v2288
          %v2361 = vadd.f32 %v695, %v2293
          %v2362 = vadd.f32 %v696, %v2296
          %2363 = vst [vmem:[#allocation2] sm:$0xff] %v2299
          %2364 = vst [vmem:[#allocation2 + $0x8] sm:$0xff] %v2300
          %2365 = vst [vmem:[#allocation2 + $0x10] sm:$0xff] %v2301
          %2366 = vst [vmem:[#allocation2 + $0x18] sm:$0xff] %v2302
          %2367 = vst [vmem:[#allocation2 + $0x20] sm:$0xff] %v2303
          %2368 = vst [vmem:[#allocation2 + $0x28] sm:$0xff] %v2304
          %2369 = vst [vmem:[#allocation2 + $0x30] sm:$0xff] %v2305
          %2370 = vst [vmem:[#allocation2 + $0x38] sm:$0xff] %v2306
          %2371 = vst [vmem:[#allocation2 + $0x40] sm:$0xff] %v2307
          %2372 = vst [vmem:[#allocation2 + $0x48] sm:$0xff] %v2308
          %2373 = vst [vmem:[#allocation2 + $0x50] sm:$0xff] %v2309
          %2374 = vst [vmem:[#allocation2 + $0x58] sm:$0xff] %v2310
          %2375 = vst [vmem:[#allocation2 + $0x60] sm:$0xff] %v2311
          %2376 = vst [vmem:[#allocation2 + $0x68] sm:$0xff] %v2312
          %2377 = vst [vmem:[#allocation2 + $0x70] sm:$0xff] %v2313
          %2378 = vst [vmem:[#allocation2 + $0x78] sm:$0xff] %v2314
          %2379 = vst [vmem:[#allocation2 + $0x80] sm:$0xff] %v2315
          %2380 = vst [vmem:[#allocation2 + $0x88] sm:$0xff] %v2316
          %2381 = vst [vmem:[#allocation2 + $0x90] sm:$0xff] %v2317
          %2382 = vst [vmem:[#allocation2 + $0x98] sm:$0xff] %v2318
          %2383 = vst [vmem:[#allocation2 + $0xa0] sm:$0xff] %v2319
          %2384 = vst [vmem:[#allocation2 + $0xa8] sm:$0xff] %v2320
          %2385 = vst [vmem:[#allocation2 + $0xb0] sm:$0xff] %v2321
          %2386 = vst [vmem:[#allocation2 + $0xb8] sm:$0xff] %v2322
          %2387 = vst [vmem:[#allocation2 + $0xc0] sm:$0xff] %v2323
          %2388 = vst [vmem:[#allocation2 + $0xc8] sm:$0xff] %v2324
          %2389 = vst [vmem:[#allocation2 + $0xd0] sm:$0xff] %v2325
          %2390 = vst [vmem:[#allocation2 + $0xd8] sm:$0xff] %v2326
          %2391 = vst [vmem:[#allocation2 + $0xe0] sm:$0xff] %v2327
          %2392 = vst [vmem:[#allocation2 + $0xe8] sm:$0xff] %v2328
          %2393 = vst [vmem:[#allocation2 + $0xf0] sm:$0xff] %v2329
          %2394 = vst [vmem:[#allocation2 + $0xf8] sm:$0xff] %v2330
          %2395 = vst [vmem:[#allocation2 + $0x100] sm:$0xff] %v2331
          %2396 = vst [vmem:[#allocation2 + $0x108] sm:$0xff] %v2332
          %2397 = vst [vmem:[#allocation2 + $0x110] sm:$0xff] %v2333
          %2398 = vst [vmem:[#allocation2 + $0x118] sm:$0xff] %v2334
          %2399 = vst [vmem:[#allocation2 + $0x120] sm:$0xff] %v2335
          %2400 = vst [vmem:[#allocation2 + $0x128] sm:$0xff] %v2336
          %2401 = vst [vmem:[#allocation2 + $0x130] sm:$0xff] %v2337
          %2402 = vst [vmem:[#allocation2 + $0x138] sm:$0xff] %v2338
          %2403 = vst [vmem:[#allocation2 + $0x140] sm:$0xff] %v2339
          %2404 = vst [vmem:[#allocation2 + $0x148] sm:$0xff] %v2340
          %2405 = vst [vmem:[#allocation2 + $0x150] sm:$0xff] %v2341
          %2406 = vst [vmem:[#allocation2 + $0x158] sm:$0xff] %v2342
          %2407 = vst [vmem:[#allocation2 + $0x160] sm:$0xff] %v2343
          %2408 = vst [vmem:[#allocation2 + $0x168] sm:$0xff] %v2344
          %2409 = vst [vmem:[#allocation2 + $0x170] sm:$0xff] %v2345
          %2410 = vst [vmem:[#allocation2 + $0x178] sm:$0xff] %v2346
          %2411 = vst [vmem:[#allocation2 + $0x180] sm:$0xff] %v2347
          %2412 = vst [vmem:[#allocation2 + $0x188] sm:$0xff] %v2348
          %2413 = vst [vmem:[#allocation2 + $0x190] sm:$0xff] %v2349
          %2414 = vst [vmem:[#allocation2 + $0x198] sm:$0xff] %v2350
          %2415 = vst [vmem:[#allocation2 + $0x1a0] sm:$0xff] %v2351
          %2416 = vst [vmem:[#allocation2 + $0x1a8] sm:$0xff] %v2352
          %2417 = vst [vmem:[#allocation2 + $0x1b0] sm:$0xff] %v2353
          %2418 = vst [vmem:[#allocation2 + $0x1b8] sm:$0xff] %v2354
          %2419 = vst [vmem:[#allocation2 + $0x1c0] sm:$0xff] %v2355
          %2420 = vst [vmem:[#allocation2 + $0x1c8] sm:$0xff] %v2356
          %2421 = vst [vmem:[#allocation2 + $0x1d0] sm:$0xff] %v2357
          %2422 = vst [vmem:[#allocation2 + $0x1d8] sm:$0xff] %v2358
          %2423 = vst [vmem:[#allocation2 + $0x1e0] sm:$0xff] %v2359
          %2424 = vst [vmem:[#allocation2 + $0x1e8] sm:$0xff] %v2360
          %2425 = vst [vmem:[#allocation2 + $0x1f0] sm:$0xff] %v2361
          %2426 = vst [vmem:[#allocation2 + $0x1f8] sm:$0xff] %v2362
        $region67: #{gcn_forward.3} parent=54 // pred_fallthru
          _
        %p2427 = scmp.eq.s32.totalorder %s32, 1
        // Predicated region
        $region68: #{gcn_forward.3} parent=54 // pred_check
          %p2428 = pneg %p2427
        $region69: #{gcn_forward.3} parent=54 // pred_check_branch
          %2430 = sbr.rel (%p2428) target = $region71
        $region70: #{gcn_forward.3} parent=54 // pred_region
          %v2431 = vld [vmem:[#allocation2] sm:$0xff]
          %v2432 = vld [vmem:[#allocation2 + $0x8] sm:$0xff]
          %v2433 = vld [vmem:[#allocation2 + $0x10] sm:$0xff]
          %v2434 = vld [vmem:[#allocation2 + $0x18] sm:$0xff]
          %v2435 = vld [vmem:[#allocation2 + $0x20] sm:$0xff]
          %v2436 = vld [vmem:[#allocation2 + $0x28] sm:$0xff]
          %v2437 = vld [vmem:[#allocation2 + $0x30] sm:$0xff]
          %v2438 = vld [vmem:[#allocation2 + $0x38] sm:$0xff]
          %v2439 = vld [vmem:[#allocation2 + $0x40] sm:$0xff]
          %v2440 = vld [vmem:[#allocation2 + $0x48] sm:$0xff]
          %v2441 = vld [vmem:[#allocation2 + $0x50] sm:$0xff]
          %v2442 = vld [vmem:[#allocation2 + $0x58] sm:$0xff]
          %v2443 = vld [vmem:[#allocation2 + $0x60] sm:$0xff]
          %v2444 = vld [vmem:[#allocation2 + $0x68] sm:$0xff]
          %v2445 = vld [vmem:[#allocation2 + $0x70] sm:$0xff]
          %v2446 = vld [vmem:[#allocation2 + $0x78] sm:$0xff]
          %v2447 = vld [vmem:[#allocation2 + $0x80] sm:$0xff]
          %v2448 = vld [vmem:[#allocation2 + $0x88] sm:$0xff]
          %v2449 = vld [vmem:[#allocation2 + $0x90] sm:$0xff]
          %v2450 = vld [vmem:[#allocation2 + $0x98] sm:$0xff]
          %v2451 = vld [vmem:[#allocation2 + $0xa0] sm:$0xff]
          %v2452 = vld [vmem:[#allocation2 + $0xa8] sm:$0xff]
          %v2453 = vld [vmem:[#allocation2 + $0xb0] sm:$0xff]
          %v2454 = vld [vmem:[#allocation2 + $0xb8] sm:$0xff]
          %v2455 = vld [vmem:[#allocation2 + $0xc0] sm:$0xff]
          %v2456 = vld [vmem:[#allocation2 + $0xc8] sm:$0xff]
          %v2457 = vld [vmem:[#allocation2 + $0xd0] sm:$0xff]
          %v2458 = vld [vmem:[#allocation2 + $0xd8] sm:$0xff]
          %v2459 = vld [vmem:[#allocation2 + $0xe0] sm:$0xff]
          %v2460 = vld [vmem:[#allocation2 + $0xe8] sm:$0xff]
          %v2461 = vld [vmem:[#allocation2 + $0xf0] sm:$0xff]
          %v2462 = vld [vmem:[#allocation2 + $0xf8] sm:$0xff]
          %v2463 = vld [vmem:[#allocation2 + $0x100] sm:$0xff]
          %v2464 = vld [vmem:[#allocation2 + $0x108] sm:$0xff]
          %v2465 = vld [vmem:[#allocation2 + $0x110] sm:$0xff]
          %v2466 = vld [vmem:[#allocation2 + $0x118] sm:$0xff]
          %v2467 = vld [vmem:[#allocation2 + $0x120] sm:$0xff]
          %v2468 = vld [vmem:[#allocation2 + $0x128] sm:$0xff]
          %v2469 = vld [vmem:[#allocation2 + $0x130] sm:$0xff]
          %v2470 = vld [vmem:[#allocation2 + $0x138] sm:$0xff]
          %v2471 = vld [vmem:[#allocation2 + $0x140] sm:$0xff]
          %v2472 = vld [vmem:[#allocation2 + $0x148] sm:$0xff]
          %v2473 = vld [vmem:[#allocation2 + $0x150] sm:$0xff]
          %v2474 = vld [vmem:[#allocation2 + $0x158] sm:$0xff]
          %v2475 = vld [vmem:[#allocation2 + $0x160] sm:$0xff]
          %v2476 = vld [vmem:[#allocation2 + $0x168] sm:$0xff]
          %v2477 = vld [vmem:[#allocation2 + $0x170] sm:$0xff]
          %v2478 = vld [vmem:[#allocation2 + $0x178] sm:$0xff]
          %v2479 = vld [vmem:[#allocation2 + $0x180] sm:$0xff]
          %v2480 = vld [vmem:[#allocation2 + $0x188] sm:$0xff]
          %v2481 = vld [vmem:[#allocation2 + $0x190] sm:$0xff]
          %v2482 = vld [vmem:[#allocation2 + $0x198] sm:$0xff]
          %v2483 = vld [vmem:[#allocation2 + $0x1a0] sm:$0xff]
          %v2484 = vld [vmem:[#allocation2 + $0x1a8] sm:$0xff]
          %v2485 = vld [vmem:[#allocation2 + $0x1b0] sm:$0xff]
          %v2486 = vld [vmem:[#allocation2 + $0x1b8] sm:$0xff]
          %v2487 = vld [vmem:[#allocation2 + $0x1c0] sm:$0xff]
          %v2488 = vld [vmem:[#allocation2 + $0x1c8] sm:$0xff]
          %v2489 = vld [vmem:[#allocation2 + $0x1d0] sm:$0xff]
          %v2490 = vld [vmem:[#allocation2 + $0x1d8] sm:$0xff]
          %v2491 = vld [vmem:[#allocation2 + $0x1e0] sm:$0xff]
          %v2492 = vld [vmem:[#allocation2 + $0x1e8] sm:$0xff]
          %v2493 = vld [vmem:[#allocation2 + $0x1f0] sm:$0xff]
          %v2494 = vld [vmem:[#allocation2 + $0x1f8] sm:$0xff]
          %v2495 = vpack.c.bf16 %v2432, %v2431
          %v2496 = vpack.c.bf16 %v2434, %v2433
          %v2497 = vpack.c.bf16 %v2436, %v2435
          %v2498 = vpack.c.bf16 %v2438, %v2437
          %v2499 = vpack.c.bf16 %v2440, %v2439
          %v2500 = vpack.c.bf16 %v2442, %v2441
          %v2501 = vpack.c.bf16 %v2444, %v2443
          %v2502 = vpack.c.bf16 %v2446, %v2445
          %v2503 = vpack.c.bf16 %v2448, %v2447
          %v2504 = vpack.c.bf16 %v2450, %v2449
          %v2505 = vpack.c.bf16 %v2452, %v2451
          %v2506 = vpack.c.bf16 %v2454, %v2453
          %v2507 = vpack.c.bf16 %v2456, %v2455
          %v2508 = vpack.c.bf16 %v2458, %v2457
          %v2509 = vpack.c.bf16 %v2460, %v2459
          %v2510 = vpack.c.bf16 %v2462, %v2461
          %v2511 = vpack.c.bf16 %v2464, %v2463
          %v2512 = vpack.c.bf16 %v2466, %v2465
          %v2513 = vpack.c.bf16 %v2468, %v2467
          %v2514 = vpack.c.bf16 %v2470, %v2469
          %v2515 = vpack.c.bf16 %v2472, %v2471
          %v2516 = vpack.c.bf16 %v2474, %v2473
          %v2517 = vpack.c.bf16 %v2476, %v2475
          %v2518 = vpack.c.bf16 %v2478, %v2477
          %v2519 = vpack.c.bf16 %v2480, %v2479
          %v2520 = vpack.c.bf16 %v2482, %v2481
          %v2521 = vpack.c.bf16 %v2484, %v2483
          %v2522 = vpack.c.bf16 %v2486, %v2485
          %v2523 = vpack.c.bf16 %v2488, %v2487
          %v2524 = vpack.c.bf16 %v2490, %v2489
          %v2525 = vpack.c.bf16 %v2492, %v2491
          %v2526 = vpack.c.bf16 %v2494, %v2493
          %v2527 = vld [vmem:[%s4] sm:$0xf]
          %v2528 = vld [vmem:[%s4 + $0x4] sm:$0xf]
          %v2529 = vld [vmem:[%s4 + $0x8] sm:$0xf]
          %v2530 = vld [vmem:[%s4 + $0xc] sm:$0xf]
          %v2531 = vld [vmem:[%s4 + $0x10] sm:$0xf]
          %v2532 = vld [vmem:[%s4 + $0x14] sm:$0xf]
          %v2533 = vld [vmem:[%s4 + $0x18] sm:$0xf]
          %v2534 = vld [vmem:[%s4 + $0x1c] sm:$0xf]
          %v2535 = vld [vmem:[%s4 + $0x20] sm:$0xf]
          %v2536 = vld [vmem:[%s4 + $0x24] sm:$0xf]
          %v2537 = vld [vmem:[%s4 + $0x28] sm:$0xf]
          %v2538 = vld [vmem:[%s4 + $0x2c] sm:$0xf]
          %v2539 = vld [vmem:[%s4 + $0x30] sm:$0xf]
          %v2540 = vld [vmem:[%s4 + $0x34] sm:$0xf]
          %v2541 = vld [vmem:[%s4 + $0x38] sm:$0xf]
          %v2542 = vld [vmem:[%s4 + $0x3c] sm:$0xf]
          %v2543 = vld [vmem:[%s5] sm:$0x1]
          %v2545 = vlaneseq
          %v2546 = vshrl.u32 %v2545, 7
          %v2547 = vsub.s32 0, %v2546
          %v2548 = vrot.slane %v2543, %v2547
          %v2566 = vunpack.c.l.b16 %v2527
          %v2567 = vunpack.c.l.b16 %v2528
          %v2568 = vunpack.c.l.b16 %v2529
          %v2569 = vunpack.c.l.b16 %v2530
          %v2570 = vunpack.c.l.b16 %v2531
          %v2571 = vunpack.c.l.b16 %v2532
          %v2572 = vunpack.c.l.b16 %v2533
          %v2573 = vunpack.c.l.b16 %v2534
          %v2574 = vunpack.c.l.b16 %v2535
          %v2575 = vunpack.c.l.b16 %v2536
          %v2576 = vunpack.c.l.b16 %v2537
          %v2577 = vunpack.c.l.b16 %v2538
          %v2578 = vunpack.c.l.b16 %v2539
          %v2579 = vunpack.c.l.b16 %v2540
          %v2580 = vunpack.c.l.b16 %v2541
          %v2581 = vunpack.c.l.b16 %v2542
          %v2582 = vpack.c.b16 %v2567, %v2566
          %v2583 = vpack.c.b16 %v2569, %v2568
          %v2584 = vpack.c.b16 %v2571, %v2570
          %v2585 = vpack.c.b16 %v2573, %v2572
          %v2586 = vpack.c.b16 %v2575, %v2574
          %v2587 = vpack.c.b16 %v2577, %v2576
          %v2588 = vpack.c.b16 %v2579, %v2578
          %v2589 = vpack.c.b16 %v2581, %v2580
          %2598 = vmatprep.subr.bf16.mxu0 0
          %2599 = vmatpush1.bf16.msra.mxu0 %v2582
          %2600 = vmatprep.subr.bf16.mxu0 0
          %2601 = vmatpush1.bf16.msra.mxu0 %v2583
          %2602 = vmatprep.subr.bf16.mxu0 0
          %2603 = vmatpush1.bf16.msra.mxu0 %v2584
          %2604 = vmatprep.subr.bf16.mxu0 0
          %2605 = vmatpush1.bf16.msra.mxu0 %v2585
          %2606 = vmatprep.subr.bf16.mxu0 0
          %2607 = vmatpush1.bf16.msra.mxu0 %v2586
          %2608 = vmatprep.subr.bf16.mxu0 0
          %2609 = vmatpush1.bf16.msra.mxu0 %v2587
          %2610 = vmatprep.subr.bf16.mxu0 0
          %2611 = vmatpush1.bf16.msra.mxu0 %v2588
          %2612 = vmatprep.subr.bf16.mxu0 0
          %2613 = vmatpush1.bf16.msra.mxu0 %v2589
          %2614 = vmatprep.subr.bf16.mxu0 0
          %2615 = vmatpush1.bf16.msra.mxu0 0
          %2616 = vmatprep.subr.bf16.mxu0 0
          %2617 = vmatpush1.bf16.msra.mxu0 0
          %2618 = vmatprep.subr.bf16.mxu0 0
          %2619 = vmatpush1.bf16.msra.mxu0 0
          %2620 = vmatprep.subr.bf16.mxu0 0
          %2621 = vmatpush1.bf16.msra.mxu0 0
          %2622 = vmatprep.subr.bf16.mxu0 0
          %2623 = vmatpush1.bf16.msra.mxu0 0
          %2624 = vmatprep.subr.bf16.mxu0 0
          %2625 = vmatpush1.bf16.msra.mxu0 0
          %2626 = vmatprep.subr.bf16.mxu0 0
          %2627 = vmatpush1.bf16.msra.mxu0 0
          %2628 = vmatprep.subr.bf16.mxu0 0
          %2629 = vmatpush1.bf16.msra.mxu0 0
          %2630 = vmatprep.mubr.bf16.mxu0 0
          %2631 = vmatmul.mubr.bf16.gmra.mrb[0].mxu0 %v2495
          %v2632 = vpop.f32.mrb[0].mxu0
          %v2633 = vadd.f32 %v2548, %v2632
          %v2634 = vpop.f32.mrb[0].mxu0
          %v2635 = vpop.f32.mrb[0].mxu0
          %v2636 = vadd.f32 %v2548, %v2635
          %v2637 = vpop.f32.mrb[0].mxu0
          %2638 = vmatprep.mubr.bf16.mxu0 0
          %2639 = vmatmul.mubr.bf16.gmra.mrb[0].mxu0 %v2496
          %v2640 = vpop.f32.mrb[0].mxu0
          %v2641 = vadd.f32 %v2548, %v2640
          %v2642 = vpop.f32.mrb[0].mxu0
          %v2643 = vpop.f32.mrb[0].mxu0
          %v2644 = vadd.f32 %v2548, %v2643
          %v2645 = vpop.f32.mrb[0].mxu0
          %2646 = vmatprep.mubr.bf16.mxu0 0
          %2647 = vmatmul.mubr.bf16.gmra.mrb[0].mxu0 %v2497
          %v2648 = vpop.f32.mrb[0].mxu0
          %v2649 = vadd.f32 %v2548, %v2648
          %v2650 = vpop.f32.mrb[0].mxu0
          %v2651 = vpop.f32.mrb[0].mxu0
          %v2652 = vadd.f32 %v2548, %v2651
          %v2653 = vpop.f32.mrb[0].mxu0
          %2654 = vmatprep.mubr.bf16.mxu0 0
          %2655 = vmatmul.mubr.bf16.gmra.mrb[0].mxu0 %v2498
          %v2656 = vpop.f32.mrb[0].mxu0
          %v2657 = vadd.f32 %v2548, %v2656
          %v2658 = vpop.f32.mrb[0].mxu0
          %v2659 = vpop.f32.mrb[0].mxu0
          %v2660 = vadd.f32 %v2548, %v2659
          %v2661 = vpop.f32.mrb[0].mxu0
          %2662 = vmatprep.mubr.bf16.mxu0 0
          %2663 = vmatmul.mubr.bf16.gmra.mrb[0].mxu0 %v2499
          %v2664 = vpop.f32.mrb[0].mxu0
          %v2665 = vadd.f32 %v2548, %v2664
          %v2666 = vpop.f32.mrb[0].mxu0
          %v2667 = vpop.f32.mrb[0].mxu0
          %v2668 = vadd.f32 %v2548, %v2667
          %v2669 = vpop.f32.mrb[0].mxu0
          %2670 = vmatprep.mubr.bf16.mxu0 0
          %2671 = vmatmul.mubr.bf16.gmra.mrb[0].mxu0 %v2500
          %v2672 = vpop.f32.mrb[0].mxu0
          %v2673 = vadd.f32 %v2548, %v2672
          %v2674 = vpop.f32.mrb[0].mxu0
          %v2675 = vpop.f32.mrb[0].mxu0
          %v2676 = vadd.f32 %v2548, %v2675
          %v2677 = vpop.f32.mrb[0].mxu0
          %2678 = vmatprep.mubr.bf16.mxu0 0
          %2679 = vmatmul.mubr.bf16.gmra.mrb[0].mxu0 %v2501
          %v2680 = vpop.f32.mrb[0].mxu0
          %v2681 = vadd.f32 %v2548, %v2680
          %v2682 = vpop.f32.mrb[0].mxu0
          %v2683 = vpop.f32.mrb[0].mxu0
          %v2684 = vadd.f32 %v2548, %v2683
          %v2685 = vpop.f32.mrb[0].mxu0
          %2686 = vmatprep.mubr.bf16.mxu0 0
          %2687 = vmatmul.mubr.bf16.gmra.mrb[0].mxu0 %v2502
          %v2688 = vpop.f32.mrb[0].mxu0
          %v2689 = vadd.f32 %v2548, %v2688
          %v2690 = vpop.f32.mrb[0].mxu0
          %v2691 = vpop.f32.mrb[0].mxu0
          %v2692 = vadd.f32 %v2548, %v2691
          %v2693 = vpop.f32.mrb[0].mxu0
          %2694 = vmatprep.mubr.bf16.mxu0 0
          %2695 = vmatmul.mubr.bf16.gmra.mrb[0].mxu0 %v2503
          %v2696 = vpop.f32.mrb[0].mxu0
          %v2697 = vadd.f32 %v2548, %v2696
          %v2698 = vpop.f32.mrb[0].mxu0
          %v2699 = vpop.f32.mrb[0].mxu0
          %v2700 = vadd.f32 %v2548, %v2699
          %v2701 = vpop.f32.mrb[0].mxu0
          %2702 = vmatprep.mubr.bf16.mxu0 0
          %2703 = vmatmul.mubr.bf16.gmra.mrb[0].mxu0 %v2504
          %v2704 = vpop.f32.mrb[0].mxu0
          %v2705 = vadd.f32 %v2548, %v2704
          %v2706 = vpop.f32.mrb[0].mxu0
          %v2707 = vpop.f32.mrb[0].mxu0
          %v2708 = vadd.f32 %v2548, %v2707
          %v2709 = vpop.f32.mrb[0].mxu0
          %2710 = vmatprep.mubr.bf16.mxu0 0
          %2711 = vmatmul.mubr.bf16.gmra.mrb[0].mxu0 %v2505
          %v2712 = vpop.f32.mrb[0].mxu0
          %v2713 = vadd.f32 %v2548, %v2712
          %v2714 = vpop.f32.mrb[0].mxu0
          %v2715 = vpop.f32.mrb[0].mxu0
          %v2716 = vadd.f32 %v2548, %v2715
          %v2717 = vpop.f32.mrb[0].mxu0
          %2718 = vmatprep.mubr.bf16.mxu0 0
          %2719 = vmatmul.mubr.bf16.gmra.mrb[0].mxu0 %v2506
          %v2720 = vpop.f32.mrb[0].mxu0
          %v2721 = vadd.f32 %v2548, %v2720
          %v2722 = vpop.f32.mrb[0].mxu0
          %v2723 = vpop.f32.mrb[0].mxu0
          %v2724 = vadd.f32 %v2548, %v2723
          %v2725 = vpop.f32.mrb[0].mxu0
          %2726 = vmatprep.mubr.bf16.mxu0 0
          %2727 = vmatmul.mubr.bf16.gmra.mrb[0].mxu0 %v2507
          %v2728 = vpop.f32.mrb[0].mxu0
          %v2729 = vadd.f32 %v2548, %v2728
          %v2730 = vpop.f32.mrb[0].mxu0
          %v2731 = vpop.f32.mrb[0].mxu0
          %v2732 = vadd.f32 %v2548, %v2731
          %v2733 = vpop.f32.mrb[0].mxu0
          %2734 = vmatprep.mubr.bf16.mxu0 0
          %2735 = vmatmul.mubr.bf16.gmra.mrb[0].mxu0 %v2508
          %v2736 = vpop.f32.mrb[0].mxu0
          %v2737 = vadd.f32 %v2548, %v2736
          %v2738 = vpop.f32.mrb[0].mxu0
          %v2739 = vpop.f32.mrb[0].mxu0
          %v2740 = vadd.f32 %v2548, %v2739
          %v2741 = vpop.f32.mrb[0].mxu0
          %2742 = vmatprep.mubr.bf16.mxu0 0
          %2743 = vmatmul.mubr.bf16.gmra.mrb[0].mxu0 %v2509
          %v2744 = vpop.f32.mrb[0].mxu0
          %v2745 = vadd.f32 %v2548, %v2744
          %v2746 = vpop.f32.mrb[0].mxu0
          %v2747 = vpop.f32.mrb[0].mxu0
          %v2748 = vadd.f32 %v2548, %v2747
          %v2749 = vpop.f32.mrb[0].mxu0
          %2750 = vmatprep.mubr.bf16.mxu0 0
          %2751 = vmatmul.mubr.bf16.gmra.mrb[0].mxu0 %v2510
          %v2752 = vpop.f32.mrb[0].mxu0
          %v2753 = vadd.f32 %v2548, %v2752
          %v2754 = vpop.f32.mrb[0].mxu0
          %v2755 = vpop.f32.mrb[0].mxu0
          %v2756 = vadd.f32 %v2548, %v2755
          %v2757 = vpop.f32.mrb[0].mxu0
          %2758 = vmatprep.mubr.bf16.mxu0 0
          %2759 = vmatmul.mubr.bf16.gmra.mrb[0].mxu0 %v2511
          %v2760 = vpop.f32.mrb[0].mxu0
          %v2761 = vadd.f32 %v2548, %v2760
          %v2762 = vpop.f32.mrb[0].mxu0
          %v2763 = vpop.f32.mrb[0].mxu0
          %v2764 = vadd.f32 %v2548, %v2763
          %v2765 = vpop.f32.mrb[0].mxu0
          %2766 = vmatprep.mubr.bf16.mxu0 0
          %2767 = vmatmul.mubr.bf16.gmra.mrb[0].mxu0 %v2512
          %v2768 = vpop.f32.mrb[0].mxu0
          %v2769 = vadd.f32 %v2548, %v2768
          %v2770 = vpop.f32.mrb[0].mxu0
          %v2771 = vpop.f32.mrb[0].mxu0
          %v2772 = vadd.f32 %v2548, %v2771
          %v2773 = vpop.f32.mrb[0].mxu0
          %2774 = vmatprep.mubr.bf16.mxu0 0
          %2775 = vmatmul.mubr.bf16.gmra.mrb[0].mxu0 %v2513
          %v2776 = vpop.f32.mrb[0].mxu0
          %v2777 = vadd.f32 %v2548, %v2776
          %v2778 = vpop.f32.mrb[0].mxu0
          %v2779 = vpop.f32.mrb[0].mxu0
          %v2780 = vadd.f32 %v2548, %v2779
          %v2781 = vpop.f32.mrb[0].mxu0
          %2782 = vmatprep.mubr.bf16.mxu0 0
          %2783 = vmatmul.mubr.bf16.gmra.mrb[0].mxu0 %v2514
          %v2784 = vpop.f32.mrb[0].mxu0
          %v2785 = vadd.f32 %v2548, %v2784
          %v2786 = vpop.f32.mrb[0].mxu0
          %v2787 = vpop.f32.mrb[0].mxu0
          %v2788 = vadd.f32 %v2548, %v2787
          %v2789 = vpop.f32.mrb[0].mxu0
          %2790 = vmatprep.mubr.bf16.mxu0 0
          %2791 = vmatmul.mubr.bf16.gmra.mrb[0].mxu0 %v2515
          %v2792 = vpop.f32.mrb[0].mxu0
          %v2793 = vadd.f32 %v2548, %v2792
          %v2794 = vpop.f32.mrb[0].mxu0
          %v2795 = vpop.f32.mrb[0].mxu0
          %v2796 = vadd.f32 %v2548, %v2795
          %v2797 = vpop.f32.mrb[0].mxu0
          %2798 = vmatprep.mubr.bf16.mxu0 0
          %2799 = vmatmul.mubr.bf16.gmra.mrb[0].mxu0 %v2516
          %v2800 = vpop.f32.mrb[0].mxu0
          %v2801 = vadd.f32 %v2548, %v2800
          %v2802 = vpop.f32.mrb[0].mxu0
          %v2803 = vpop.f32.mrb[0].mxu0
          %v2804 = vadd.f32 %v2548, %v2803
          %v2805 = vpop.f32.mrb[0].mxu0
          %2806 = vmatprep.mubr.bf16.mxu0 0
          %2807 = vmatmul.mubr.bf16.gmra.mrb[0].mxu0 %v2517
          %v2808 = vpop.f32.mrb[0].mxu0
          %v2809 = vadd.f32 %v2548, %v2808
          %v2810 = vpop.f32.mrb[0].mxu0
          %v2811 = vpop.f32.mrb[0].mxu0
          %v2812 = vadd.f32 %v2548, %v2811
          %v2813 = vpop.f32.mrb[0].mxu0
          %2814 = vmatprep.mubr.bf16.mxu0 0
          %2815 = vmatmul.mubr.bf16.gmra.mrb[0].mxu0 %v2518
          %v2816 = vpop.f32.mrb[0].mxu0
          %v2817 = vadd.f32 %v2548, %v2816
          %v2818 = vpop.f32.mrb[0].mxu0
          %v2819 = vpop.f32.mrb[0].mxu0
          %v2820 = vadd.f32 %v2548, %v2819
          %v2821 = vpop.f32.mrb[0].mxu0
          %2822 = vmatprep.mubr.bf16.mxu0 0
          %2823 = vmatmul.mubr.bf16.gmra.mrb[0].mxu0 %v2519
          %v2824 = vpop.f32.mrb[0].mxu0
          %v2825 = vadd.f32 %v2548, %v2824
          %v2826 = vpop.f32.mrb[0].mxu0
          %v2827 = vpop.f32.mrb[0].mxu0
          %v2828 = vadd.f32 %v2548, %v2827
          %v2829 = vpop.f32.mrb[0].mxu0
          %2830 = vmatprep.mubr.bf16.mxu0 0
          %2831 = vmatmul.mubr.bf16.gmra.mrb[0].mxu0 %v2520
          %v2832 = vpop.f32.mrb[0].mxu0
          %v2833 = vadd.f32 %v2548, %v2832
          %v2834 = vpop.f32.mrb[0].mxu0
          %v2835 = vpop.f32.mrb[0].mxu0
          %v2836 = vadd.f32 %v2548, %v2835
          %v2837 = vpop.f32.mrb[0].mxu0
          %2838 = vmatprep.mubr.bf16.mxu0 0
          %2839 = vmatmul.mubr.bf16.gmra.mrb[0].mxu0 %v2521
          %v2840 = vpop.f32.mrb[0].mxu0
          %v2841 = vadd.f32 %v2548, %v2840
          %v2842 = vpop.f32.mrb[0].mxu0
          %v2843 = vpop.f32.mrb[0].mxu0
          %v2844 = vadd.f32 %v2548, %v2843
          %v2845 = vpop.f32.mrb[0].mxu0
          %2846 = vmatprep.mubr.bf16.mxu0 0
          %2847 = vmatmul.mubr.bf16.gmra.mrb[0].mxu0 %v2522
          %v2848 = vpop.f32.mrb[0].mxu0
          %v2849 = vadd.f32 %v2548, %v2848
          %v2850 = vpop.f32.mrb[0].mxu0
          %v2851 = vpop.f32.mrb[0].mxu0
          %v2852 = vadd.f32 %v2548, %v2851
          %v2853 = vpop.f32.mrb[0].mxu0
          %2854 = vmatprep.mubr.bf16.mxu0 0
          %2855 = vmatmul.mubr.bf16.gmra.mrb[0].mxu0 %v2523
          %v2856 = vpop.f32.mrb[0].mxu0
          %v2857 = vadd.f32 %v2548, %v2856
          %v2858 = vpop.f32.mrb[0].mxu0
          %v2859 = vpop.f32.mrb[0].mxu0
          %v2860 = vadd.f32 %v2548, %v2859
          %v2861 = vpop.f32.mrb[0].mxu0
          %2862 = vmatprep.mubr.bf16.mxu0 0
          %2863 = vmatmul.mubr.bf16.gmra.mrb[0].mxu0 %v2524
          %v2864 = vpop.f32.mrb[0].mxu0
          %v2865 = vadd.f32 %v2548, %v2864
          %v2866 = vpop.f32.mrb[0].mxu0
          %v2867 = vpop.f32.mrb[0].mxu0
          %v2868 = vadd.f32 %v2548, %v2867
          %v2869 = vpop.f32.mrb[0].mxu0
          %2870 = vmatprep.mubr.bf16.mxu0 0
          %2871 = vmatmul.mubr.bf16.gmra.mrb[0].mxu0 %v2525
          %v2872 = vpop.f32.mrb[0].mxu0
          %v2873 = vadd.f32 %v2548, %v2872
          %v2874 = vpop.f32.mrb[0].mxu0
          %v2875 = vpop.f32.mrb[0].mxu0
          %v2876 = vadd.f32 %v2548, %v2875
          %v2877 = vpop.f32.mrb[0].mxu0
          %2878 = vmatprep.mubr.bf16.mxu0 0
          %2879 = vmatmul.mubr.bf16.gmra.mrb[0].mxu0 %v2526
          %v2880 = vpop.f32.mrb[0].mxu0
          %v2881 = vadd.f32 %v2548, %v2880
          %v2882 = vpop.f32.mrb[0].mxu0
          %v2883 = vpop.f32.mrb[0].mxu0
          %v2884 = vadd.f32 %v2548, %v2883
          %v2885 = vpop.f32.mrb[0].mxu0
          %2886 = vdwg.mxu0
          %2887 = vst [vmem:[%s557] sm:$0xff] %v2633
          %2888 = vst [vmem:[%s557 + $0x8] sm:$0xff] %v2636
          %2889 = vst [vmem:[%s557 + $0x10] sm:$0xff] %v2641
          %2890 = vst [vmem:[%s557 + $0x18] sm:$0xff] %v2644
          %2891 = vst [vmem:[%s557 + $0x20] sm:$0xff] %v2649
          %2892 = vst [vmem:[%s557 + $0x28] sm:$0xff] %v2652
          %2893 = vst [vmem:[%s557 + $0x30] sm:$0xff] %v2657
          %2894 = vst [vmem:[%s557 + $0x38] sm:$0xff] %v2660
          %2895 = vst [vmem:[%s557 + $0x40] sm:$0xff] %v2665
          %2896 = vst [vmem:[%s557 + $0x48] sm:$0xff] %v2668
          %2897 = vst [vmem:[%s557 + $0x50] sm:$0xff] %v2673
          %2898 = vst [vmem:[%s557 + $0x58] sm:$0xff] %v2676
          %2899 = vst [vmem:[%s557 + $0x60] sm:$0xff] %v2681
          %2900 = vst [vmem:[%s557 + $0x68] sm:$0xff] %v2684
          %2901 = vst [vmem:[%s557 + $0x70] sm:$0xff] %v2689
          %2902 = vst [vmem:[%s557 + $0x78] sm:$0xff] %v2692
          %2903 = vst [vmem:[%s557 + $0x80] sm:$0xff] %v2697
          %2904 = vst [vmem:[%s557 + $0x88] sm:$0xff] %v2700
          %2905 = vst [vmem:[%s557 + $0x90] sm:$0xff] %v2705
          %2906 = vst [vmem:[%s557 + $0x98] sm:$0xff] %v2708
          %2907 = vst [vmem:[%s557 + $0xa0] sm:$0xff] %v2713
          %2908 = vst [vmem:[%s557 + $0xa8] sm:$0xff] %v2716
          %2909 = vst [vmem:[%s557 + $0xb0] sm:$0xff] %v2721
          %2910 = vst [vmem:[%s557 + $0xb8] sm:$0xff] %v2724
          %2911 = vst [vmem:[%s557 + $0xc0] sm:$0xff] %v2729
          %2912 = vst [vmem:[%s557 + $0xc8] sm:$0xff] %v2732
          %2913 = vst [vmem:[%s557 + $0xd0] sm:$0xff] %v2737
          %2914 = vst [vmem:[%s557 + $0xd8] sm:$0xff] %v2740
          %2915 = vst [vmem:[%s557 + $0xe0] sm:$0xff] %v2745
          %2916 = vst [vmem:[%s557 + $0xe8] sm:$0xff] %v2748
          %2917 = vst [vmem:[%s557 + $0xf0] sm:$0xff] %v2753
          %2918 = vst [vmem:[%s557 + $0xf8] sm:$0xff] %v2756
          %2919 = vst [vmem:[%s557 + $0x100] sm:$0xff] %v2761
          %2920 = vst [vmem:[%s557 + $0x108] sm:$0xff] %v2764
          %2921 = vst [vmem:[%s557 + $0x110] sm:$0xff] %v2769
          %2922 = vst [vmem:[%s557 + $0x118] sm:$0xff] %v2772
          %2923 = vst [vmem:[%s557 + $0x120] sm:$0xff] %v2777
          %2924 = vst [vmem:[%s557 + $0x128] sm:$0xff] %v2780
          %2925 = vst [vmem:[%s557 + $0x130] sm:$0xff] %v2785
          %2926 = vst [vmem:[%s557 + $0x138] sm:$0xff] %v2788
          %2927 = vst [vmem:[%s557 + $0x140] sm:$0xff] %v2793
          %2928 = vst [vmem:[%s557 + $0x148] sm:$0xff] %v2796
          %2929 = vst [vmem:[%s557 + $0x150] sm:$0xff] %v2801
          %2930 = vst [vmem:[%s557 + $0x158] sm:$0xff] %v2804
          %2931 = vst [vmem:[%s557 + $0x160] sm:$0xff] %v2809
          %2932 = vst [vmem:[%s557 + $0x168] sm:$0xff] %v2812
          %2933 = vst [vmem:[%s557 + $0x170] sm:$0xff] %v2817
          %2934 = vst [vmem:[%s557 + $0x178] sm:$0xff] %v2820
          %2935 = vst [vmem:[%s557 + $0x180] sm:$0xff] %v2825
          %2936 = vst [vmem:[%s557 + $0x188] sm:$0xff] %v2828
          %2937 = vst [vmem:[%s557 + $0x190] sm:$0xff] %v2833
          %2938 = vst [vmem:[%s557 + $0x198] sm:$0xff] %v2836
          %2939 = vst [vmem:[%s557 + $0x1a0] sm:$0xff] %v2841
          %2940 = vst [vmem:[%s557 + $0x1a8] sm:$0xff] %v2844
          %2941 = vst [vmem:[%s557 + $0x1b0] sm:$0xff] %v2849
          %2942 = vst [vmem:[%s557 + $0x1b8] sm:$0xff] %v2852
          %2943 = vst [vmem:[%s557 + $0x1c0] sm:$0xff] %v2857
          %2944 = vst [vmem:[%s557 + $0x1c8] sm:$0xff] %v2860
          %2945 = vst [vmem:[%s557 + $0x1d0] sm:$0xff] %v2865
          %2946 = vst [vmem:[%s557 + $0x1d8] sm:$0xff] %v2868
          %2947 = vst [vmem:[%s557 + $0x1e0] sm:$0xff] %v2873
          %2948 = vst [vmem:[%s557 + $0x1e8] sm:$0xff] %v2876
          %2949 = vst [vmem:[%s557 + $0x1f0] sm:$0xff] %v2881
          %2950 = vst [vmem:[%s557 + $0x1f8] sm:$0xff] %v2884
        $region71: #{gcn_forward.3} parent=54 // pred_fallthru
          _
        %s2951 = smul.u32 64, %s31
        %p2952 = scmp.lt.s32.totalorder %s2951, 127
        %s2953 = scalar_select %p2952, %s2951, 127
        %s2954 = smul.addr %s2953, 8
        %s2955 = scalar_lea.vmem %s6, %s2954
        // Predicated region
        $region72: #{gcn_forward.3} parent=54 // pred_check
          %p2956 = pneg %p165
        $region73: #{gcn_forward.3} parent=54 // pred_check_branch
          %2958 = sbr.rel (%p2956) target = $region75
        $region74: #{gcn_forward.3} parent=54 // pred_region
          %s2959 = smul.u32 64, %s31
        $region75: #{gcn_forward.3} parent=54 // pred_fallthru
          _
      $region55: #{gcn_forward.3} parent=5 // pred_fallthru
        _
      %p2960 = scmp.le.s32.totalorder 2, %s22
      // Predicated region
      $region76: #{gcn_forward.3} parent=5 // pred_check
        %p2961 = pneg %p2960
      $region77: #{gcn_forward.3} parent=5 // pred_check_branch
        %2963 = sbr.rel (%p2961) target = $region79
      $region78: #{gcn_forward.3} parent=5 // pred_region
        %s2964 = ssub.s32 %s22, 2
        // Predicated region
        $region80: #{gcn_forward.3} parent=78 // pred_check
          %p2965 = pneg %p171
        $region81: #{gcn_forward.3} parent=78 // pred_check_branch
          %2967 = sbr.rel (%p2965) target = $region83
        $region82: #{gcn_forward.3} parent=78 // pred_region
          %s2968 = smul.u32 64, %s33
          %p2969 = scmp.lt.s32.totalorder %s2968, 127
          %s2970 = scalar_select %p2969, %s2968, 127
          %s2971 = smul.addr %s2970, 8
          %s2972 = scalar_lea.vmem %s6, %s2971
        $region83: #{gcn_forward.3} parent=78 // pred_fallthru
          _
      $region79: #{gcn_forward.3} parent=5 // pred_fallthru
        _
    $region6: #{gcn_forward.3} parent=1 // loop_footer
      %s26 = sadd.s32 1, %s22
    $region7: #{gcn_forward.3} parent=1 // loop_footer_branch
      %21 = sbr.rel target = $region3
    $region8: #{gcn_forward.3} parent=1 // loop_exit
      _

// kernel: gcn_forward.2
$region0: #{gcn_forward.2}
  #allocation0 [shape = 'u32[]', space=smem, size = 0x4, offset = 0x4, fixed_abs, tag = 'smem constant byte address 0x4 - core index']
  #allocation1 [shape = 'u32[144,128]{1,0:T(1,128)}', space=vmem, size = 0x12000, scoped, tag = 'internal scratch']
  #allocation2 [shape = 'f32[512,128]{1,0:T(8,128)}', space=vmem, size = 0x40000, scoped, tag = 'scratch operand']
  #allocation3 [shape = 's32[1]{0}', space=sflag, size = 0x4, scoped, tag = 'scoped memory for gcn_forward.2']
  #allocation4 [shape = 'u8[512]{0}', space=smem, size = 0x200, scoped, tag = 'prefetched SMEM operand 0']
  #allocation5 [shape = 'u8[512]{0}', space=smem, size = 0x200, scoped, tag = 'prefetched SMEM operand 1']
  %s0 = inlined_call_operand.hbm [shape: s32[2], index: 0, kind: input, shape index: {}]
  %s1 = inlined_call_operand.hbm [shape: s32[4], index: 1, kind: input, shape index: {}]
  %s2 = inlined_call_operand.hbm [shape: bf16[1024,1024], index: 2, kind: input, shape index: {}]
  %s3 = inlined_call_operand.vmem [shape: bf16[1024,128], index: 3, kind: input, shape index: {}]
  %s4 = inlined_call_operand.vmem [shape: bf16[128,128], index: 4, kind: input, shape index: {}]
  %s5 = inlined_call_operand.vmem [shape: f32[1,128], index: 5, kind: input, shape index: {}]
  %s6 = inlined_call_operand.vmem [shape: bf16[1024,128], index: 6, kind: output, shape index: {}]
  %s7 = sld [smem:[#allocation0]]
  $region65: #{gcn_forward.2} parent=0
    _
  %s9 = ssub.s32 1, %s7
  %s10 = scalar_select 0, %s9, %s7
  %12 = dma.hbm_to_smem %s0, 16, [#allocation4], [#allocation3]
  %14 = dma.hbm_to_smem %s1, 16, [#allocation5], [#allocation3]
  %15 = dma.done [#allocation3], 32
  %16 = sfence
  $region1: #{gcn_forward.2} parent=0
    #allocation6 [shape = 'u8[1048576]{0}', space=vmem, size = 0x100000, scoped, tag = 'input window, operand 2']
    #allocation7 [shape = 's32[2]{0}', space=sflag, size = 0x8, scoped, tag = 'scoped memory for gcn_forward.2']
    %17 = vsyncpa [#allocation7], 0
    %s18 = scalar_lea.sflag [#allocation7], 1
    %19 = vsyncpa %s18, 0
    loop: start=0, step=1, limit=6
    $region2: #{gcn_forward.2} parent=1 // loop_pre_header
      _
    $region3: #{gcn_forward.2} parent=1 // loop_header
      %s21 = sphi 0, %s25
      %p22 = scmp.ge.s32.totalorder %s21, 6
      %s28 = sphi 0, %s40
      %s29 = sphi 0, %s36
      %s30 = sphi 0, %s28
      %s31 = sphi 0, %s29
      %s32 = sphi 0, %s30
      %s33 = sphi 0, %s31
      %s51 = sphi 0, %s53
      %s54 = sphi 0, %s51
      %s55 = sphi 0, %s54
      %s71 = sphi 0, %s55
      %s83 = sphi 0, %s85
      %s86 = sphi 0, %s83
      %s87 = sphi 0, %s86
      %s103 = sphi 0, %s87
      %s107 = sphi 0, %s107
      %s109 = sphi 0, %s107
      %s110 = sphi 0, %s109
      %s124 = sphi 0, %s110
      %s128 = sphi 0, %s128
      %s130 = sphi 0, %s128
      %s131 = sphi 0, %s130
      %s145 = sphi 0, %s131
      %s151 = sphi 0, %s153
      %s154 = sphi 0, %s151
      %s155 = sphi 0, %s154
      %s171 = sphi 0, %s155
    $region4: #{gcn_forward.2} parent=1 // loop_header_branch
      %24 = sbr.rel (%p22) target = $region8
    $region5: #{gcn_forward.2} parent=1 // loop_body
      %s26 = ssub.s32 %s21, 1
      %s27 = ssub.s32 %s21, 2
      %s34 = sadd.s32 1, %s29
      %p35 = scmp.ge.s32.totalorder %s34, 2
      %s36 = scalar_select %p35, 0, %s34
      %s37 = sadd.s32 1, %s28
      %s38 = scalar_select %p35, %s37, %s28
      %p39 = scmp.ge.s32.totalorder %s38, 2
      %s40 = scalar_select %p39, 0, %s38
      %s41 = smul.u32 %s28, 2
      %s42 = sadd.s32 %s41, %s29
      %s43 = sld [smem:[#allocation5 + %s42]]
      %s44 = smul.u32 %s40, 2
      %s45 = sadd.s32 %s44, %s36
      %s46 = sld [smem:[#allocation5 + %s45]]
      %s47 = ssub.s32 %s28, %s40
      %s48 = ssub.s32 %s43, %s46
      %s49 = sor.u32 %s47, %s48
      %p50 = scmp.eq.s32.totalorder %s49, 0
      %s52 = sadd.s32 %s51, 1
      %s53 = scalar_select %p50, %s51, %s52
      %p56 = pneg %p50
      %p57 = scmp.eq.s32.totalorder %s21, 3
      %p58 = por %p56, %p57
      %p59 = scmp.ne.s32.totalorder %s51, %s54
      %p60 = scmp.eq.s32.totalorder %s21, 0
      %p61 = por %p59, %p60
      %p62 = scmp.ne.s32.totalorder %s51, %s54
      %p63 = scmp.eq.s32.totalorder %s26, 3
      %p64 = por %p62, %p63
      %p65 = scmp.ne.s32.totalorder %s54, %s55
      %p66 = scmp.eq.s32.totalorder %s26, 0
      %p67 = por %p65, %p66
      %p68 = scmp.ne.s32.totalorder %s54, %s55
      %p69 = scmp.eq.s32.totalorder %s27, 3
      %p70 = por %p68, %p69
      %p72 = scmp.ne.s32.totalorder %s55, %s71
      %p73 = scmp.eq.s32.totalorder %s27, 0
      %p74 = por %p72, %p73
      %s75 = smul.u32 %s28, 2
      %s76 = sadd.s32 %s75, %s29
      %s77 = sld [smem:[#allocation5 + %s76]]
      %s78 = smul.u32 %s40, 2
      %s79 = sadd.s32 %s78, %s36
      %s80 = sld [smem:[#allocation5 + %s79]]
      %s81 = ssub.s32 %s77, %s80
      %p82 = scmp.eq.s32.totalorder %s81, 0
      %s84 = sadd.s32 %s83, 1
      %s85 = scalar_select %p82, %s83, %s84
      %p88 = pneg %p82
      %p89 = scmp.eq.s32.totalorder %s21, 3
      %p90 = por %p88, %p89
      %p91 = scmp.ne.s32.totalorder %s83, %s86
      %p92 = scmp.eq.s32.totalorder %s21, 0
      %p93 = por %p91, %p92
      %p94 = scmp.ne.s32.totalorder %s83, %s86
      %p95 = scmp.eq.s32.totalorder %s26, 3
      %p96 = por %p94, %p95
      %p97 = scmp.ne.s32.totalorder %s86, %s87
      %p98 = scmp.eq.s32.totalorder %s26, 0
      %p99 = por %p97, %p98
      %p100 = scmp.ne.s32.totalorder %s86, %s87
      %p101 = scmp.eq.s32.totalorder %s27, 3
      %p102 = por %p100, %p101
      %p104 = scmp.ne.s32.totalorder %s87, %s103
      %p105 = scmp.eq.s32.totalorder %s27, 0
      %p106 = por %p104, %p105
      %s108 = sadd.s32 %s107, 1
      %p111 = scmp.eq.s32.totalorder %s21, 3
      %p112 = scmp.ne.s32.totalorder %s107, %s109
      %p113 = scmp.eq.s32.totalorder %s21, 0
      %p114 = por %p112, %p113
      %p115 = scmp.ne.s32.totalorder %s107, %s109
      %p116 = scmp.eq.s32.totalorder %s26, 3
      %p117 = por %p115, %p116
      %p118 = scmp.ne.s32.totalorder %s109, %s110
      %p119 = scmp.eq.s32.totalorder %s26, 0
      %p120 = por %p118, %p119
      %p121 = scmp.ne.s32.totalorder %s109, %s110
      %p122 = scmp.eq.s32.totalorder %s27, 3
      %p123 = por %p121, %p122
      %p125 = scmp.ne.s32.totalorder %s110, %s124
      %p126 = scmp.eq.s32.totalorder %s27, 0
      %p127 = por %p125, %p126
      %s129 = sadd.s32 %s128, 1
      %p132 = scmp.eq.s32.totalorder %s21, 3
      %p133 = scmp.ne.s32.totalorder %s128, %s130
      %p134 = scmp.eq.s32.totalorder %s21, 0
      %p135 = por %p133, %p134
      %p136 = scmp.ne.s32.totalorder %s128, %s130
      %p137 = scmp.eq.s32.totalorder %s26, 3
      %p138 = por %p136, %p137
      %p139 = scmp.ne.s32.totalorder %s130, %s131
      %p140 = scmp.eq.s32.totalorder %s26, 0
      %p141 = por %p139, %p140
      %p142 = scmp.ne.s32.totalorder %s130, %s131
      %p143 = scmp.eq.s32.totalorder %s27, 3
      %p144 = por %p142, %p143
      %p146 = scmp.ne.s32.totalorder %s131, %s145
      %p147 = scmp.eq.s32.totalorder %s27, 0
      %p148 = por %p146, %p147
      %s149 = ssub.s32 %s28, %s40
      %p150 = scmp.eq.s32.totalorder %s149, 0
      %s152 = sadd.s32 %s151, 1
      %s153 = scalar_select %p150, %s151, %s152
      %p156 = pneg %p150
      %p157 = scmp.eq.s32.totalorder %s21, 3
      %p158 = por %p156, %p157
      %p159 = scmp.ne.s32.totalorder %s151, %s154
      %p160 = scmp.eq.s32.totalorder %s21, 0
      %p161 = por %p159, %p160
      %p162 = scmp.ne.s32.totalorder %s151, %s154
      %p163 = scmp.eq.s32.totalorder %s26, 3
      %p164 = por %p162, %p163
      %p165 = scmp.ne.s32.totalorder %s154, %s155
      %p166 = scmp.eq.s32.totalorder %s26, 0
      %p167 = por %p165, %p166
      %p168 = scmp.ne.s32.totalorder %s154, %s155
      %p169 = scmp.eq.s32.totalorder %s27, 3
      %p170 = por %p168, %p169
      %p172 = scmp.ne.s32.totalorder %s155, %s171
      %p173 = scmp.eq.s32.totalorder %s27, 0
      %p174 = por %p172, %p173
      %p175 = scmp.le.s32.totalorder 1, %s21
      %p176 = scmp.lt.s32.totalorder %s21, 5
      %p177 = pnand %p175, %p176
      %p178 = pneg %p177
      // Predicated region
      $region9: #{gcn_forward.2} parent=5 // pred_check
        _
      $region10: #{gcn_forward.2} parent=5 // pred_check_branch
        %180 = sbr.rel (%p177) target = $region12
      $region11: #{gcn_forward.2} parent=5 // pred_region
        %s181 = ssub.s32 %s21, 1
        // Predicated region
        $region13: #{gcn_forward.2} parent=11 // pred_check
          %p182 = pneg %p120
        $region14: #{gcn_forward.2} parent=11 // pred_check_branch
          %184 = sbr.rel (%p182) target = $region16
        $region15: #{gcn_forward.2} parent=11 // pred_region
          _
        $region16: #{gcn_forward.2} parent=11 // pred_fallthru
          _
        // Predicated region
        $region17: #{gcn_forward.2} parent=11 // pred_check
          %p185 = pneg %p141
        $region18: #{gcn_forward.2} parent=11 // pred_check_branch
          %187 = sbr.rel (%p185) target = $region20
        $region19: #{gcn_forward.2} parent=11 // pred_region
          _
        $region20: #{gcn_forward.2} parent=11 // pred_fallthru
          _
      $region12: #{gcn_forward.2} parent=5 // pred_fallthru
        _
      %p188 = scmp.lt.s32.totalorder %s21, 4
      // Predicated region
      $region21: #{gcn_forward.2} parent=5 // pred_check
        %p189 = pneg %p188
      $region22: #{gcn_forward.2} parent=5 // pred_check_branch
        %191 = sbr.rel (%p189) target = $region24
      $region23: #{gcn_forward.2} parent=5 // pred_region
        // Predicated region
        $region25: #{gcn_forward.2} parent=23 // pred_check
          %p192 = pneg %p61
        $region26: #{gcn_forward.2} parent=23 // pred_check_branch
          %194 = sbr.rel (%p192) target = $region28
        $region27: #{gcn_forward.2} parent=23 // pred_region
          %s195 = sand.u32 %s51, 1
          %s196 = scalar_lea.sflag [#allocation7], %s195
          %s197 = sand.u32 %s51, 1
          %s198 = smul.addr %s197, 1024
          %s199 = scalar_lea.vmem [#allocation6], %s198
          %s200 = smul.u32 %s28, 2
          %s201 = sadd.s32 %s200, %s29
          %s202 = sld [smem:[#allocation5 + %s201]]
          %s203 = smul.u32 64, %s28
          %s204 = smul.u32 4, %s202
          %s206 = ssub.s32 16384, 16384
          %207 = vsyncadd %s196, %s206
          %s208 = smul.addr %s203, 8
          %s209 = sadd.s32 %s204, %s208
          %s210 = smul.addr %s209, 64
          %s211 = scalar_lea.hbm %s2, %s210
          %s212 = sshll.u32 %s199, 4
          %s213 = int_to_ptr.vmem [resolvable:$true] %s212
          %218 = dma.hbm_to_vmem [thread:$0]  %s211, 16384, %s213, %s196, 512, 256, 16
        $region28: #{gcn_forward.2} parent=23 // pred_fallthru
          _
        // Predicated region
        $region29: #{gcn_forward.2} parent=23 // pred_check
          %p219 = pneg %p93
        $region30: #{gcn_forward.2} parent=23 // pred_check_branch
          %221 = sbr.rel (%p219) target = $region32
        $region31: #{gcn_forward.2} parent=23 // pred_region
          %s222 = smul.u32 %s28, 2
          %s223 = sadd.s32 %s222, %s29
          %s224 = sld [smem:[#allocation5 + %s223]]
          %s225 = smul.u32 64, %s224
          %p226 = scmp.lt.s32.totalorder %s225, 127
          %s227 = scalar_select %p226, %s225, 127
          %s228 = smul.addr %s227, 4
          %s229 = scalar_lea.vmem %s3, %s228
          %s230 = smul.u32 %s28, 2
          %s231 = sadd.s32 %s230, %s29
          %s232 = sld [smem:[#allocation5 + %s231]]
          %s233 = smul.u32 64, %s232
        $region32: #{gcn_forward.2} parent=23 // pred_fallthru
          _
      $region24: #{gcn_forward.2} parent=5 // pred_fallthru
        _
      %p234 = scmp.le.s32.totalorder 1, %s21
      %p235 = scmp.lt.s32.totalorder %s21, 5
      %p236 = pnand %p234, %p235
      %p237 = pneg %p236
      // Predicated region
      $region33: #{gcn_forward.2} parent=5 // pred_check
        _
      $region34: #{gcn_forward.2} parent=5 // pred_check_branch
        %239 = sbr.rel (%p236) target = $region36
      $region35: #{gcn_forward.2} parent=5 // pred_region
        %s240 = ssub.s32 %s21, 1
        %s241 = sand.u32 %s54, 1
        %s242 = scalar_lea.sflag [#allocation7], %s241
        %s243 = sand.u32 %s54, 1
        %s244 = smul.addr %s243, 1024
        %s245 = scalar_lea.vmem [#allocation6], %s244
        // Predicated region
        $region37: #{gcn_forward.2} parent=35 // pred_check
          %p246 = pneg %p67
        $region38: #{gcn_forward.2} parent=35 // pred_check_branch
          %248 = sbr.rel (%p246) target = $region40
        $region39: #{gcn_forward.2} parent=35 // pred_region
          %249 = dma.done %s242, 16384
        $region40: #{gcn_forward.2} parent=35 // pred_fallthru
          _
        %s250 = sand.u32 %s54, 1
        %s251 = scalar_lea.sflag [#allocation7], %s250
        %s252 = sand.u32 %s54, 1
        %s253 = smul.addr %s252, 1024
        %s254 = scalar_lea.vmem [#allocation6], %s253
        %p255 = pneg %p67
        %p256 = pneg %p64
        %s257 = smul.u32 %s30, 2
        %s258 = sadd.s32 %s257, %s31
        %s259 = sld [smem:[#allocation5 + %s258]]
        %s260 = smul.u32 64, %s259
        %p261 = scmp.lt.s32.totalorder %s260, 127
        %s262 = scalar_select %p261, %s260, 127
        %s263 = smul.addr %s262, 4
        %s264 = scalar_lea.vmem %s3, %s263
        %p265 = pneg %p99
        %p266 = pneg %p96
        %p267 = pneg %p120
        %p268 = pneg %p117
        %p269 = pneg %p141
        %p270 = pneg %p138
        %p271 = pneg %p167
        %p272 = pneg %p164
        %s273 = smul.u32 64, %s30
        %p274 = scmp.lt.s32.totalorder %s273, 127
        %s275 = scalar_select %p274, %s273, 127
        %s276 = smul.addr %s275, 4
        %s277 = scalar_lea.vmem %s6, %s276
        %s278 = smul.u32 %s30, 2
        %s279 = sadd.s32 %s278, %s31
        %s280 = sld [smem:[#allocation5 + %s279]]
        %s281 = smul.u32 64, %s30
        %s282 = smul.u32 4, %s280
        %s283 = smul.u32 %s30, 2
        %s284 = sadd.s32 %s283, %s31
        %s285 = sld [smem:[#allocation5 + %s284]]
        %s286 = smul.u32 64, %s285
        %p287 = scmp.lt.s32.totalorder %s286, 127
        %s288 = scalar_select %p287, %s286, 127
        %s289 = smul.addr %s288, 4
        %s290 = scalar_lea.vmem %s3, %s289
        %s291 = smul.u32 %s30, 2
        %s292 = sadd.s32 %s291, %s31
        %s293 = sld [smem:[#allocation5 + %s292]]
        %s294 = smul.u32 64, %s293
        %s295 = smul.u32 64, %s30
        %p296 = scmp.lt.s32.totalorder %s295, 127
        %s297 = scalar_select %p296, %s295, 127
        %s298 = smul.addr %s297, 4
        %s299 = scalar_lea.vmem %s6, %s298
        %s300 = smul.u32 64, %s30
        %p302 = scmp.eq.s32.totalorder %s31, 0
        // Predicated region
        $region41: #{gcn_forward.2} parent=35 // pred_check
          %p303 = pneg %p302
        $region42: #{gcn_forward.2} parent=35 // pred_check_branch
          %305 = sbr.rel (%p303) target = $region44
        $region43: #{gcn_forward.2} parent=35 // pred_region
          %306 = vst [vmem:[#allocation2] sm:$0xff] 0.0
          %307 = vst [vmem:[#allocation2 + $0x8] sm:$0xff] 0.0
          %308 = vst [vmem:[#allocation2 + $0x10] sm:$0xff] 0.0
          %309 = vst [vmem:[#allocation2 + $0x18] sm:$0xff] 0.0
          %310 = vst [vmem:[#allocation2 + $0x20] sm:$0xff] 0.0
          %311 = vst [vmem:[#allocation2 + $0x28] sm:$0xff] 0.0
          %312 = vst [vmem:[#allocation2 + $0x30] sm:$0xff] 0.0
          %313 = vst [vmem:[#allocation2 + $0x38] sm:$0xff] 0.0
          %314 = vst [vmem:[#allocation2 + $0x40] sm:$0xff] 0.0
          %315 = vst [vmem:[#allocation2 + $0x48] sm:$0xff] 0.0
          %316 = vst [vmem:[#allocation2 + $0x50] sm:$0xff] 0.0
          %317 = vst [vmem:[#allocation2 + $0x58] sm:$0xff] 0.0
          %318 = vst [vmem:[#allocation2 + $0x60] sm:$0xff] 0.0
          %319 = vst [vmem:[#allocation2 + $0x68] sm:$0xff] 0.0
          %320 = vst [vmem:[#allocation2 + $0x70] sm:$0xff] 0.0
          %321 = vst [vmem:[#allocation2 + $0x78] sm:$0xff] 0.0
          %322 = vst [vmem:[#allocation2 + $0x80] sm:$0xff] 0.0
          %323 = vst [vmem:[#allocation2 + $0x88] sm:$0xff] 0.0
          %324 = vst [vmem:[#allocation2 + $0x90] sm:$0xff] 0.0
          %325 = vst [vmem:[#allocation2 + $0x98] sm:$0xff] 0.0
          %326 = vst [vmem:[#allocation2 + $0xa0] sm:$0xff] 0.0
          %327 = vst [vmem:[#allocation2 + $0xa8] sm:$0xff] 0.0
          %328 = vst [vmem:[#allocation2 + $0xb0] sm:$0xff] 0.0
          %329 = vst [vmem:[#allocation2 + $0xb8] sm:$0xff] 0.0
          %330 = vst [vmem:[#allocation2 + $0xc0] sm:$0xff] 0.0
          %331 = vst [vmem:[#allocation2 + $0xc8] sm:$0xff] 0.0
          %332 = vst [vmem:[#allocation2 + $0xd0] sm:$0xff] 0.0
          %333 = vst [vmem:[#allocation2 + $0xd8] sm:$0xff] 0.0
          %334 = vst [vmem:[#allocation2 + $0xe0] sm:$0xff] 0.0
          %335 = vst [vmem:[#allocation2 + $0xe8] sm:$0xff] 0.0
          %336 = vst [vmem:[#allocation2 + $0xf0] sm:$0xff] 0.0
          %337 = vst [vmem:[#allocation2 + $0xf8] sm:$0xff] 0.0
          %338 = vst [vmem:[#allocation2 + $0x100] sm:$0xff] 0.0
          %339 = vst [vmem:[#allocation2 + $0x108] sm:$0xff] 0.0
          %340 = vst [vmem:[#allocation2 + $0x110] sm:$0xff] 0.0
          %341 = vst [vmem:[#allocation2 + $0x118] sm:$0xff] 0.0
          %342 = vst [vmem:[#allocation2 + $0x120] sm:$0xff] 0.0
          %343 = vst [vmem:[#allocation2 + $0x128] sm:$0xff] 0.0
          %344 = vst [vmem:[#allocation2 + $0x130] sm:$0xff] 0.0
          %345 = vst [vmem:[#allocation2 + $0x138] sm:$0xff] 0.0
          %346 = vst [vmem:[#allocation2 + $0x140] sm:$0xff] 0.0
          %347 = vst [vmem:[#allocation2 + $0x148] sm:$0xff] 0.0
          %348 = vst [vmem:[#allocation2 + $0x150] sm:$0xff] 0.0
          %349 = vst [vmem:[#allocation2 + $0x158] sm:$0xff] 0.0
          %350 = vst [vmem:[#allocation2 + $0x160] sm:$0xff] 0.0
          %351 = vst [vmem:[#allocation2 + $0x168] sm:$0xff] 0.0
          %352 = vst [vmem:[#allocation2 + $0x170] sm:$0xff] 0.0
          %353 = vst [vmem:[#allocation2 + $0x178] sm:$0xff] 0.0
          %354 = vst [vmem:[#allocation2 + $0x180] sm:$0xff] 0.0
          %355 = vst [vmem:[#allocation2 + $0x188] sm:$0xff] 0.0
          %356 = vst [vmem:[#allocation2 + $0x190] sm:$0xff] 0.0
          %357 = vst [vmem:[#allocation2 + $0x198] sm:$0xff] 0.0
          %358 = vst [vmem:[#allocation2 + $0x1a0] sm:$0xff] 0.0
          %359 = vst [vmem:[#allocation2 + $0x1a8] sm:$0xff] 0.0
          %360 = vst [vmem:[#allocation2 + $0x1b0] sm:$0xff] 0.0
          %361 = vst [vmem:[#allocation2 + $0x1b8] sm:$0xff] 0.0
          %362 = vst [vmem:[#allocation2 + $0x1c0] sm:$0xff] 0.0
          %363 = vst [vmem:[#allocation2 + $0x1c8] sm:$0xff] 0.0
          %364 = vst [vmem:[#allocation2 + $0x1d0] sm:$0xff] 0.0
          %365 = vst [vmem:[#allocation2 + $0x1d8] sm:$0xff] 0.0
          %366 = vst [vmem:[#allocation2 + $0x1e0] sm:$0xff] 0.0
          %367 = vst [vmem:[#allocation2 + $0x1e8] sm:$0xff] 0.0
          %368 = vst [vmem:[#allocation2 + $0x1f0] sm:$0xff] 0.0
          %369 = vst [vmem:[#allocation2 + $0x1f8] sm:$0xff] 0.0
        $region44: #{gcn_forward.2} parent=35 // pred_fallthru
          _
        %s370 = sld [smem:[#allocation4 + %s30]]
        %p371 = scmp.lt.s32.totalorder %s31, %s370
        // Predicated region
        $region45: #{gcn_forward.2} parent=35 // pred_check
          %p372 = pneg %p371
        $region46: #{gcn_forward.2} parent=35 // pred_check_branch
          %374 = sbr.rel (%p372) target = $region48
        $region47: #{gcn_forward.2} parent=35 // pred_region
          %v375 = vld [vmem:[#allocation2] sm:$0xff]
          %v376 = vld [vmem:[#allocation2 + $0x8] sm:$0xff]
          %v377 = vld [vmem:[#allocation2 + $0x10] sm:$0xff]
          %v378 = vld [vmem:[#allocation2 + $0x18] sm:$0xff]
          %v379 = vld [vmem:[#allocation2 + $0x20] sm:$0xff]
          %v380 = vld [vmem:[#allocation2 + $0x28] sm:$0xff]
          %v381 = vld [vmem:[#allocation2 + $0x30] sm:$0xff]
          %v382 = vld [vmem:[#allocation2 + $0x38] sm:$0xff]
          %v383 = vld [vmem:[#allocation2 + $0x40] sm:$0xff]
          %v384 = vld [vmem:[#allocation2 + $0x48] sm:$0xff]
          %v385 = vld [vmem:[#allocation2 + $0x50] sm:$0xff]
          %v386 = vld [vmem:[#allocation2 + $0x58] sm:$0xff]
          %v387 = vld [vmem:[#allocation2 + $0x60] sm:$0xff]
          %v388 = vld [vmem:[#allocation2 + $0x68] sm:$0xff]
          %v389 = vld [vmem:[#allocation2 + $0x70] sm:$0xff]
          %v390 = vld [vmem:[#allocation2 + $0x78] sm:$0xff]
          %v391 = vld [vmem:[#allocation2 + $0x80] sm:$0xff]
          %v392 = vld [vmem:[#allocation2 + $0x88] sm:$0xff]
          %v393 = vld [vmem:[#allocation2 + $0x90] sm:$0xff]
          %v394 = vld [vmem:[#allocation2 + $0x98] sm:$0xff]
          %v395 = vld [vmem:[#allocation2 + $0xa0] sm:$0xff]
          %v396 = vld [vmem:[#allocation2 + $0xa8] sm:$0xff]
          %v397 = vld [vmem:[#allocation2 + $0xb0] sm:$0xff]
          %v398 = vld [vmem:[#allocation2 + $0xb8] sm:$0xff]
          %v399 = vld [vmem:[#allocation2 + $0xc0] sm:$0xff]
          %v400 = vld [vmem:[#allocation2 + $0xc8] sm:$0xff]
          %v401 = vld [vmem:[#allocation2 + $0xd0] sm:$0xff]
          %v402 = vld [vmem:[#allocation2 + $0xd8] sm:$0xff]
          %v403 = vld [vmem:[#allocation2 + $0xe0] sm:$0xff]
          %v404 = vld [vmem:[#allocation2 + $0xe8] sm:$0xff]
          %v405 = vld [vmem:[#allocation2 + $0xf0] sm:$0xff]
          %v406 = vld [vmem:[#allocation2 + $0xf8] sm:$0xff]
          %v407 = vld [vmem:[#allocation2 + $0x100] sm:$0xff]
          %v408 = vld [vmem:[#allocation2 + $0x108] sm:$0xff]
          %v409 = vld [vmem:[#allocation2 + $0x110] sm:$0xff]
          %v410 = vld [vmem:[#allocation2 + $0x118] sm:$0xff]
          %v411 = vld [vmem:[#allocation2 + $0x120] sm:$0xff]
          %v412 = vld [vmem:[#allocation2 + $0x128] sm:$0xff]
          %v413 = vld [vmem:[#allocation2 + $0x130] sm:$0xff]
          %v414 = vld [vmem:[#allocation2 + $0x138] sm:$0xff]
          %v415 = vld [vmem:[#allocation2 + $0x140] sm:$0xff]
          %v416 = vld [vmem:[#allocation2 + $0x148] sm:$0xff]
          %v417 = vld [vmem:[#allocation2 + $0x150] sm:$0xff]
          %v418 = vld [vmem:[#allocation2 + $0x158] sm:$0xff]
          %v419 = vld [vmem:[#allocation2 + $0x160] sm:$0xff]
          %v420 = vld [vmem:[#allocation2 + $0x168] sm:$0xff]
          %v421 = vld [vmem:[#allocation2 + $0x170] sm:$0xff]
          %v422 = vld [vmem:[#allocation2 + $0x178] sm:$0xff]
          %v423 = vld [vmem:[#allocation2 + $0x180] sm:$0xff]
          %v424 = vld [vmem:[#allocation2 + $0x188] sm:$0xff]
          %v425 = vld [vmem:[#allocation2 + $0x190] sm:$0xff]
          %v426 = vld [vmem:[#allocation2 + $0x198] sm:$0xff]
          %v427 = vld [vmem:[#allocation2 + $0x1a0] sm:$0xff]
          %v428 = vld [vmem:[#allocation2 + $0x1a8] sm:$0xff]
          %v429 = vld [vmem:[#allocation2 + $0x1b0] sm:$0xff]
          %v430 = vld [vmem:[#allocation2 + $0x1b8] sm:$0xff]
          %v431 = vld [vmem:[#allocation2 + $0x1c0] sm:$0xff]
          %v432 = vld [vmem:[#allocation2 + $0x1c8] sm:$0xff]
          %v433 = vld [vmem:[#allocation2 + $0x1d0] sm:$0xff]
          %v434 = vld [vmem:[#allocation2 + $0x1d8] sm:$0xff]
          %v435 = vld [vmem:[#allocation2 + $0x1e0] sm:$0xff]
          %v436 = vld [vmem:[#allocation2 + $0x1e8] sm:$0xff]
          %v437 = vld [vmem:[#allocation2 + $0x1f0] sm:$0xff]
          %v438 = vld [vmem:[#allocation2 + $0x1f8] sm:$0xff]
          %v439 = vld [vmem:[%s245] sm:$0xff]
          %v440 = vld [vmem:[%s245 + $0x8] sm:$0xff]
          %v441 = vld [vmem:[%s245 + $0x10] sm:$0xff]
          %v442 = vld [vmem:[%s245 + $0x18] sm:$0xff]
          %v443 = vld [vmem:[%s245 + $0x20] sm:$0xff]
          %v444 = vld [vmem:[%s245 + $0x28] sm:$0xff]
          %v445 = vld [vmem:[%s245 + $0x30] sm:$0xff]
          %v446 = vld [vmem:[%s245 + $0x38] sm:$0xff]
          %v447 = vld [vmem:[%s245 + $0x40] sm:$0xff]
          %v448 = vld [vmem:[%s245 + $0x48] sm:$0xff]
          %v449 = vld [vmem:[%s245 + $0x50] sm:$0xff]
          %v450 = vld [vmem:[%s245 + $0x58] sm:$0xff]
          %v451 = vld [vmem:[%s245 + $0x60] sm:$0xff]
          %v452 = vld [vmem:[%s245 + $0x68] sm:$0xff]
          %v453 = vld [vmem:[%s245 + $0x70] sm:$0xff]
          %v454 = vld [vmem:[%s245 + $0x78] sm:$0xff]
          %v455 = vld [vmem:[%s245 + $0x80] sm:$0xff]
          %v456 = vld [vmem:[%s245 + $0x88] sm:$0xff]
          %v457 = vld [vmem:[%s245 + $0x90] sm:$0xff]
          %v458 = vld [vmem:[%s245 + $0x98] sm:$0xff]
          %v459 = vld [vmem:[%s245 + $0xa0] sm:$0xff]
          %v460 = vld [vmem:[%s245 + $0xa8] sm:$0xff]
          %v461 = vld [vmem:[%s245 + $0xb0] sm:$0xff]
          %v462 = vld [vmem:[%s245 + $0xb8] sm:$0xff]
          %v463 = vld [vmem:[%s245 + $0xc0] sm:$0xff]
          %v464 = vld [vmem:[%s245 + $0xc8] sm:$0xff]
          %v465 = vld [vmem:[%s245 + $0xd0] sm:$0xff]
          %v466 = vld [vmem:[%s245 + $0xd8] sm:$0xff]
          %v467 = vld [vmem:[%s245 + $0xe0] sm:$0xff]
          %v468 = vld [vmem:[%s245 + $0xe8] sm:$0xff]
          %v469 = vld [vmem:[%s245 + $0xf0] sm:$0xff]
          %v470 = vld [vmem:[%s245 + $0xf8] sm:$0xff]
          %v471 = vld [vmem:[%s245 + $0x100] sm:$0xff]
          %v472 = vld [vmem:[%s245 + $0x108] sm:$0xff]
          %v473 = vld [vmem:[%s245 + $0x110] sm:$0xff]
          %v474 = vld [vmem:[%s245 + $0x118] sm:$0xff]
          %v475 = vld [vmem:[%s245 + $0x120] sm:$0xff]
          %v476 = vld [vmem:[%s245 + $0x128] sm:$0xff]
          %v477 = vld [vmem:[%s245 + $0x130] sm:$0xff]
          %v478 = vld [vmem:[%s245 + $0x138] sm:$0xff]
          %v479 = vld [vmem:[%s245 + $0x140] sm:$0xff]
          %v480 = vld [vmem:[%s245 + $0x148] sm:$0xff]
          %v481 = vld [vmem:[%s245 + $0x150] sm:$0xff]
          %v482 = vld [vmem:[%s245 + $0x158] sm:$0xff]
          %v483 = vld [vmem:[%s245 + $0x160] sm:$0xff]
          %v484 = vld [vmem:[%s245 + $0x168] sm:$0xff]
          %v485 = vld [vmem:[%s245 + $0x170] sm:$0xff]
          %v486 = vld [vmem:[%s245 + $0x178] sm:$0xff]
          %v487 = vld [vmem:[%s245 + $0x180] sm:$0xff]
          %v488 = vld [vmem:[%s245 + $0x188] sm:$0xff]
          %v489 = vld [vmem:[%s245 + $0x190] sm:$0xff]
          %v490 = vld [vmem:[%s245 + $0x198] sm:$0xff]
          %v491 = vld [vmem:[%s245 + $0x1a0] sm:$0xff]
          %v492 = vld [vmem:[%s245 + $0x1a8] sm:$0xff]
          %v493 = vld [vmem:[%s245 + $0x1b0] sm:$0xff]
          %v494 = vld [vmem:[%s245 + $0x1b8] sm:$0xff]
          %v495 = vld [vmem:[%s245 + $0x1c0] sm:$0xff]
          %v496 = vld [vmem:[%s245 + $0x1c8] sm:$0xff]
          %v497 = vld [vmem:[%s245 + $0x1d0] sm:$0xff]
          %v498 = vld [vmem:[%s245 + $0x1d8] sm:$0xff]
          %v499 = vld [vmem:[%s245 + $0x1e0] sm:$0xff]
          %v500 = vld [vmem:[%s245 + $0x1e8] sm:$0xff]
          %v501 = vld [vmem:[%s245 + $0x1f0] sm:$0xff]
          %v502 = vld [vmem:[%s245 + $0x1f8] sm:$0xff]
          %v503 = vld [vmem:[%s245 + $0x200] sm:$0xff]
          %v504 = vld [vmem:[%s245 + $0x208] sm:$0xff]
          %v505 = vld [vmem:[%s245 + $0x210] sm:$0xff]
          %v506 = vld [vmem:[%s245 + $0x218] sm:$0xff]
          %v507 = vld [vmem:[%s245 + $0x220] sm:$0xff]
          %v508 = vld [vmem:[%s245 + $0x228] sm:$0xff]
          %v509 = vld [vmem:[%s245 + $0x230] sm:$0xff]
          %v510 = vld [vmem:[%s245 + $0x238] sm:$0xff]
          %v511 = vld [vmem:[%s245 + $0x240] sm:$0xff]
          %v512 = vld [vmem:[%s245 + $0x248] sm:$0xff]
          %v513 = vld [vmem:[%s245 + $0x250] sm:$0xff]
          %v514 = vld [vmem:[%s245 + $0x258] sm:$0xff]
          %v515 = vld [vmem:[%s245 + $0x260] sm:$0xff]
          %v516 = vld [vmem:[%s245 + $0x268] sm:$0xff]
          %v517 = vld [vmem:[%s245 + $0x270] sm:$0xff]
          %v518 = vld [vmem:[%s245 + $0x278] sm:$0xff]
          %v519 = vld [vmem:[%s245 + $0x280] sm:$0xff]
          %v520 = vld [vmem:[%s245 + $0x288] sm:$0xff]
          %v521 = vld [vmem:[%s245 + $0x290] sm:$0xff]
          %v522 = vld [vmem:[%s245 + $0x298] sm:$0xff]
          %v523 = vld [vmem:[%s245 + $0x2a0] sm:$0xff]
          %v524 = vld [vmem:[%s245 + $0x2a8] sm:$0xff]
          %v525 = vld [vmem:[%s245 + $0x2b0] sm:$0xff]
          %v526 = vld [vmem:[%s245 + $0x2b8] sm:$0xff]
          %v527 = vld [vmem:[%s245 + $0x2c0] sm:$0xff]
          %v528 = vld [vmem:[%s245 + $0x2c8] sm:$0xff]
          %v529 = vld [vmem:[%s245 + $0x2d0] sm:$0xff]
          %v530 = vld [vmem:[%s245 + $0x2d8] sm:$0xff]
          %v531 = vld [vmem:[%s245 + $0x2e0] sm:$0xff]
          %v532 = vld [vmem:[%s245 + $0x2e8] sm:$0xff]
          %v533 = vld [vmem:[%s245 + $0x2f0] sm:$0xff]
          %v534 = vld [vmem:[%s245 + $0x2f8] sm:$0xff]
          %v535 = vld [vmem:[%s245 + $0x300] sm:$0xff]
          %v536 = vld [vmem:[%s245 + $0x308] sm:$0xff]
          %v537 = vld [vmem:[%s245 + $0x310] sm:$0xff]
          %v538 = vld [vmem:[%s245 + $0x318] sm:$0xff]
          %v539 = vld [vmem:[%s245 + $0x320] sm:$0xff]
          %v540 = vld [vmem:[%s245 + $0x328] sm:$0xff]
          %v541 = vld [vmem:[%s245 + $0x330] sm:$0xff]
          %v542 = vld [vmem:[%s245 + $0x338] sm:$0xff]
          %v543 = vld [vmem:[%s245 + $0x340] sm:$0xff]
          %v544 = vld [vmem:[%s245 + $0x348] sm:$0xff]
          %v545 = vld [vmem:[%s245 + $0x350] sm:$0xff]
          %v546 = vld [vmem:[%s245 + $0x358] sm:$0xff]
          %v547 = vld [vmem:[%s245 + $0x360] sm:$0xff]
          %v548 = vld [vmem:[%s245 + $0x368] sm:$0xff]
          %v549 = vld [vmem:[%s245 + $0x370] sm:$0xff]
          %v550 = vld [vmem:[%s245 + $0x378] sm:$0xff]
          %v551 = vld [vmem:[%s245 + $0x380] sm:$0xff]
          %v552 = vld [vmem:[%s245 + $0x388] sm:$0xff]
          %v553 = vld [vmem:[%s245 + $0x390] sm:$0xff]
          %v554 = vld [vmem:[%s245 + $0x398] sm:$0xff]
          %v555 = vld [vmem:[%s245 + $0x3a0] sm:$0xff]
          %v556 = vld [vmem:[%s245 + $0x3a8] sm:$0xff]
          %v557 = vld [vmem:[%s245 + $0x3b0] sm:$0xff]
          %v558 = vld [vmem:[%s245 + $0x3b8] sm:$0xff]
          %v559 = vld [vmem:[%s245 + $0x3c0] sm:$0xff]
          %v560 = vld [vmem:[%s245 + $0x3c8] sm:$0xff]
          %v561 = vld [vmem:[%s245 + $0x3d0] sm:$0xff]
          %v562 = vld [vmem:[%s245 + $0x3d8] sm:$0xff]
          %v563 = vld [vmem:[%s245 + $0x3e0] sm:$0xff]
          %v564 = vld [vmem:[%s245 + $0x3e8] sm:$0xff]
          %v565 = vld [vmem:[%s245 + $0x3f0] sm:$0xff]
          %v566 = vld [vmem:[%s245 + $0x3f8] sm:$0xff]
          %v567 = vld [vmem:[%s290] sm:$0xf]
          %v568 = vld [vmem:[%s290 + $0x4] sm:$0xf]
          %v569 = vld [vmem:[%s290 + $0x8] sm:$0xf]
          %v570 = vld [vmem:[%s290 + $0xc] sm:$0xf]
          %v571 = vld [vmem:[%s290 + $0x10] sm:$0xf]
          %v572 = vld [vmem:[%s290 + $0x14] sm:$0xf]
          %v573 = vld [vmem:[%s290 + $0x18] sm:$0xf]
          %v574 = vld [vmem:[%s290 + $0x1c] sm:$0xf]
          %v575 = vld [vmem:[%s290 + $0x20] sm:$0xf]
          %v576 = vld [vmem:[%s290 + $0x24] sm:$0xf]
          %v577 = vld [vmem:[%s290 + $0x28] sm:$0xf]
          %v578 = vld [vmem:[%s290 + $0x2c] sm:$0xf]
          %v579 = vld [vmem:[%s290 + $0x30] sm:$0xf]
          %v580 = vld [vmem:[%s290 + $0x34] sm:$0xf]
          %v581 = vld [vmem:[%s290 + $0x38] sm:$0xf]
          %v582 = vld [vmem:[%s290 + $0x3c] sm:$0xf]
          %v583 = vld [vmem:[%s290 + $0x40] sm:$0xf]
          %v584 = vld [vmem:[%s290 + $0x44] sm:$0xf]
          %v585 = vld [vmem:[%s290 + $0x48] sm:$0xf]
          %v586 = vld [vmem:[%s290 + $0x4c] sm:$0xf]
          %v587 = vld [vmem:[%s290 + $0x50] sm:$0xf]
          %v588 = vld [vmem:[%s290 + $0x54] sm:$0xf]
          %v589 = vld [vmem:[%s290 + $0x58] sm:$0xf]
          %v590 = vld [vmem:[%s290 + $0x5c] sm:$0xf]
          %v591 = vld [vmem:[%s290 + $0x60] sm:$0xf]
          %v592 = vld [vmem:[%s290 + $0x64] sm:$0xf]
          %v593 = vld [vmem:[%s290 + $0x68] sm:$0xf]
          %v594 = vld [vmem:[%s290 + $0x6c] sm:$0xf]
          %v595 = vld [vmem:[%s290 + $0x70] sm:$0xf]
          %v596 = vld [vmem:[%s290 + $0x74] sm:$0xf]
          %v597 = vld [vmem:[%s290 + $0x78] sm:$0xf]
          %v598 = vld [vmem:[%s290 + $0x7c] sm:$0xf]
          %v599 = vld [vmem:[%s290 + $0x80] sm:$0xf]
          %v600 = vld [vmem:[%s290 + $0x84] sm:$0xf]
          %v601 = vld [vmem:[%s290 + $0x88] sm:$0xf]
          %v602 = vld [vmem:[%s290 + $0x8c] sm:$0xf]
          %v603 = vld [vmem:[%s290 + $0x90] sm:$0xf]
          %v604 = vld [vmem:[%s290 + $0x94] sm:$0xf]
          %v605 = vld [vmem:[%s290 + $0x98] sm:$0xf]
          %v606 = vld [vmem:[%s290 + $0x9c] sm:$0xf]
          %v607 = vld [vmem:[%s290 + $0xa0] sm:$0xf]
          %v608 = vld [vmem:[%s290 + $0xa4] sm:$0xf]
          %v609 = vld [vmem:[%s290 + $0xa8] sm:$0xf]
          %v610 = vld [vmem:[%s290 + $0xac] sm:$0xf]
          %v611 = vld [vmem:[%s290 + $0xb0] sm:$0xf]
          %v612 = vld [vmem:[%s290 + $0xb4] sm:$0xf]
          %v613 = vld [vmem:[%s290 + $0xb8] sm:$0xf]
          %v614 = vld [vmem:[%s290 + $0xbc] sm:$0xf]
          %v615 = vld [vmem:[%s290 + $0xc0] sm:$0xf]
          %v616 = vld [vmem:[%s290 + $0xc4] sm:$0xf]
          %v617 = vld [vmem:[%s290 + $0xc8] sm:$0xf]
          %v618 = vld [vmem:[%s290 + $0xcc] sm:$0xf]
          %v619 = vld [vmem:[%s290 + $0xd0] sm:$0xf]
          %v620 = vld [vmem:[%s290 + $0xd4] sm:$0xf]
          %v621 = vld [vmem:[%s290 + $0xd8] sm:$0xf]
          %v622 = vld [vmem:[%s290 + $0xdc] sm:$0xf]
          %v623 = vld [vmem:[%s290 + $0xe0] sm:$0xf]
          %v624 = vld [vmem:[%s290 + $0xe4] sm:$0xf]
          %v625 = vld [vmem:[%s290 + $0xe8] sm:$0xf]
          %v626 = vld [vmem:[%s290 + $0xec] sm:$0xf]
          %v627 = vld [vmem:[%s290 + $0xf0] sm:$0xf]
          %v628 = vld [vmem:[%s290 + $0xf4] sm:$0xf]
          %v629 = vld [vmem:[%s290 + $0xf8] sm:$0xf]
          %v630 = vld [vmem:[%s290 + $0xfc] sm:$0xf]
          %v759 = vunpack.c.l.b16 %v439
          %v760 = vunpack.c.h.b16 %v439
          %v761 = vunpack.c.l.b16 %v440
          %v762 = vunpack.c.h.b16 %v440
          %v763 = vunpack.c.l.b16 %v441
          %v764 = vunpack.c.h.b16 %v441
          %v765 = vunpack.c.l.b16 %v442
          %v766 = vunpack.c.h.b16 %v442
          %v767 = vunpack.c.l.b16 %v443
          %v768 = vunpack.c.h.b16 %v443
          %v769 = vunpack.c.l.b16 %v444
          %v770 = vunpack.c.h.b16 %v444
          %v771 = vunpack.c.l.b16 %v445
          %v772 = vunpack.c.h.b16 %v445
          %v773 = vunpack.c.l.b16 %v446
          %v774 = vunpack.c.h.b16 %v446
          %v775 = vunpack.c.l.b16 %v447
          %v776 = vunpack.c.h.b16 %v447
          %v777 = vunpack.c.l.b16 %v448
          %v778 = vunpack.c.h.b16 %v448
          %v779 = vunpack.c.l.b16 %v449
          %v780 = vunpack.c.h.b16 %v449
          %v781 = vunpack.c.l.b16 %v450
          %v782 = vunpack.c.h.b16 %v450
          %v783 = vunpack.c.l.b16 %v451
          %v784 = vunpack.c.h.b16 %v451
          %v785 = vunpack.c.l.b16 %v452
          %v786 = vunpack.c.h.b16 %v452
          %v787 = vunpack.c.l.b16 %v453
          %v788 = vunpack.c.h.b16 %v453
          %v789 = vunpack.c.l.b16 %v454
          %v790 = vunpack.c.h.b16 %v454
          %v791 = vunpack.c.l.b16 %v455
          %v792 = vunpack.c.h.b16 %v455
          %v793 = vunpack.c.l.b16 %v456
          %v794 = vunpack.c.h.b16 %v456
          %v795 = vunpack.c.l.b16 %v457
          %v796 = vunpack.c.h.b16 %v457
          %v797 = vunpack.c.l.b16 %v458
          %v798 = vunpack.c.h.b16 %v458
          %v799 = vunpack.c.l.b16 %v459
          %v800 = vunpack.c.h.b16 %v459
          %v801 = vunpack.c.l.b16 %v460
          %v802 = vunpack.c.h.b16 %v460
          %v803 = vunpack.c.l.b16 %v461
          %v804 = vunpack.c.h.b16 %v461
          %v805 = vunpack.c.l.b16 %v462
          %v806 = vunpack.c.h.b16 %v462
          %v807 = vunpack.c.l.b16 %v463
          %v808 = vunpack.c.h.b16 %v463
          %v809 = vunpack.c.l.b16 %v464
          %v810 = vunpack.c.h.b16 %v464
          %v811 = vunpack.c.l.b16 %v465
          %v812 = vunpack.c.h.b16 %v465
          %v813 = vunpack.c.l.b16 %v466
          %v814 = vunpack.c.h.b16 %v466
          %v815 = vunpack.c.l.b16 %v467
          %v816 = vunpack.c.h.b16 %v467
          %v817 = vunpack.c.l.b16 %v468
          %v818 = vunpack.c.h.b16 %v468
          %v819 = vunpack.c.l.b16 %v469
          %v820 = vunpack.c.h.b16 %v469
          %v821 = vunpack.c.l.b16 %v470
          %v822 = vunpack.c.h.b16 %v470
          %v823 = vunpack.c.l.b16 %v471
          %v824 = vunpack.c.h.b16 %v471
          %v825 = vunpack.c.l.b16 %v472
          %v826 = vunpack.c.h.b16 %v472
          %v827 = vunpack.c.l.b16 %v473
          %v828 = vunpack.c.h.b16 %v473
          %v829 = vunpack.c.l.b16 %v474
          %v830 = vunpack.c.h.b16 %v474
          %v831 = vunpack.c.l.b16 %v475
          %v832 = vunpack.c.h.b16 %v475
          %v833 = vunpack.c.l.b16 %v476
          %v834 = vunpack.c.h.b16 %v476
          %v835 = vunpack.c.l.b16 %v477
          %v836 = vunpack.c.h.b16 %v477
          %v837 = vunpack.c.l.b16 %v478
          %v838 = vunpack.c.h.b16 %v478
          %v839 = vunpack.c.l.b16 %v479
          %v840 = vunpack.c.h.b16 %v479
          %v841 = vunpack.c.l.b16 %v480
          %v842 = vunpack.c.h.b16 %v480
          %v843 = vunpack.c.l.b16 %v481
          %v844 = vunpack.c.h.b16 %v481
          %v845 = vunpack.c.l.b16 %v482
          %v846 = vunpack.c.h.b16 %v482
          %v847 = vunpack.c.l.b16 %v483
          %v848 = vunpack.c.h.b16 %v483
          %v849 = vunpack.c.l.b16 %v484
          %v850 = vunpack.c.h.b16 %v484
          %v851 = vunpack.c.l.b16 %v485
          %v852 = vunpack.c.h.b16 %v485
          %v853 = vunpack.c.l.b16 %v486
          %v854 = vunpack.c.h.b16 %v486
          %v855 = vunpack.c.l.b16 %v487
          %v856 = vunpack.c.h.b16 %v487
          %v857 = vunpack.c.l.b16 %v488
          %v858 = vunpack.c.h.b16 %v488
          %v859 = vunpack.c.l.b16 %v489
          %v860 = vunpack.c.h.b16 %v489
          %v861 = vunpack.c.l.b16 %v490
          %v862 = vunpack.c.h.b16 %v490
          %v863 = vunpack.c.l.b16 %v491
          %v864 = vunpack.c.h.b16 %v491
          %v865 = vunpack.c.l.b16 %v492
          %v866 = vunpack.c.h.b16 %v492
          %v867 = vunpack.c.l.b16 %v493
          %v868 = vunpack.c.h.b16 %v493
          %v869 = vunpack.c.l.b16 %v494
          %v870 = vunpack.c.h.b16 %v494
          %v871 = vunpack.c.l.b16 %v495
          %v872 = vunpack.c.h.b16 %v495
          %v873 = vunpack.c.l.b16 %v496
          %v874 = vunpack.c.h.b16 %v496
          %v875 = vunpack.c.l.b16 %v497
          %v876 = vunpack.c.h.b16 %v497
          %v877 = vunpack.c.l.b16 %v498
          %v878 = vunpack.c.h.b16 %v498
          %v879 = vunpack.c.l.b16 %v499
          %v880 = vunpack.c.h.b16 %v499
          %v881 = vunpack.c.l.b16 %v500
          %v882 = vunpack.c.h.b16 %v500
          %v883 = vunpack.c.l.b16 %v501
          %v884 = vunpack.c.h.b16 %v501
          %v885 = vunpack.c.l.b16 %v502
          %v886 = vunpack.c.h.b16 %v502
          %v887 = vunpack.c.l.b16 %v503
          %v888 = vunpack.c.h.b16 %v503
          %v889 = vunpack.c.l.b16 %v504
          %v890 = vunpack.c.h.b16 %v504
          %v891 = vunpack.c.l.b16 %v505
          %v892 = vunpack.c.h.b16 %v505
          %v893 = vunpack.c.l.b16 %v506
          %v894 = vunpack.c.h.b16 %v506
          %v895 = vunpack.c.l.b16 %v507
          %v896 = vunpack.c.h.b16 %v507
          %v897 = vunpack.c.l.b16 %v508
          %v898 = vunpack.c.h.b16 %v508
          %v899 = vunpack.c.l.b16 %v509
          %v900 = vunpack.c.h.b16 %v509
          %v901 = vunpack.c.l.b16 %v510
          %v902 = vunpack.c.h.b16 %v510
          %v903 = vunpack.c.l.b16 %v511
          %v904 = vunpack.c.h.b16 %v511
          %v905 = vunpack.c.l.b16 %v512
          %v906 = vunpack.c.h.b16 %v512
          %v907 = vunpack.c.l.b16 %v513
          %v908 = vunpack.c.h.b16 %v513
          %v909 = vunpack.c.l.b16 %v514
          %v910 = vunpack.c.h.b16 %v514
          %v911 = vunpack.c.l.b16 %v515
          %v912 = vunpack.c.h.b16 %v515
          %v913 = vunpack.c.l.b16 %v516
          %v914 = vunpack.c.h.b16 %v516
          %v915 = vunpack.c.l.b16 %v517
          %v916 = vunpack.c.h.b16 %v517
          %v917 = vunpack.c.l.b16 %v518
          %v918 = vunpack.c.h.b16 %v518
          %v919 = vunpack.c.l.b16 %v519
          %v920 = vunpack.c.h.b16 %v519
          %v921 = vunpack.c.l.b16 %v520
          %v922 = vunpack.c.h.b16 %v520
          %v923 = vunpack.c.l.b16 %v521
          %v924 = vunpack.c.h.b16 %v521
          %v925 = vunpack.c.l.b16 %v522
          %v926 = vunpack.c.h.b16 %v522
          %v927 = vunpack.c.l.b16 %v523
          %v928 = vunpack.c.h.b16 %v523
          %v929 = vunpack.c.l.b16 %v524
          %v930 = vunpack.c.h.b16 %v524
          %v931 = vunpack.c.l.b16 %v525
          %v932 = vunpack.c.h.b16 %v525
          %v933 = vunpack.c.l.b16 %v526
          %v934 = vunpack.c.h.b16 %v526
          %v935 = vunpack.c.l.b16 %v527
          %v936 = vunpack.c.h.b16 %v527
          %v937 = vunpack.c.l.b16 %v528
          %v938 = vunpack.c.h.b16 %v528
          %v939 = vunpack.c.l.b16 %v529
          %v940 = vunpack.c.h.b16 %v529
          %v941 = vunpack.c.l.b16 %v530
          %v942 = vunpack.c.h.b16 %v530
          %v943 = vunpack.c.l.b16 %v531
          %v944 = vunpack.c.h.b16 %v531
          %v945 = vunpack.c.l.b16 %v532
          %v946 = vunpack.c.h.b16 %v532
          %v947 = vunpack.c.l.b16 %v533
          %v948 = vunpack.c.h.b16 %v533
          %v949 = vunpack.c.l.b16 %v534
          %v950 = vunpack.c.h.b16 %v534
          %v951 = vunpack.c.l.b16 %v535
          %v952 = vunpack.c.h.b16 %v535
          %v953 = vunpack.c.l.b16 %v536
          %v954 = vunpack.c.h.b16 %v536
          %v955 = vunpack.c.l.b16 %v537
          %v956 = vunpack.c.h.b16 %v537
          %v957 = vunpack.c.l.b16 %v538
          %v958 = vunpack.c.h.b16 %v538
          %v959 = vunpack.c.l.b16 %v539
          %v960 = vunpack.c.h.b16 %v539
          %v961 = vunpack.c.l.b16 %v540
          %v962 = vunpack.c.h.b16 %v540
          %v963 = vunpack.c.l.b16 %v541
          %v964 = vunpack.c.h.b16 %v541
          %v965 = vunpack.c.l.b16 %v542
          %v966 = vunpack.c.h.b16 %v542
          %v967 = vunpack.c.l.b16 %v543
          %v968 = vunpack.c.h.b16 %v543
          %v969 = vunpack.c.l.b16 %v544
          %v970 = vunpack.c.h.b16 %v544
          %v971 = vunpack.c.l.b16 %v545
          %v972 = vunpack.c.h.b16 %v545
          %v973 = vunpack.c.l.b16 %v546
          %v974 = vunpack.c.h.b16 %v546
          %v975 = vunpack.c.l.b16 %v547
          %v976 = vunpack.c.h.b16 %v547
          %v977 = vunpack.c.l.b16 %v548
          %v978 = vunpack.c.h.b16 %v548
          %v979 = vunpack.c.l.b16 %v549
          %v980 = vunpack.c.h.b16 %v549
          %v981 = vunpack.c.l.b16 %v550
          %v982 = vunpack.c.h.b16 %v550
          %v983 = vunpack.c.l.b16 %v551
          %v984 = vunpack.c.h.b16 %v551
          %v985 = vunpack.c.l.b16 %v552
          %v986 = vunpack.c.h.b16 %v552
          %v987 = vunpack.c.l.b16 %v553
          %v988 = vunpack.c.h.b16 %v553
          %v989 = vunpack.c.l.b16 %v554
          %v990 = vunpack.c.h.b16 %v554
          %v991 = vunpack.c.l.b16 %v555
          %v992 = vunpack.c.h.b16 %v555
          %v993 = vunpack.c.l.b16 %v556
          %v994 = vunpack.c.h.b16 %v556
          %v995 = vunpack.c.l.b16 %v557
          %v996 = vunpack.c.h.b16 %v557
          %v997 = vunpack.c.l.b16 %v558
          %v998 = vunpack.c.h.b16 %v558
          %v999 = vunpack.c.l.b16 %v559
          %v1000 = vunpack.c.h.b16 %v559
          %v1001 = vunpack.c.l.b16 %v560
          %v1002 = vunpack.c.h.b16 %v560
          %v1003 = vunpack.c.l.b16 %v561
          %v1004 = vunpack.c.h.b16 %v561
          %v1005 = vunpack.c.l.b16 %v562
          %v1006 = vunpack.c.h.b16 %v562
          %v1007 = vunpack.c.l.b16 %v563
          %v1008 = vunpack.c.h.b16 %v563
          %v1009 = vunpack.c.l.b16 %v564
          %v1010 = vunpack.c.h.b16 %v564
          %v1011 = vunpack.c.l.b16 %v565
          %v1012 = vunpack.c.h.b16 %v565
          %v1013 = vunpack.c.l.b16 %v566
          %v1014 = vunpack.c.h.b16 %v566
          %v1015 = vpack.c.b16 %v763, %v759
          %v1016 = vpack.c.b16 %v764, %v760
          %v1017 = vpack.c.b16 %v765, %v761
          %v1018 = vpack.c.b16 %v766, %v762
          %v1019 = vpack.c.b16 %v771, %v767
          %v1020 = vpack.c.b16 %v772, %v768
          %v1021 = vpack.c.b16 %v773, %v769
          %v1022 = vpack.c.b16 %v774, %v770
          %v1023 = vpack.c.b16 %v779, %v775
          %v1024 = vpack.c.b16 %v780, %v776
          %v1025 = vpack.c.b16 %v781, %v777
          %v1026 = vpack.c.b16 %v782, %v778
          %v1027 = vpack.c.b16 %v787, %v783
          %v1028 = vpack.c.b16 %v788, %v784
          %v1029 = vpack.c.b16 %v789, %v785
          %v1030 = vpack.c.b16 %v790, %v786
          %v1031 = vpack.c.b16 %v795, %v791
          %v1032 = vpack.c.b16 %v796, %v792
          %v1033 = vpack.c.b16 %v797, %v793
          %v1034 = vpack.c.b16 %v798, %v794
          %v1035 = vpack.c.b16 %v803, %v799
          %v1036 = vpack.c.b16 %v804, %v800
          %v1037 = vpack.c.b16 %v805, %v801
          %v1038 = vpack.c.b16 %v806, %v802
          %v1039 = vpack.c.b16 %v811, %v807
          %v1040 = vpack.c.b16 %v812, %v808
          %v1041 = vpack.c.b16 %v813, %v809
          %v1042 = vpack.c.b16 %v814, %v810
          %v1043 = vpack.c.b16 %v819, %v815
          %v1044 = vpack.c.b16 %v820, %v816
          %v1045 = vpack.c.b16 %v821, %v817
          %v1046 = vpack.c.b16 %v822, %v818
          %v1047 = vpack.c.b16 %v827, %v823
          %v1048 = vpack.c.b16 %v828, %v824
          %v1049 = vpack.c.b16 %v829, %v825
          %v1050 = vpack.c.b16 %v830, %v826
          %v1051 = vpack.c.b16 %v835, %v831
          %v1052 = vpack.c.b16 %v836, %v832
          %v1053 = vpack.c.b16 %v837, %v833
          %v1054 = vpack.c.b16 %v838, %v834
          %v1055 = vpack.c.b16 %v843, %v839
          %v1056 = vpack.c.b16 %v844, %v840
          %v1057 = vpack.c.b16 %v845, %v841
          %v1058 = vpack.c.b16 %v846, %v842
          %v1059 = vpack.c.b16 %v851, %v847
          %v1060 = vpack.c.b16 %v852, %v848
          %v1061 = vpack.c.b16 %v853, %v849
          %v1062 = vpack.c.b16 %v854, %v850
          %v1063 = vpack.c.b16 %v859, %v855
          %v1064 = vpack.c.b16 %v860, %v856
          %v1065 = vpack.c.b16 %v861, %v857
          %v1066 = vpack.c.b16 %v862, %v858
          %v1067 = vpack.c.b16 %v867, %v863
          %v1068 = vpack.c.b16 %v868, %v864
          %v1069 = vpack.c.b16 %v869, %v865
          %v1070 = vpack.c.b16 %v870, %v866
          %v1071 = vpack.c.b16 %v875, %v871
          %v1072 = vpack.c.b16 %v876, %v872
          %v1073 = vpack.c.b16 %v877, %v873
          %v1074 = vpack.c.b16 %v878, %v874
          %v1075 = vpack.c.b16 %v883, %v879
          %v1076 = vpack.c.b16 %v884, %v880
          %v1077 = vpack.c.b16 %v885, %v881
          %v1078 = vpack.c.b16 %v886, %v882
          %v1079 = vpack.c.b16 %v891, %v887
          %v1080 = vpack.c.b16 %v892, %v888
          %v1081 = vpack.c.b16 %v893, %v889
          %v1082 = vpack.c.b16 %v894, %v890
          %v1083 = vpack.c.b16 %v899, %v895
          %v1084 = vpack.c.b16 %v900, %v896
          %v1085 = vpack.c.b16 %v901, %v897
          %v1086 = vpack.c.b16 %v902, %v898
          %v1087 = vpack.c.b16 %v907, %v903
          %v1088 = vpack.c.b16 %v908, %v904
          %v1089 = vpack.c.b16 %v909, %v905
          %v1090 = vpack.c.b16 %v910, %v906
          %v1091 = vpack.c.b16 %v915, %v911
          %v1092 = vpack.c.b16 %v916, %v912
          %v1093 = vpack.c.b16 %v917, %v913
          %v1094 = vpack.c.b16 %v918, %v914
          %v1095 = vpack.c.b16 %v923, %v919
          %v1096 = vpack.c.b16 %v924, %v920
          %v1097 = vpack.c.b16 %v925, %v921
          %v1098 = vpack.c.b16 %v926, %v922
          %v1099 = vpack.c.b16 %v931, %v927
          %v1100 = vpack.c.b16 %v932, %v928
          %v1101 = vpack.c.b16 %v933, %v929
          %v1102 = vpack.c.b16 %v934, %v930
          %v1103 = vpack.c.b16 %v939, %v935
          %v1104 = vpack.c.b16 %v940, %v936
          %v1105 = vpack.c.b16 %v941, %v937
          %v1106 = vpack.c.b16 %v942, %v938
          %v1107 = vpack.c.b16 %v947, %v943
          %v1108 = vpack.c.b16 %v948, %v944
          %v1109 = vpack.c.b16 %v949, %v945
          %v1110 = vpack.c.b16 %v950, %v946
          %v1111 = vpack.c.b16 %v955, %v951
          %v1112 = vpack.c.b16 %v956, %v952
          %v1113 = vpack.c.b16 %v957, %v953
          %v1114 = vpack.c.b16 %v958, %v954
          %v1115 = vpack.c.b16 %v963, %v959
          %v1116 = vpack.c.b16 %v964, %v960
          %v1117 = vpack.c.b16 %v965, %v961
          %v1118 = vpack.c.b16 %v966, %v962
          %v1119 = vpack.c.b16 %v971, %v967
          %v1120 = vpack.c.b16 %v972, %v968
          %v1121 = vpack.c.b16 %v973, %v969
          %v1122 = vpack.c.b16 %v974, %v970
          %v1123 = vpack.c.b16 %v979, %v975
          %v1124 = vpack.c.b16 %v980, %v976
          %v1125 = vpack.c.b16 %v981, %v977
          %v1126 = vpack.c.b16 %v982, %v978
          %v1127 = vpack.c.b16 %v987, %v983
          %v1128 = vpack.c.b16 %v988, %v984
          %v1129 = vpack.c.b16 %v989, %v985
          %v1130 = vpack.c.b16 %v990, %v986
          %v1131 = vpack.c.b16 %v995, %v991
          %v1132 = vpack.c.b16 %v996, %v992
          %v1133 = vpack.c.b16 %v997, %v993
          %v1134 = vpack.c.b16 %v998, %v994
          %v1135 = vpack.c.b16 %v1003, %v999
          %v1136 = vpack.c.b16 %v1004, %v1000
          %v1137 = vpack.c.b16 %v1005, %v1001
          %v1138 = vpack.c.b16 %v1006, %v1002
          %v1139 = vpack.c.b16 %v1011, %v1007
          %v1140 = vpack.c.b16 %v1012, %v1008
          %v1141 = vpack.c.b16 %v1013, %v1009
          %v1142 = vpack.c.b16 %v1014, %v1010
          %v1335 = vunpack.c.l.b16 %v567
          %v1336 = vunpack.c.l.b16 %v568
          %v1337 = vunpack.c.l.b16 %v569
          %v1338 = vunpack.c.l.b16 %v570
          %v1339 = vunpack.c.l.b16 %v571
          %v1340 = vunpack.c.l.b16 %v572
          %v1341 = vunpack.c.l.b16 %v573
          %v1342 = vunpack.c.l.b16 %v574
          %v1343 = vunpack.c.l.b16 %v575
          %v1344 = vunpack.c.l.b16 %v576
          %v1345 = vunpack.c.l.b16 %v577
          %v1346 = vunpack.c.l.b16 %v578
          %v1347 = vunpack.c.l.b16 %v579
          %v1348 = vunpack.c.l.b16 %v580
          %v1349 = vunpack.c.l.b16 %v581
          %v1350 = vunpack.c.l.b16 %v582
          %v1351 = vunpack.c.l.b16 %v583
          %v1352 = vunpack.c.l.b16 %v584
          %v1353 = vunpack.c.l.b16 %v585
          %v1354 = vunpack.c.l.b16 %v586
          %v1355 = vunpack.c.l.b16 %v587
          %v1356 = vunpack.c.l.b16 %v588
          %v1357 = vunpack.c.l.b16 %v589
          %v1358 = vunpack.c.l.b16 %v590
          %v1359 = vunpack.c.l.b16 %v591
          %v1360 = vunpack.c.l.b16 %v592
          %v1361 = vunpack.c.l.b16 %v593
          %v1362 = vunpack.c.l.b16 %v594
          %v1363 = vunpack.c.l.b16 %v595
          %v1364 = vunpack.c.l.b16 %v596
          %v1365 = vunpack.c.l.b16 %v597
          %v1366 = vunpack.c.l.b16 %v598
          %v1367 = vunpack.c.l.b16 %v599
          %v1368 = vunpack.c.l.b16 %v600
          %v1369 = vunpack.c.l.b16 %v601
          %v1370 = vunpack.c.l.b16 %v602
          %v1371 = vunpack.c.l.b16 %v603
          %v1372 = vunpack.c.l.b16 %v604
          %v1373 = vunpack.c.l.b16 %v605
          %v1374 = vunpack.c.l.b16 %v606
          %v1375 = vunpack.c.l.b16 %v607
          %v1376 = vunpack.c.l.b16 %v608
          %v1377 = vunpack.c.l.b16 %v609
          %v1378 = vunpack.c.l.b16 %v610
          %v1379 = vunpack.c.l.b16 %v611
          %v1380 = vunpack.c.l.b16 %v612
          %v1381 = vunpack.c.l.b16 %v613
          %v1382 = vunpack.c.l.b16 %v614
          %v1383 = vunpack.c.l.b16 %v615
          %v1384 = vunpack.c.l.b16 %v616
          %v1385 = vunpack.c.l.b16 %v617
          %v1386 = vunpack.c.l.b16 %v618
          %v1387 = vunpack.c.l.b16 %v619
          %v1388 = vunpack.c.l.b16 %v620
          %v1389 = vunpack.c.l.b16 %v621
          %v1390 = vunpack.c.l.b16 %v622
          %v1391 = vunpack.c.l.b16 %v623
          %v1392 = vunpack.c.l.b16 %v624
          %v1393 = vunpack.c.l.b16 %v625
          %v1394 = vunpack.c.l.b16 %v626
          %v1395 = vunpack.c.l.b16 %v627
          %v1396 = vunpack.c.l.b16 %v628
          %v1397 = vunpack.c.l.b16 %v629
          %v1398 = vunpack.c.l.b16 %v630
          %v1399 = vpack.c.b16 %v1336, %v1335
          %v1400 = vpack.c.b16 %v1338, %v1337
          %v1401 = vpack.c.b16 %v1340, %v1339
          %v1402 = vpack.c.b16 %v1342, %v1341
          %v1403 = vpack.c.b16 %v1344, %v1343
          %v1404 = vpack.c.b16 %v1346, %v1345
          %v1405 = vpack.c.b16 %v1348, %v1347
          %v1406 = vpack.c.b16 %v1350, %v1349
          %v1407 = vpack.c.b16 %v1352, %v1351
          %v1408 = vpack.c.b16 %v1354, %v1353
          %v1409 = vpack.c.b16 %v1356, %v1355
          %v1410 = vpack.c.b16 %v1358, %v1357
          %v1411 = vpack.c.b16 %v1360, %v1359
          %v1412 = vpack.c.b16 %v1362, %v1361
          %v1413 = vpack.c.b16 %v1364, %v1363
          %v1414 = vpack.c.b16 %v1366, %v1365
          %v1415 = vpack.c.b16 %v1368, %v1367
          %v1416 = vpack.c.b16 %v1370, %v1369
          %v1417 = vpack.c.b16 %v1372, %v1371
          %v1418 = vpack.c.b16 %v1374, %v1373
          %v1419 = vpack.c.b16 %v1376, %v1375
          %v1420 = vpack.c.b16 %v1378, %v1377
          %v1421 = vpack.c.b16 %v1380, %v1379
          %v1422 = vpack.c.b16 %v1382, %v1381
          %v1423 = vpack.c.b16 %v1384, %v1383
          %v1424 = vpack.c.b16 %v1386, %v1385
          %v1425 = vpack.c.b16 %v1388, %v1387
          %v1426 = vpack.c.b16 %v1390, %v1389
          %v1427 = vpack.c.b16 %v1392, %v1391
          %v1428 = vpack.c.b16 %v1394, %v1393
          %v1429 = vpack.c.b16 %v1396, %v1395
          %v1430 = vpack.c.b16 %v1398, %v1397
          %1463 = vmatprep.subr.bf16.mxu0 0
          %1464 = vmatpush1.bf16.msra.mxu0 %v1399
          %1465 = vmatprep.subr.bf16.mxu0 0
          %1466 = vmatpush1.bf16.msra.mxu0 %v1400
          %1467 = vmatprep.subr.bf16.mxu0 0
          %1468 = vmatpush1.bf16.msra.mxu0 %v1401
          %1469 = vmatprep.subr.bf16.mxu0 0
          %1470 = vmatpush1.bf16.msra.mxu0 %v1402
          %1471 = vmatprep.subr.bf16.mxu0 0
          %1472 = vmatpush1.bf16.msra.mxu0 %v1403
          %1473 = vmatprep.subr.bf16.mxu0 0
          %1474 = vmatpush1.bf16.msra.mxu0 %v1404
          %1475 = vmatprep.subr.bf16.mxu0 0
          %1476 = vmatpush1.bf16.msra.mxu0 %v1405
          %1477 = vmatprep.subr.bf16.mxu0 0
          %1478 = vmatpush1.bf16.msra.mxu0 %v1406
          %1479 = vmatprep.subr.bf16.mxu0 0
          %1480 = vmatpush1.bf16.msra.mxu0 %v1407
          %1481 = vmatprep.subr.bf16.mxu0 0
          %1482 = vmatpush1.bf16.msra.mxu0 %v1408
          %1483 = vmatprep.subr.bf16.mxu0 0
          %1484 = vmatpush1.bf16.msra.mxu0 %v1409
          %1485 = vmatprep.subr.bf16.mxu0 0
          %1486 = vmatpush1.bf16.msra.mxu0 %v1410
          %1487 = vmatprep.subr.bf16.mxu0 0
          %1488 = vmatpush1.bf16.msra.mxu0 %v1411
          %1489 = vmatprep.subr.bf16.mxu0 0
          %1490 = vmatpush1.bf16.msra.mxu0 %v1412
          %1491 = vmatprep.subr.bf16.mxu0 0
          %1492 = vmatpush1.bf16.msra.mxu0 %v1413
          %1493 = vmatprep.subr.bf16.mxu0 0
          %1494 = vmatpush1.bf16.msra.mxu0 %v1414
          %1495 = vmatprep.mubr.bf16.mxu0 %v1016
          %1496 = vmatmul.mubr.bf16.gmra.mrb[0].mxu0 %v1015
          %v1497 = vpop.f32.mrb[0].mxu0
          %v1498 = vadd.f32 0.0, %v1497
          %v1499 = vpop.f32.mrb[0].mxu0
          %v1500 = vpop.f32.mrb[0].mxu0
          %v1501 = vadd.f32 0.0, %v1500
          %v1502 = vpop.f32.mrb[0].mxu0
          %1503 = vmatprep.mubr.bf16.mxu0 %v1020
          %1504 = vmatmul.mubr.bf16.gmra.mrb[0].mxu0 %v1019
          %v1505 = vpop.f32.mrb[0].mxu0
          %v1506 = vadd.f32 0.0, %v1505
          %v1507 = vpop.f32.mrb[0].mxu0
          %v1508 = vpop.f32.mrb[0].mxu0
          %v1509 = vadd.f32 0.0, %v1508
          %v1510 = vpop.f32.mrb[0].mxu0
          %1511 = vmatprep.mubr.bf16.mxu0 %v1024
          %1512 = vmatmul.mubr.bf16.gmra.mrb[0].mxu0 %v1023
          %v1513 = vpop.f32.mrb[0].mxu0
          %v1514 = vadd.f32 0.0, %v1513
          %v1515 = vpop.f32.mrb[0].mxu0
          %v1516 = vpop.f32.mrb[0].mxu0
          %v1517 = vadd.f32 0.0, %v1516
          %v1518 = vpop.f32.mrb[0].mxu0
          %1519 = vmatprep.mubr.bf16.mxu0 %v1028
          %1520 = vmatmul.mubr.bf16.gmra.mrb[0].mxu0 %v1027
          %v1521 = vpop.f32.mrb[0].mxu0
          %v1522 = vadd.f32 0.0, %v1521
          %v1523 = vpop.f32.mrb[0].mxu0
          %v1524 = vpop.f32.mrb[0].mxu0
          %v1525 = vadd.f32 0.0, %v1524
          %v1526 = vpop.f32.mrb[0].mxu0
          %1527 = vmatprep.mubr.bf16.mxu0 %v1032
          %1528 = vmatmul.mubr.bf16.gmra.mrb[0].mxu0 %v1031
          %v1529 = vpop.f32.mrb[0].mxu0
          %v1530 = vadd.f32 0.0, %v1529
          %v1531 = vpop.f32.mrb[0].mxu0
          %v1532 = vpop.f32.mrb[0].mxu0
          %v1533 = vadd.f32 0.0, %v1532
          %v1534 = vpop.f32.mrb[0].mxu0
          %1535 = vmatprep.mubr.bf16.mxu0 %v1036
          %1536 = vmatmul.mubr.bf16.gmra.mrb[0].mxu0 %v1035
          %v1537 = vpop.f32.mrb[0].mxu0
          %v1538 = vadd.f32 0.0, %v1537
          %v1539 = vpop.f32.mrb[0].mxu0
          %v1540 = vpop.f32.mrb[0].mxu0
          %v1541 = vadd.f32 0.0, %v1540
          %v1542 = vpop.f32.mrb[0].mxu0
          %1543 = vmatprep.mubr.bf16.mxu0 %v1040
          %1544 = vmatmul.mubr.bf16.gmra.mrb[0].mxu0 %v1039
          %v1545 = vpop.f32.mrb[0].mxu0
          %v1546 = vadd.f32 0.0, %v1545
          %v1547 = vpop.f32.mrb[0].mxu0
          %v1548 = vpop.f32.mrb[0].mxu0
          %v1549 = vadd.f32 0.0, %v1548
          %v1550 = vpop.f32.mrb[0].mxu0
          %1551 = vmatprep.mubr.bf16.mxu0 %v1044
          %1552 = vmatmul.mubr.bf16.gmra.mrb[0].mxu0 %v1043
          %v1553 = vpop.f32.mrb[0].mxu0
          %v1554 = vadd.f32 0.0, %v1553
          %v1555 = vpop.f32.mrb[0].mxu0
          %v1556 = vpop.f32.mrb[0].mxu0
          %v1557 = vadd.f32 0.0, %v1556
          %v1558 = vpop.f32.mrb[0].mxu0
          %1559 = vmatprep.mubr.bf16.mxu0 %v1048
          %1560 = vmatmul.mubr.bf16.gmra.mrb[0].mxu0 %v1047
          %v1561 = vpop.f32.mrb[0].mxu0
          %v1562 = vadd.f32 0.0, %v1561
          %v1563 = vpop.f32.mrb[0].mxu0
          %v1564 = vpop.f32.mrb[0].mxu0
          %v1565 = vadd.f32 0.0, %v1564
          %v1566 = vpop.f32.mrb[0].mxu0
          %1567 = vmatprep.mubr.bf16.mxu0 %v1052
          %1568 = vmatmul.mubr.bf16.gmra.mrb[0].mxu0 %v1051
          %v1569 = vpop.f32.mrb[0].mxu0
          %v1570 = vadd.f32 0.0, %v1569
          %v1571 = vpop.f32.mrb[0].mxu0
          %v1572 = vpop.f32.mrb[0].mxu0
          %v1573 = vadd.f32 0.0, %v1572
          %v1574 = vpop.f32.mrb[0].mxu0
          %1575 = vmatprep.mubr.bf16.mxu0 %v1056
          %1576 = vmatmul.mubr.bf16.gmra.mrb[0].mxu0 %v1055
          %v1577 = vpop.f32.mrb[0].mxu0
          %v1578 = vadd.f32 0.0, %v1577
          %v1579 = vpop.f32.mrb[0].mxu0
          %v1580 = vpop.f32.mrb[0].mxu0
          %v1581 = vadd.f32 0.0, %v1580
          %v1582 = vpop.f32.mrb[0].mxu0
          %1583 = vmatprep.mubr.bf16.mxu0 %v1060
          %1584 = vmatmul.mubr.bf16.gmra.mrb[0].mxu0 %v1059
          %v1585 = vpop.f32.mrb[0].mxu0
          %v1586 = vadd.f32 0.0, %v1585
          %v1587 = vpop.f32.mrb[0].mxu0
          %v1588 = vpop.f32.mrb[0].mxu0
          %v1589 = vadd.f32 0.0, %v1588
          %v1590 = vpop.f32.mrb[0].mxu0
          %1591 = vmatprep.mubr.bf16.mxu0 %v1064
          %1592 = vmatmul.mubr.bf16.gmra.mrb[0].mxu0 %v1063
          %v1593 = vpop.f32.mrb[0].mxu0
          %v1594 = vadd.f32 0.0, %v1593
          %v1595 = vpop.f32.mrb[0].mxu0
          %v1596 = vpop.f32.mrb[0].mxu0
          %v1597 = vadd.f32 0.0, %v1596
          %v1598 = vpop.f32.mrb[0].mxu0
          %1599 = vmatprep.mubr.bf16.mxu0 %v1068
          %1600 = vmatmul.mubr.bf16.gmra.mrb[0].mxu0 %v1067
          %v1601 = vpop.f32.mrb[0].mxu0
          %v1602 = vadd.f32 0.0, %v1601
          %v1603 = vpop.f32.mrb[0].mxu0
          %v1604 = vpop.f32.mrb[0].mxu0
          %v1605 = vadd.f32 0.0, %v1604
          %v1606 = vpop.f32.mrb[0].mxu0
          %1607 = vmatprep.mubr.bf16.mxu0 %v1072
          %1608 = vmatmul.mubr.bf16.gmra.mrb[0].mxu0 %v1071
          %v1609 = vpop.f32.mrb[0].mxu0
          %v1610 = vadd.f32 0.0, %v1609
          %v1611 = vpop.f32.mrb[0].mxu0
          %v1612 = vpop.f32.mrb[0].mxu0
          %v1613 = vadd.f32 0.0, %v1612
          %v1614 = vpop.f32.mrb[0].mxu0
          %1615 = vmatprep.mubr.bf16.mxu0 %v1076
          %1616 = vmatmul.mubr.bf16.gmra.mrb[0].mxu0 %v1075
          %v1617 = vpop.f32.mrb[0].mxu0
          %v1618 = vadd.f32 0.0, %v1617
          %v1619 = vpop.f32.mrb[0].mxu0
          %v1620 = vpop.f32.mrb[0].mxu0
          %v1621 = vadd.f32 0.0, %v1620
          %v1622 = vpop.f32.mrb[0].mxu0
          %1623 = vmatprep.mubr.bf16.mxu0 %v1080
          %1624 = vmatmul.mubr.bf16.gmra.mrb[0].mxu0 %v1079
          %v1625 = vpop.f32.mrb[0].mxu0
          %v1626 = vadd.f32 0.0, %v1625
          %v1627 = vpop.f32.mrb[0].mxu0
          %v1628 = vpop.f32.mrb[0].mxu0
          %v1629 = vadd.f32 0.0, %v1628
          %v1630 = vpop.f32.mrb[0].mxu0
          %1631 = vmatprep.mubr.bf16.mxu0 %v1084
          %1632 = vmatmul.mubr.bf16.gmra.mrb[0].mxu0 %v1083
          %v1633 = vpop.f32.mrb[0].mxu0
          %v1634 = vadd.f32 0.0, %v1633
          %v1635 = vpop.f32.mrb[0].mxu0
          %v1636 = vpop.f32.mrb[0].mxu0
          %v1637 = vadd.f32 0.0, %v1636
          %v1638 = vpop.f32.mrb[0].mxu0
          %1639 = vmatprep.mubr.bf16.mxu0 %v1088
          %1640 = vmatmul.mubr.bf16.gmra.mrb[0].mxu0 %v1087
          %v1641 = vpop.f32.mrb[0].mxu0
          %v1642 = vadd.f32 0.0, %v1641
          %v1643 = vpop.f32.mrb[0].mxu0
          %v1644 = vpop.f32.mrb[0].mxu0
          %v1645 = vadd.f32 0.0, %v1644
          %v1646 = vpop.f32.mrb[0].mxu0
          %1647 = vmatprep.mubr.bf16.mxu0 %v1092
          %1648 = vmatmul.mubr.bf16.gmra.mrb[0].mxu0 %v1091
          %v1649 = vpop.f32.mrb[0].mxu0
          %v1650 = vadd.f32 0.0, %v1649
          %v1651 = vpop.f32.mrb[0].mxu0
          %v1652 = vpop.f32.mrb[0].mxu0
          %v1653 = vadd.f32 0.0, %v1652
          %v1654 = vpop.f32.mrb[0].mxu0
          %1655 = vmatprep.mubr.bf16.mxu0 %v1096
          %1656 = vmatmul.mubr.bf16.gmra.mrb[0].mxu0 %v1095
          %v1657 = vpop.f32.mrb[0].mxu0
          %v1658 = vadd.f32 0.0, %v1657
          %v1659 = vpop.f32.mrb[0].mxu0
          %v1660 = vpop.f32.mrb[0].mxu0
          %v1661 = vadd.f32 0.0, %v1660
          %v1662 = vpop.f32.mrb[0].mxu0
          %1663 = vmatprep.mubr.bf16.mxu0 %v1100
          %1664 = vmatmul.mubr.bf16.gmra.mrb[0].mxu0 %v1099
          %v1665 = vpop.f32.mrb[0].mxu0
          %v1666 = vadd.f32 0.0, %v1665
          %v1667 = vpop.f32.mrb[0].mxu0
          %v1668 = vpop.f32.mrb[0].mxu0
          %v1669 = vadd.f32 0.0, %v1668
          %v1670 = vpop.f32.mrb[0].mxu0
          %1671 = vmatprep.mubr.bf16.mxu0 %v1104
          %1672 = vmatmul.mubr.bf16.gmra.mrb[0].mxu0 %v1103
          %v1673 = vpop.f32.mrb[0].mxu0
          %v1674 = vadd.f32 0.0, %v1673
          %v1675 = vpop.f32.mrb[0].mxu0
          %v1676 = vpop.f32.mrb[0].mxu0
          %v1677 = vadd.f32 0.0, %v1676
          %v1678 = vpop.f32.mrb[0].mxu0
          %1679 = vmatprep.mubr.bf16.mxu0 %v1108
          %1680 = vmatmul.mubr.bf16.gmra.mrb[0].mxu0 %v1107
          %v1681 = vpop.f32.mrb[0].mxu0
          %v1682 = vadd.f32 0.0, %v1681
          %v1683 = vpop.f32.mrb[0].mxu0
          %v1684 = vpop.f32.mrb[0].mxu0
          %v1685 = vadd.f32 0.0, %v1684
          %v1686 = vpop.f32.mrb[0].mxu0
          %1687 = vmatprep.mubr.bf16.mxu0 %v1112
          %1688 = vmatmul.mubr.bf16.gmra.mrb[0].mxu0 %v1111
          %v1689 = vpop.f32.mrb[0].mxu0
          %v1690 = vadd.f32 0.0, %v1689
          %v1691 = vpop.f32.mrb[0].mxu0
          %v1692 = vpop.f32.mrb[0].mxu0
          %v1693 = vadd.f32 0.0, %v1692
          %v1694 = vpop.f32.mrb[0].mxu0
          %1695 = vmatprep.mubr.bf16.mxu0 %v1116
          %1696 = vmatmul.mubr.bf16.gmra.mrb[0].mxu0 %v1115
          %v1697 = vpop.f32.mrb[0].mxu0
          %v1698 = vadd.f32 0.0, %v1697
          %v1699 = vpop.f32.mrb[0].mxu0
          %v1700 = vpop.f32.mrb[0].mxu0
          %v1701 = vadd.f32 0.0, %v1700
          %v1702 = vpop.f32.mrb[0].mxu0
          %1703 = vmatprep.mubr.bf16.mxu0 %v1120
          %1704 = vmatmul.mubr.bf16.gmra.mrb[0].mxu0 %v1119
          %v1705 = vpop.f32.mrb[0].mxu0
          %v1706 = vadd.f32 0.0, %v1705
          %v1707 = vpop.f32.mrb[0].mxu0
          %v1708 = vpop.f32.mrb[0].mxu0
          %v1709 = vadd.f32 0.0, %v1708
          %v1710 = vpop.f32.mrb[0].mxu0
          %1711 = vmatprep.mubr.bf16.mxu0 %v1124
          %1712 = vmatmul.mubr.bf16.gmra.mrb[0].mxu0 %v1123
          %v1713 = vpop.f32.mrb[0].mxu0
          %v1714 = vadd.f32 0.0, %v1713
          %v1715 = vpop.f32.mrb[0].mxu0
          %v1716 = vpop.f32.mrb[0].mxu0
          %v1717 = vadd.f32 0.0, %v1716
          %v1718 = vpop.f32.mrb[0].mxu0
          %1719 = vmatprep.mubr.bf16.mxu0 %v1128
          %1720 = vmatmul.mubr.bf16.gmra.mrb[0].mxu0 %v1127
          %v1721 = vpop.f32.mrb[0].mxu0
          %v1722 = vadd.f32 0.0, %v1721
          %v1723 = vpop.f32.mrb[0].mxu0
          %v1724 = vpop.f32.mrb[0].mxu0
          %v1725 = vadd.f32 0.0, %v1724
          %v1726 = vpop.f32.mrb[0].mxu0
          %1727 = vmatprep.mubr.bf16.mxu0 %v1132
          %1728 = vmatmul.mubr.bf16.gmra.mrb[0].mxu0 %v1131
          %v1729 = vpop.f32.mrb[0].mxu0
          %v1730 = vadd.f32 0.0, %v1729
          %v1731 = vpop.f32.mrb[0].mxu0
          %v1732 = vpop.f32.mrb[0].mxu0
          %v1733 = vadd.f32 0.0, %v1732
          %v1734 = vpop.f32.mrb[0].mxu0
          %1735 = vmatprep.mubr.bf16.mxu0 %v1136
          %1736 = vmatmul.mubr.bf16.gmra.mrb[0].mxu0 %v1135
          %v1737 = vpop.f32.mrb[0].mxu0
          %v1738 = vadd.f32 0.0, %v1737
          %v1739 = vpop.f32.mrb[0].mxu0
          %v1740 = vpop.f32.mrb[0].mxu0
          %v1741 = vadd.f32 0.0, %v1740
          %v1742 = vpop.f32.mrb[0].mxu0
          %1743 = vmatprep.mubr.bf16.mxu0 %v1140
          %1744 = vmatmul.mubr.bf16.gmra.mrb[0].mxu0 %v1139
          %v1745 = vpop.f32.mrb[0].mxu0
          %v1746 = vadd.f32 0.0, %v1745
          %v1747 = vpop.f32.mrb[0].mxu0
          %v1748 = vpop.f32.mrb[0].mxu0
          %v1749 = vadd.f32 0.0, %v1748
          %v1750 = vpop.f32.mrb[0].mxu0
          %1751 = vdwg.mxu0
          %1752 = vmatprep.subr.bf16.mxu0 0
          %1753 = vmatpush1.bf16.msra.mxu0 %v1415
          %1754 = vmatprep.subr.bf16.mxu0 0
          %1755 = vmatpush1.bf16.msra.mxu0 %v1416
          %1756 = vmatprep.subr.bf16.mxu0 0
          %1757 = vmatpush1.bf16.msra.mxu0 %v1417
          %1758 = vmatprep.subr.bf16.mxu0 0
          %1759 = vmatpush1.bf16.msra.mxu0 %v1418
          %1760 = vmatprep.subr.bf16.mxu0 0
          %1761 = vmatpush1.bf16.msra.mxu0 %v1419
          %1762 = vmatprep.subr.bf16.mxu0 0
          %1763 = vmatpush1.bf16.msra.mxu0 %v1420
          %1764 = vmatprep.subr.bf16.mxu0 0
          %1765 = vmatpush1.bf16.msra.mxu0 %v1421
          %1766 = vmatprep.subr.bf16.mxu0 0
          %1767 = vmatpush1.bf16.msra.mxu0 %v1422
          %1768 = vmatprep.subr.bf16.mxu0 0
          %1769 = vmatpush1.bf16.msra.mxu0 %v1423
          %1770 = vmatprep.subr.bf16.mxu0 0
          %1771 = vmatpush1.bf16.msra.mxu0 %v1424
          %1772 = vmatprep.subr.bf16.mxu0 0
          %1773 = vmatpush1.bf16.msra.mxu0 %v1425
          %1774 = vmatprep.subr.bf16.mxu0 0
          %1775 = vmatpush1.bf16.msra.mxu0 %v1426
          %1776 = vmatprep.subr.bf16.mxu0 0
          %1777 = vmatpush1.bf16.msra.mxu0 %v1427
          %1778 = vmatprep.subr.bf16.mxu0 0
          %1779 = vmatpush1.bf16.msra.mxu0 %v1428
          %1780 = vmatprep.subr.bf16.mxu0 0
          %1781 = vmatpush1.bf16.msra.mxu0 %v1429
          %1782 = vmatprep.subr.bf16.mxu0 0
          %1783 = vmatpush1.bf16.msra.mxu0 %v1430
          %1784 = vmatprep.mubr.bf16.mxu0 %v1018
          %1785 = vmatmul.mubr.bf16.gmra.mrb[0].mxu0 %v1017
          %v1786 = vpop.f32.mrb[0].mxu0
          %v1787 = vadd.f32 %v1498, %v1786
          %v1788 = vpop.f32.mrb[0].mxu0
          %v1789 = vpop.f32.mrb[0].mxu0
          %v1790 = vadd.f32 %v1501, %v1789
          %v1791 = vpop.f32.mrb[0].mxu0
          %1792 = vmatprep.mubr.bf16.mxu0 %v1022
          %1793 = vmatmul.mubr.bf16.gmra.mrb[0].mxu0 %v1021
          %v1794 = vpop.f32.mrb[0].mxu0
          %v1795 = vadd.f32 %v1506, %v1794
          %v1796 = vpop.f32.mrb[0].mxu0
          %v1797 = vpop.f32.mrb[0].mxu0
          %v1798 = vadd.f32 %v1509, %v1797
          %v1799 = vpop.f32.mrb[0].mxu0
          %1800 = vmatprep.mubr.bf16.mxu0 %v1026
          %1801 = vmatmul.mubr.bf16.gmra.mrb[0].mxu0 %v1025
          %v1802 = vpop.f32.mrb[0].mxu0
          %v1803 = vadd.f32 %v1514, %v1802
          %v1804 = vpop.f32.mrb[0].mxu0
          %v1805 = vpop.f32.mrb[0].mxu0
          %v1806 = vadd.f32 %v1517, %v1805
          %v1807 = vpop.f32.mrb[0].mxu0
          %1808 = vmatprep.mubr.bf16.mxu0 %v1030
          %1809 = vmatmul.mubr.bf16.gmra.mrb[0].mxu0 %v1029
          %v1810 = vpop.f32.mrb[0].mxu0
          %v1811 = vadd.f32 %v1522, %v1810
          %v1812 = vpop.f32.mrb[0].mxu0
          %v1813 = vpop.f32.mrb[0].mxu0
          %v1814 = vadd.f32 %v1525, %v1813
          %v1815 = vpop.f32.mrb[0].mxu0
          %1816 = vmatprep.mubr.bf16.mxu0 %v1034
          %1817 = vmatmul.mubr.bf16.gmra.mrb[0].mxu0 %v1033
          %v1818 = vpop.f32.mrb[0].mxu0
          %v1819 = vadd.f32 %v1530, %v1818
          %v1820 = vpop.f32.mrb[0].mxu0
          %v1821 = vpop.f32.mrb[0].mxu0
          %v1822 = vadd.f32 %v1533, %v1821
          %v1823 = vpop.f32.mrb[0].mxu0
          %1824 = vmatprep.mubr.bf16.mxu0 %v1038
          %1825 = vmatmul.mubr.bf16.gmra.mrb[0].mxu0 %v1037
          %v1826 = vpop.f32.mrb[0].mxu0
          %v1827 = vadd.f32 %v1538, %v1826
          %v1828 = vpop.f32.mrb[0].mxu0
          %v1829 = vpop.f32.mrb[0].mxu0
          %v1830 = vadd.f32 %v1541, %v1829
          %v1831 = vpop.f32.mrb[0].mxu0
          %1832 = vmatprep.mubr.bf16.mxu0 %v1042
          %1833 = vmatmul.mubr.bf16.gmra.mrb[0].mxu0 %v1041
          %v1834 = vpop.f32.mrb[0].mxu0
          %v1835 = vadd.f32 %v1546, %v1834
          %v1836 = vpop.f32.mrb[0].mxu0
          %v1837 = vpop.f32.mrb[0].mxu0
          %v1838 = vadd.f32 %v1549, %v1837
          %v1839 = vpop.f32.mrb[0].mxu0
          %1840 = vmatprep.mubr.bf16.mxu0 %v1046
          %1841 = vmatmul.mubr.bf16.gmra.mrb[0].mxu0 %v1045
          %v1842 = vpop.f32.mrb[0].mxu0
          %v1843 = vadd.f32 %v1554, %v1842
          %v1844 = vpop.f32.mrb[0].mxu0
          %v1845 = vpop.f32.mrb[0].mxu0
          %v1846 = vadd.f32 %v1557, %v1845
          %v1847 = vpop.f32.mrb[0].mxu0
          %1848 = vmatprep.mubr.bf16.mxu0 %v1050
          %1849 = vmatmul.mubr.bf16.gmra.mrb[0].mxu0 %v1049
          %v1850 = vpop.f32.mrb[0].mxu0
          %v1851 = vadd.f32 %v1562, %v1850
          %v1852 = vpop.f32.mrb[0].mxu0
          %v1853 = vpop.f32.mrb[0].mxu0
          %v1854 = vadd.f32 %v1565, %v1853
          %v1855 = vpop.f32.mrb[0].mxu0
          %1856 = vmatprep.mubr.bf16.mxu0 %v1054
          %1857 = vmatmul.mubr.bf16.gmra.mrb[0].mxu0 %v1053
          %v1858 = vpop.f32.mrb[0].mxu0
          %v1859 = vadd.f32 %v1570, %v1858
          %v1860 = vpop.f32.mrb[0].mxu0
          %v1861 = vpop.f32.mrb[0].mxu0
          %v1862 = vadd.f32 %v1573, %v1861
          %v1863 = vpop.f32.mrb[0].mxu0
          %1864 = vmatprep.mubr.bf16.mxu0 %v1058
          %1865 = vmatmul.mubr.bf16.gmra.mrb[0].mxu0 %v1057
          %v1866 = vpop.f32.mrb[0].mxu0
          %v1867 = vadd.f32 %v1578, %v1866
          %v1868 = vpop.f32.mrb[0].mxu0
          %v1869 = vpop.f32.mrb[0].mxu0
          %v1870 = vadd.f32 %v1581, %v1869
          %v1871 = vpop.f32.mrb[0].mxu0
          %1872 = vmatprep.mubr.bf16.mxu0 %v1062
          %1873 = vmatmul.mubr.bf16.gmra.mrb[0].mxu0 %v1061
          %v1874 = vpop.f32.mrb[0].mxu0
          %v1875 = vadd.f32 %v1586, %v1874
          %v1876 = vpop.f32.mrb[0].mxu0
          %v1877 = vpop.f32.mrb[0].mxu0
          %v1878 = vadd.f32 %v1589, %v1877
          %v1879 = vpop.f32.mrb[0].mxu0
          %1880 = vmatprep.mubr.bf16.mxu0 %v1066
          %1881 = vmatmul.mubr.bf16.gmra.mrb[0].mxu0 %v1065
          %v1882 = vpop.f32.mrb[0].mxu0
          %v1883 = vadd.f32 %v1594, %v1882
          %v1884 = vpop.f32.mrb[0].mxu0
          %v1885 = vpop.f32.mrb[0].mxu0
          %v1886 = vadd.f32 %v1597, %v1885
          %v1887 = vpop.f32.mrb[0].mxu0
          %1888 = vmatprep.mubr.bf16.mxu0 %v1070
          %1889 = vmatmul.mubr.bf16.gmra.mrb[0].mxu0 %v1069
          %v1890 = vpop.f32.mrb[0].mxu0
          %v1891 = vadd.f32 %v1602, %v1890
          %v1892 = vpop.f32.mrb[0].mxu0
          %v1893 = vpop.f32.mrb[0].mxu0
          %v1894 = vadd.f32 %v1605, %v1893
          %v1895 = vpop.f32.mrb[0].mxu0
          %1896 = vmatprep.mubr.bf16.mxu0 %v1074
          %1897 = vmatmul.mubr.bf16.gmra.mrb[0].mxu0 %v1073
          %v1898 = vpop.f32.mrb[0].mxu0
          %v1899 = vadd.f32 %v1610, %v1898
          %v1900 = vpop.f32.mrb[0].mxu0
          %v1901 = vpop.f32.mrb[0].mxu0
          %v1902 = vadd.f32 %v1613, %v1901
          %v1903 = vpop.f32.mrb[0].mxu0
          %1904 = vmatprep.mubr.bf16.mxu0 %v1078
          %1905 = vmatmul.mubr.bf16.gmra.mrb[0].mxu0 %v1077
          %v1906 = vpop.f32.mrb[0].mxu0
          %v1907 = vadd.f32 %v1618, %v1906
          %v1908 = vpop.f32.mrb[0].mxu0
          %v1909 = vpop.f32.mrb[0].mxu0
          %v1910 = vadd.f32 %v1621, %v1909
          %v1911 = vpop.f32.mrb[0].mxu0
          %1912 = vmatprep.mubr.bf16.mxu0 %v1082
          %1913 = vmatmul.mubr.bf16.gmra.mrb[0].mxu0 %v1081
          %v1914 = vpop.f32.mrb[0].mxu0
          %v1915 = vadd.f32 %v1626, %v1914
          %v1916 = vpop.f32.mrb[0].mxu0
          %v1917 = vpop.f32.mrb[0].mxu0
          %v1918 = vadd.f32 %v1629, %v1917
          %v1919 = vpop.f32.mrb[0].mxu0
          %1920 = vmatprep.mubr.bf16.mxu0 %v1086
          %1921 = vmatmul.mubr.bf16.gmra.mrb[0].mxu0 %v1085
          %v1922 = vpop.f32.mrb[0].mxu0
          %v1923 = vadd.f32 %v1634, %v1922
          %v1924 = vpop.f32.mrb[0].mxu0
          %v1925 = vpop.f32.mrb[0].mxu0
          %v1926 = vadd.f32 %v1637, %v1925
          %v1927 = vpop.f32.mrb[0].mxu0
          %1928 = vmatprep.mubr.bf16.mxu0 %v1090
          %1929 = vmatmul.mubr.bf16.gmra.mrb[0].mxu0 %v1089
          %v1930 = vpop.f32.mrb[0].mxu0
          %v1931 = vadd.f32 %v1642, %v1930
          %v1932 = vpop.f32.mrb[0].mxu0
          %v1933 = vpop.f32.mrb[0].mxu0
          %v1934 = vadd.f32 %v1645, %v1933
          %v1935 = vpop.f32.mrb[0].mxu0
          %1936 = vmatprep.mubr.bf16.mxu0 %v1094
          %1937 = vmatmul.mubr.bf16.gmra.mrb[0].mxu0 %v1093
          %v1938 = vpop.f32.mrb[0].mxu0
          %v1939 = vadd.f32 %v1650, %v1938
          %v1940 = vpop.f32.mrb[0].mxu0
          %v1941 = vpop.f32.mrb[0].mxu0
          %v1942 = vadd.f32 %v1653, %v1941
          %v1943 = vpop.f32.mrb[0].mxu0
          %1944 = vmatprep.mubr.bf16.mxu0 %v1098
          %1945 = vmatmul.mubr.bf16.gmra.mrb[0].mxu0 %v1097
          %v1946 = vpop.f32.mrb[0].mxu0
          %v1947 = vadd.f32 %v1658, %v1946
          %v1948 = vpop.f32.mrb[0].mxu0
          %v1949 = vpop.f32.mrb[0].mxu0
          %v1950 = vadd.f32 %v1661, %v1949
          %v1951 = vpop.f32.mrb[0].mxu0
          %1952 = vmatprep.mubr.bf16.mxu0 %v1102
          %1953 = vmatmul.mubr.bf16.gmra.mrb[0].mxu0 %v1101
          %v1954 = vpop.f32.mrb[0].mxu0
          %v1955 = vadd.f32 %v1666, %v1954
          %v1956 = vpop.f32.mrb[0].mxu0
          %v1957 = vpop.f32.mrb[0].mxu0
          %v1958 = vadd.f32 %v1669, %v1957
          %v1959 = vpop.f32.mrb[0].mxu0
          %1960 = vmatprep.mubr.bf16.mxu0 %v1106
          %1961 = vmatmul.mubr.bf16.gmra.mrb[0].mxu0 %v1105
          %v1962 = vpop.f32.mrb[0].mxu0
          %v1963 = vadd.f32 %v1674, %v1962
          %v1964 = vpop.f32.mrb[0].mxu0
          %v1965 = vpop.f32.mrb[0].mxu0
          %v1966 = vadd.f32 %v1677, %v1965
          %v1967 = vpop.f32.mrb[0].mxu0
          %1968 = vmatprep.mubr.bf16.mxu0 %v1110
          %1969 = vmatmul.mubr.bf16.gmra.mrb[0].mxu0 %v1109
          %v1970 = vpop.f32.mrb[0].mxu0
          %v1971 = vadd.f32 %v1682, %v1970
          %v1972 = vpop.f32.mrb[0].mxu0
          %v1973 = vpop.f32.mrb[0].mxu0
          %v1974 = vadd.f32 %v1685, %v1973
          %v1975 = vpop.f32.mrb[0].mxu0
          %1976 = vmatprep.mubr.bf16.mxu0 %v1114
          %1977 = vmatmul.mubr.bf16.gmra.mrb[0].mxu0 %v1113
          %v1978 = vpop.f32.mrb[0].mxu0
          %v1979 = vadd.f32 %v1690, %v1978
          %v1980 = vpop.f32.mrb[0].mxu0
          %v1981 = vpop.f32.mrb[0].mxu0
          %v1982 = vadd.f32 %v1693, %v1981
          %v1983 = vpop.f32.mrb[0].mxu0
          %1984 = vmatprep.mubr.bf16.mxu0 %v1118
          %1985 = vmatmul.mubr.bf16.gmra.mrb[0].mxu0 %v1117
          %v1986 = vpop.f32.mrb[0].mxu0
          %v1987 = vadd.f32 %v1698, %v1986
          %v1988 = vpop.f32.mrb[0].mxu0
          %v1989 = vpop.f32.mrb[0].mxu0
          %v1990 = vadd.f32 %v1701, %v1989
          %v1991 = vpop.f32.mrb[0].mxu0
          %1992 = vmatprep.mubr.bf16.mxu0 %v1122
          %1993 = vmatmul.mubr.bf16.gmra.mrb[0].mxu0 %v1121
          %v1994 = vpop.f32.mrb[0].mxu0
          %v1995 = vadd.f32 %v1706, %v1994
          %v1996 = vpop.f32.mrb[0].mxu0
          %v1997 = vpop.f32.mrb[0].mxu0
          %v1998 = vadd.f32 %v1709, %v1997
          %v1999 = vpop.f32.mrb[0].mxu0
          %2000 = vmatprep.mubr.bf16.mxu0 %v1126
          %2001 = vmatmul.mubr.bf16.gmra.mrb[0].mxu0 %v1125
          %v2002 = vpop.f32.mrb[0].mxu0
          %v2003 = vadd.f32 %v1714, %v2002
          %v2004 = vpop.f32.mrb[0].mxu0
          %v2005 = vpop.f32.mrb[0].mxu0
          %v2006 = vadd.f32 %v1717, %v2005
          %v2007 = vpop.f32.mrb[0].mxu0
          %2008 = vmatprep.mubr.bf16.mxu0 %v1130
          %2009 = vmatmul.mubr.bf16.gmra.mrb[0].mxu0 %v1129
          %v2010 = vpop.f32.mrb[0].mxu0
          %v2011 = vadd.f32 %v1722, %v2010
          %v2012 = vpop.f32.mrb[0].mxu0
          %v2013 = vpop.f32.mrb[0].mxu0
          %v2014 = vadd.f32 %v1725, %v2013
          %v2015 = vpop.f32.mrb[0].mxu0
          %2016 = vmatprep.mubr.bf16.mxu0 %v1134
          %2017 = vmatmul.mubr.bf16.gmra.mrb[0].mxu0 %v1133
          %v2018 = vpop.f32.mrb[0].mxu0
          %v2019 = vadd.f32 %v1730, %v2018
          %v2020 = vpop.f32.mrb[0].mxu0
          %v2021 = vpop.f32.mrb[0].mxu0
          %v2022 = vadd.f32 %v1733, %v2021
          %v2023 = vpop.f32.mrb[0].mxu0
          %2024 = vmatprep.mubr.bf16.mxu0 %v1138
          %2025 = vmatmul.mubr.bf16.gmra.mrb[0].mxu0 %v1137
          %v2026 = vpop.f32.mrb[0].mxu0
          %v2027 = vadd.f32 %v1738, %v2026
          %v2028 = vpop.f32.mrb[0].mxu0
          %v2029 = vpop.f32.mrb[0].mxu0
          %v2030 = vadd.f32 %v1741, %v2029
          %v2031 = vpop.f32.mrb[0].mxu0
          %2032 = vmatprep.mubr.bf16.mxu0 %v1142
          %2033 = vmatmul.mubr.bf16.gmra.mrb[0].mxu0 %v1141
          %v2034 = vpop.f32.mrb[0].mxu0
          %v2035 = vadd.f32 %v1746, %v2034
          %v2036 = vpop.f32.mrb[0].mxu0
          %v2037 = vpop.f32.mrb[0].mxu0
          %v2038 = vadd.f32 %v1749, %v2037
          %v2039 = vpop.f32.mrb[0].mxu0
          %2040 = vdwg.mxu0
          %v2041 = vadd.f32 %v375, %v1787
          %v2042 = vadd.f32 %v376, %v1790
          %v2043 = vadd.f32 %v377, %v1795
          %v2044 = vadd.f32 %v378, %v1798
          %v2045 = vadd.f32 %v379, %v1803
          %v2046 = vadd.f32 %v380, %v1806
          %v2047 = vadd.f32 %v381, %v1811
          %v2048 = vadd.f32 %v382, %v1814
          %v2049 = vadd.f32 %v383, %v1819
          %v2050 = vadd.f32 %v384, %v1822
          %v2051 = vadd.f32 %v385, %v1827
          %v2052 = vadd.f32 %v386, %v1830
          %v2053 = vadd.f32 %v387, %v1835
          %v2054 = vadd.f32 %v388, %v1838
          %v2055 = vadd.f32 %v389, %v1843
          %v2056 = vadd.f32 %v390, %v1846
          %v2057 = vadd.f32 %v391, %v1851
          %v2058 = vadd.f32 %v392, %v1854
          %v2059 = vadd.f32 %v393, %v1859
          %v2060 = vadd.f32 %v394, %v1862
          %v2061 = vadd.f32 %v395, %v1867
          %v2062 = vadd.f32 %v396, %v1870
          %v2063 = vadd.f32 %v397, %v1875
          %v2064 = vadd.f32 %v398, %v1878
          %v2065 = vadd.f32 %v399, %v1883
          %v2066 = vadd.f32 %v400, %v1886
          %v2067 = vadd.f32 %v401, %v1891
          %v2068 = vadd.f32 %v402, %v1894
          %v2069 = vadd.f32 %v403, %v1899
          %v2070 = vadd.f32 %v404, %v1902
          %v2071 = vadd.f32 %v405, %v1907
          %v2072 = vadd.f32 %v406, %v1910
          %v2073 = vadd.f32 %v407, %v1915
          %v2074 = vadd.f32 %v408, %v1918
          %v2075 = vadd.f32 %v409, %v1923
          %v2076 = vadd.f32 %v410, %v1926
          %v2077 = vadd.f32 %v411, %v1931
          %v2078 = vadd.f32 %v412, %v1934
          %v2079 = vadd.f32 %v413, %v1939
          %v2080 = vadd.f32 %v414, %v1942
          %v2081 = vadd.f32 %v415, %v1947
          %v2082 = vadd.f32 %v416, %v1950
          %v2083 = vadd.f32 %v417, %v1955
          %v2084 = vadd.f32 %v418, %v1958
          %v2085 = vadd.f32 %v419, %v1963
          %v2086 = vadd.f32 %v420, %v1966
          %v2087 = vadd.f32 %v421, %v1971
          %v2088 = vadd.f32 %v422, %v1974
          %v2089 = vadd.f32 %v423, %v1979
          %v2090 = vadd.f32 %v424, %v1982
          %v2091 = vadd.f32 %v425, %v1987
          %v2092 = vadd.f32 %v426, %v1990
          %v2093 = vadd.f32 %v427, %v1995
          %v2094 = vadd.f32 %v428, %v1998
          %v2095 = vadd.f32 %v429, %v2003
          %v2096 = vadd.f32 %v430, %v2006
          %v2097 = vadd.f32 %v431, %v2011
          %v2098 = vadd.f32 %v432, %v2014
          %v2099 = vadd.f32 %v433, %v2019
          %v2100 = vadd.f32 %v434, %v2022
          %v2101 = vadd.f32 %v435, %v2027
          %v2102 = vadd.f32 %v436, %v2030
          %v2103 = vadd.f32 %v437, %v2035
          %v2104 = vadd.f32 %v438, %v2038
          %2105 = vst [vmem:[#allocation2] sm:$0xff] %v2041
          %2106 = vst [vmem:[#allocation2 + $0x8] sm:$0xff] %v2042
          %2107 = vst [vmem:[#allocation2 + $0x10] sm:$0xff] %v2043
          %2108 = vst [vmem:[#allocation2 + $0x18] sm:$0xff] %v2044
          %2109 = vst [vmem:[#allocation2 + $0x20] sm:$0xff] %v2045
          %2110 = vst [vmem:[#allocation2 + $0x28] sm:$0xff] %v2046
          %2111 = vst [vmem:[#allocation2 + $0x30] sm:$0xff] %v2047
          %2112 = vst [vmem:[#allocation2 + $0x38] sm:$0xff] %v2048
          %2113 = vst [vmem:[#allocation2 + $0x40] sm:$0xff] %v2049
          %2114 = vst [vmem:[#allocation2 + $0x48] sm:$0xff] %v2050
          %2115 = vst [vmem:[#allocation2 + $0x50] sm:$0xff] %v2051
          %2116 = vst [vmem:[#allocation2 + $0x58] sm:$0xff] %v2052
          %2117 = vst [vmem:[#allocation2 + $0x60] sm:$0xff] %v2053
          %2118 = vst [vmem:[#allocation2 + $0x68] sm:$0xff] %v2054
          %2119 = vst [vmem:[#allocation2 + $0x70] sm:$0xff] %v2055
          %2120 = vst [vmem:[#allocation2 + $0x78] sm:$0xff] %v2056
          %2121 = vst [vmem:[#allocation2 + $0x80] sm:$0xff] %v2057
          %2122 = vst [vmem:[#allocation2 + $0x88] sm:$0xff] %v2058
          %2123 = vst [vmem:[#allocation2 + $0x90] sm:$0xff] %v2059
          %2124 = vst [vmem:[#allocation2 + $0x98] sm:$0xff] %v2060
          %2125 = vst [vmem:[#allocation2 + $0xa0] sm:$0xff] %v2061
          %2126 = vst [vmem:[#allocation2 + $0xa8] sm:$0xff] %v2062
          %2127 = vst [vmem:[#allocation2 + $0xb0] sm:$0xff] %v2063
          %2128 = vst [vmem:[#allocation2 + $0xb8] sm:$0xff] %v2064
          %2129 = vst [vmem:[#allocation2 + $0xc0] sm:$0xff] %v2065
          %2130 = vst [vmem:[#allocation2 + $0xc8] sm:$0xff] %v2066
          %2131 = vst [vmem:[#allocation2 + $0xd0] sm:$0xff] %v2067
          %2132 = vst [vmem:[#allocation2 + $0xd8] sm:$0xff] %v2068
          %2133 = vst [vmem:[#allocation2 + $0xe0] sm:$0xff] %v2069
          %2134 = vst [vmem:[#allocation2 + $0xe8] sm:$0xff] %v2070
          %2135 = vst [vmem:[#allocation2 + $0xf0] sm:$0xff] %v2071
          %2136 = vst [vmem:[#allocation2 + $0xf8] sm:$0xff] %v2072
          %2137 = vst [vmem:[#allocation2 + $0x100] sm:$0xff] %v2073
          %2138 = vst [vmem:[#allocation2 + $0x108] sm:$0xff] %v2074
          %2139 = vst [vmem:[#allocation2 + $0x110] sm:$0xff] %v2075
          %2140 = vst [vmem:[#allocation2 + $0x118] sm:$0xff] %v2076
          %2141 = vst [vmem:[#allocation2 + $0x120] sm:$0xff] %v2077
          %2142 = vst [vmem:[#allocation2 + $0x128] sm:$0xff] %v2078
          %2143 = vst [vmem:[#allocation2 + $0x130] sm:$0xff] %v2079
          %2144 = vst [vmem:[#allocation2 + $0x138] sm:$0xff] %v2080
          %2145 = vst [vmem:[#allocation2 + $0x140] sm:$0xff] %v2081
          %2146 = vst [vmem:[#allocation2 + $0x148] sm:$0xff] %v2082
          %2147 = vst [vmem:[#allocation2 + $0x150] sm:$0xff] %v2083
          %2148 = vst [vmem:[#allocation2 + $0x158] sm:$0xff] %v2084
          %2149 = vst [vmem:[#allocation2 + $0x160] sm:$0xff] %v2085
          %2150 = vst [vmem:[#allocation2 + $0x168] sm:$0xff] %v2086
          %2151 = vst [vmem:[#allocation2 + $0x170] sm:$0xff] %v2087
          %2152 = vst [vmem:[#allocation2 + $0x178] sm:$0xff] %v2088
          %2153 = vst [vmem:[#allocation2 + $0x180] sm:$0xff] %v2089
          %2154 = vst [vmem:[#allocation2 + $0x188] sm:$0xff] %v2090
          %2155 = vst [vmem:[#allocation2 + $0x190] sm:$0xff] %v2091
          %2156 = vst [vmem:[#allocation2 + $0x198] sm:$0xff] %v2092
          %2157 = vst [vmem:[#allocation2 + $0x1a0] sm:$0xff] %v2093
          %2158 = vst [vmem:[#allocation2 + $0x1a8] sm:$0xff] %v2094
          %2159 = vst [vmem:[#allocation2 + $0x1b0] sm:$0xff] %v2095
          %2160 = vst [vmem:[#allocation2 + $0x1b8] sm:$0xff] %v2096
          %2161 = vst [vmem:[#allocation2 + $0x1c0] sm:$0xff] %v2097
          %2162 = vst [vmem:[#allocation2 + $0x1c8] sm:$0xff] %v2098
          %2163 = vst [vmem:[#allocation2 + $0x1d0] sm:$0xff] %v2099
          %2164 = vst [vmem:[#allocation2 + $0x1d8] sm:$0xff] %v2100
          %2165 = vst [vmem:[#allocation2 + $0x1e0] sm:$0xff] %v2101
          %2166 = vst [vmem:[#allocation2 + $0x1e8] sm:$0xff] %v2102
          %2167 = vst [vmem:[#allocation2 + $0x1f0] sm:$0xff] %v2103
          %2168 = vst [vmem:[#allocation2 + $0x1f8] sm:$0xff] %v2104
        $region48: #{gcn_forward.2} parent=35 // pred_fallthru
          _
        %p2169 = scmp.eq.s32.totalorder %s31, 1
        // Predicated region
        $region49: #{gcn_forward.2} parent=35 // pred_check
          %p2170 = pneg %p2169
        $region50: #{gcn_forward.2} parent=35 // pred_check_branch
          %2172 = sbr.rel (%p2170) target = $region52
        $region51: #{gcn_forward.2} parent=35 // pred_region
          %v2173 = vld [vmem:[#allocation2] sm:$0xff]
          %v2174 = vld [vmem:[#allocation2 + $0x8] sm:$0xff]
          %v2175 = vld [vmem:[#allocation2 + $0x10] sm:$0xff]
          %v2176 = vld [vmem:[#allocation2 + $0x18] sm:$0xff]
          %v2177 = vld [vmem:[#allocation2 + $0x20] sm:$0xff]
          %v2178 = vld [vmem:[#allocation2 + $0x28] sm:$0xff]
          %v2179 = vld [vmem:[#allocation2 + $0x30] sm:$0xff]
          %v2180 = vld [vmem:[#allocation2 + $0x38] sm:$0xff]
          %v2181 = vld [vmem:[#allocation2 + $0x40] sm:$0xff]
          %v2182 = vld [vmem:[#allocation2 + $0x48] sm:$0xff]
          %v2183 = vld [vmem:[#allocation2 + $0x50] sm:$0xff]
          %v2184 = vld [vmem:[#allocation2 + $0x58] sm:$0xff]
          %v2185 = vld [vmem:[#allocation2 + $0x60] sm:$0xff]
          %v2186 = vld [vmem:[#allocation2 + $0x68] sm:$0xff]
          %v2187 = vld [vmem:[#allocation2 + $0x70] sm:$0xff]
          %v2188 = vld [vmem:[#allocation2 + $0x78] sm:$0xff]
          %v2189 = vld [vmem:[#allocation2 + $0x80] sm:$0xff]
          %v2190 = vld [vmem:[#allocation2 + $0x88] sm:$0xff]
          %v2191 = vld [vmem:[#allocation2 + $0x90] sm:$0xff]
          %v2192 = vld [vmem:[#allocation2 + $0x98] sm:$0xff]
          %v2193 = vld [vmem:[#allocation2 + $0xa0] sm:$0xff]
          %v2194 = vld [vmem:[#allocation2 + $0xa8] sm:$0xff]
          %v2195 = vld [vmem:[#allocation2 + $0xb0] sm:$0xff]
          %v2196 = vld [vmem:[#allocation2 + $0xb8] sm:$0xff]
          %v2197 = vld [vmem:[#allocation2 + $0xc0] sm:$0xff]
          %v2198 = vld [vmem:[#allocation2 + $0xc8] sm:$0xff]
          %v2199 = vld [vmem:[#allocation2 + $0xd0] sm:$0xff]
          %v2200 = vld [vmem:[#allocation2 + $0xd8] sm:$0xff]
          %v2201 = vld [vmem:[#allocation2 + $0xe0] sm:$0xff]
          %v2202 = vld [vmem:[#allocation2 + $0xe8] sm:$0xff]
          %v2203 = vld [vmem:[#allocation2 + $0xf0] sm:$0xff]
          %v2204 = vld [vmem:[#allocation2 + $0xf8] sm:$0xff]
          %v2205 = vld [vmem:[#allocation2 + $0x100] sm:$0xff]
          %v2206 = vld [vmem:[#allocation2 + $0x108] sm:$0xff]
          %v2207 = vld [vmem:[#allocation2 + $0x110] sm:$0xff]
          %v2208 = vld [vmem:[#allocation2 + $0x118] sm:$0xff]
          %v2209 = vld [vmem:[#allocation2 + $0x120] sm:$0xff]
          %v2210 = vld [vmem:[#allocation2 + $0x128] sm:$0xff]
          %v2211 = vld [vmem:[#allocation2 + $0x130] sm:$0xff]
          %v2212 = vld [vmem:[#allocation2 + $0x138] sm:$0xff]
          %v2213 = vld [vmem:[#allocation2 + $0x140] sm:$0xff]
          %v2214 = vld [vmem:[#allocation2 + $0x148] sm:$0xff]
          %v2215 = vld [vmem:[#allocation2 + $0x150] sm:$0xff]
          %v2216 = vld [vmem:[#allocation2 + $0x158] sm:$0xff]
          %v2217 = vld [vmem:[#allocation2 + $0x160] sm:$0xff]
          %v2218 = vld [vmem:[#allocation2 + $0x168] sm:$0xff]
          %v2219 = vld [vmem:[#allocation2 + $0x170] sm:$0xff]
          %v2220 = vld [vmem:[#allocation2 + $0x178] sm:$0xff]
          %v2221 = vld [vmem:[#allocation2 + $0x180] sm:$0xff]
          %v2222 = vld [vmem:[#allocation2 + $0x188] sm:$0xff]
          %v2223 = vld [vmem:[#allocation2 + $0x190] sm:$0xff]
          %v2224 = vld [vmem:[#allocation2 + $0x198] sm:$0xff]
          %v2225 = vld [vmem:[#allocation2 + $0x1a0] sm:$0xff]
          %v2226 = vld [vmem:[#allocation2 + $0x1a8] sm:$0xff]
          %v2227 = vld [vmem:[#allocation2 + $0x1b0] sm:$0xff]
          %v2228 = vld [vmem:[#allocation2 + $0x1b8] sm:$0xff]
          %v2229 = vld [vmem:[#allocation2 + $0x1c0] sm:$0xff]
          %v2230 = vld [vmem:[#allocation2 + $0x1c8] sm:$0xff]
          %v2231 = vld [vmem:[#allocation2 + $0x1d0] sm:$0xff]
          %v2232 = vld [vmem:[#allocation2 + $0x1d8] sm:$0xff]
          %v2233 = vld [vmem:[#allocation2 + $0x1e0] sm:$0xff]
          %v2234 = vld [vmem:[#allocation2 + $0x1e8] sm:$0xff]
          %v2235 = vld [vmem:[#allocation2 + $0x1f0] sm:$0xff]
          %v2236 = vld [vmem:[#allocation2 + $0x1f8] sm:$0xff]
          %v2237 = vpack.c.bf16 %v2174, %v2173
          %v2238 = vpack.c.bf16 %v2176, %v2175
          %v2239 = vpack.c.bf16 %v2178, %v2177
          %v2240 = vpack.c.bf16 %v2180, %v2179
          %v2241 = vpack.c.bf16 %v2182, %v2181
          %v2242 = vpack.c.bf16 %v2184, %v2183
          %v2243 = vpack.c.bf16 %v2186, %v2185
          %v2244 = vpack.c.bf16 %v2188, %v2187
          %v2245 = vpack.c.bf16 %v2190, %v2189
          %v2246 = vpack.c.bf16 %v2192, %v2191
          %v2247 = vpack.c.bf16 %v2194, %v2193
          %v2248 = vpack.c.bf16 %v2196, %v2195
          %v2249 = vpack.c.bf16 %v2198, %v2197
          %v2250 = vpack.c.bf16 %v2200, %v2199
          %v2251 = vpack.c.bf16 %v2202, %v2201
          %v2252 = vpack.c.bf16 %v2204, %v2203
          %v2253 = vpack.c.bf16 %v2206, %v2205
          %v2254 = vpack.c.bf16 %v2208, %v2207
          %v2255 = vpack.c.bf16 %v2210, %v2209
          %v2256 = vpack.c.bf16 %v2212, %v2211
          %v2257 = vpack.c.bf16 %v2214, %v2213
          %v2258 = vpack.c.bf16 %v2216, %v2215
          %v2259 = vpack.c.bf16 %v2218, %v2217
          %v2260 = vpack.c.bf16 %v2220, %v2219
          %v2261 = vpack.c.bf16 %v2222, %v2221
          %v2262 = vpack.c.bf16 %v2224, %v2223
          %v2263 = vpack.c.bf16 %v2226, %v2225
          %v2264 = vpack.c.bf16 %v2228, %v2227
          %v2265 = vpack.c.bf16 %v2230, %v2229
          %v2266 = vpack.c.bf16 %v2232, %v2231
          %v2267 = vpack.c.bf16 %v2234, %v2233
          %v2268 = vpack.c.bf16 %v2236, %v2235
          %v2269 = vld [vmem:[%s4] sm:$0xf]
          %v2270 = vld [vmem:[%s4 + $0x4] sm:$0xf]
          %v2271 = vld [vmem:[%s4 + $0x8] sm:$0xf]
          %v2272 = vld [vmem:[%s4 + $0xc] sm:$0xf]
          %v2273 = vld [vmem:[%s4 + $0x10] sm:$0xf]
          %v2274 = vld [vmem:[%s4 + $0x14] sm:$0xf]
          %v2275 = vld [vmem:[%s4 + $0x18] sm:$0xf]
          %v2276 = vld [vmem:[%s4 + $0x1c] sm:$0xf]
          %v2277 = vld [vmem:[%s4 + $0x20] sm:$0xf]
          %v2278 = vld [vmem:[%s4 + $0x24] sm:$0xf]
          %v2279 = vld [vmem:[%s4 + $0x28] sm:$0xf]
          %v2280 = vld [vmem:[%s4 + $0x2c] sm:$0xf]
          %v2281 = vld [vmem:[%s4 + $0x30] sm:$0xf]
          %v2282 = vld [vmem:[%s4 + $0x34] sm:$0xf]
          %v2283 = vld [vmem:[%s4 + $0x38] sm:$0xf]
          %v2284 = vld [vmem:[%s4 + $0x3c] sm:$0xf]
          %v2285 = vld [vmem:[%s5] sm:$0x1]
          %v2287 = vlaneseq
          %v2288 = vshrl.u32 %v2287, 7
          %v2289 = vsub.s32 0, %v2288
          %v2290 = vrot.slane %v2285, %v2289
          %v2308 = vunpack.c.l.b16 %v2269
          %v2309 = vunpack.c.l.b16 %v2270
          %v2310 = vunpack.c.l.b16 %v2271
          %v2311 = vunpack.c.l.b16 %v2272
          %v2312 = vunpack.c.l.b16 %v2273
          %v2313 = vunpack.c.l.b16 %v2274
          %v2314 = vunpack.c.l.b16 %v2275
          %v2315 = vunpack.c.l.b16 %v2276
          %v2316 = vunpack.c.l.b16 %v2277
          %v2317 = vunpack.c.l.b16 %v2278
          %v2318 = vunpack.c.l.b16 %v2279
          %v2319 = vunpack.c.l.b16 %v2280
          %v2320 = vunpack.c.l.b16 %v2281
          %v2321 = vunpack.c.l.b16 %v2282
          %v2322 = vunpack.c.l.b16 %v2283
          %v2323 = vunpack.c.l.b16 %v2284
          %v2324 = vpack.c.b16 %v2309, %v2308
          %v2325 = vpack.c.b16 %v2311, %v2310
          %v2326 = vpack.c.b16 %v2313, %v2312
          %v2327 = vpack.c.b16 %v2315, %v2314
          %v2328 = vpack.c.b16 %v2317, %v2316
          %v2329 = vpack.c.b16 %v2319, %v2318
          %v2330 = vpack.c.b16 %v2321, %v2320
          %v2331 = vpack.c.b16 %v2323, %v2322
          %2340 = vmatprep.subr.bf16.mxu0 0
          %2341 = vmatpush1.bf16.msra.mxu0 %v2324
          %2342 = vmatprep.subr.bf16.mxu0 0
          %2343 = vmatpush1.bf16.msra.mxu0 %v2325
          %2344 = vmatprep.subr.bf16.mxu0 0
          %2345 = vmatpush1.bf16.msra.mxu0 %v2326
          %2346 = vmatprep.subr.bf16.mxu0 0
          %2347 = vmatpush1.bf16.msra.mxu0 %v2327
          %2348 = vmatprep.subr.bf16.mxu0 0
          %2349 = vmatpush1.bf16.msra.mxu0 %v2328
          %2350 = vmatprep.subr.bf16.mxu0 0
          %2351 = vmatpush1.bf16.msra.mxu0 %v2329
          %2352 = vmatprep.subr.bf16.mxu0 0
          %2353 = vmatpush1.bf16.msra.mxu0 %v2330
          %2354 = vmatprep.subr.bf16.mxu0 0
          %2355 = vmatpush1.bf16.msra.mxu0 %v2331
          %2356 = vmatprep.subr.bf16.mxu0 0
          %2357 = vmatpush1.bf16.msra.mxu0 0
          %2358 = vmatprep.subr.bf16.mxu0 0
          %2359 = vmatpush1.bf16.msra.mxu0 0
          %2360 = vmatprep.subr.bf16.mxu0 0
          %2361 = vmatpush1.bf16.msra.mxu0 0
          %2362 = vmatprep.subr.bf16.mxu0 0
          %2363 = vmatpush1.bf16.msra.mxu0 0
          %2364 = vmatprep.subr.bf16.mxu0 0
          %2365 = vmatpush1.bf16.msra.mxu0 0
          %2366 = vmatprep.subr.bf16.mxu0 0
          %2367 = vmatpush1.bf16.msra.mxu0 0
          %2368 = vmatprep.subr.bf16.mxu0 0
          %2369 = vmatpush1.bf16.msra.mxu0 0
          %2370 = vmatprep.subr.bf16.mxu0 0
          %2371 = vmatpush1.bf16.msra.mxu0 0
          %2372 = vmatprep.mubr.bf16.mxu0 0
          %2373 = vmatmul.mubr.bf16.gmra.mrb[0].mxu0 %v2237
          %v2374 = vpop.f32.mrb[0].mxu0
          %v2375 = vadd.f32 %v2290, %v2374
          %v2376 = vpop.f32.mrb[0].mxu0
          %v2377 = vpop.f32.mrb[0].mxu0
          %v2378 = vadd.f32 %v2290, %v2377
          %v2379 = vpop.f32.mrb[0].mxu0
          %2380 = vmatprep.mubr.bf16.mxu0 0
          %2381 = vmatmul.mubr.bf16.gmra.mrb[0].mxu0 %v2238
          %v2382 = vpop.f32.mrb[0].mxu0
          %v2383 = vadd.f32 %v2290, %v2382
          %v2384 = vpop.f32.mrb[0].mxu0
          %v2385 = vpop.f32.mrb[0].mxu0
          %v2386 = vadd.f32 %v2290, %v2385
          %v2387 = vpop.f32.mrb[0].mxu0
          %2388 = vmatprep.mubr.bf16.mxu0 0
          %2389 = vmatmul.mubr.bf16.gmra.mrb[0].mxu0 %v2239
          %v2390 = vpop.f32.mrb[0].mxu0
          %v2391 = vadd.f32 %v2290, %v2390
          %v2392 = vpop.f32.mrb[0].mxu0
          %v2393 = vpop.f32.mrb[0].mxu0
          %v2394 = vadd.f32 %v2290, %v2393
          %v2395 = vpop.f32.mrb[0].mxu0
          %2396 = vmatprep.mubr.bf16.mxu0 0
          %2397 = vmatmul.mubr.bf16.gmra.mrb[0].mxu0 %v2240
          %v2398 = vpop.f32.mrb[0].mxu0
          %v2399 = vadd.f32 %v2290, %v2398
          %v2400 = vpop.f32.mrb[0].mxu0
          %v2401 = vpop.f32.mrb[0].mxu0
          %v2402 = vadd.f32 %v2290, %v2401
          %v2403 = vpop.f32.mrb[0].mxu0
          %2404 = vmatprep.mubr.bf16.mxu0 0
          %2405 = vmatmul.mubr.bf16.gmra.mrb[0].mxu0 %v2241
          %v2406 = vpop.f32.mrb[0].mxu0
          %v2407 = vadd.f32 %v2290, %v2406
          %v2408 = vpop.f32.mrb[0].mxu0
          %v2409 = vpop.f32.mrb[0].mxu0
          %v2410 = vadd.f32 %v2290, %v2409
          %v2411 = vpop.f32.mrb[0].mxu0
          %2412 = vmatprep.mubr.bf16.mxu0 0
          %2413 = vmatmul.mubr.bf16.gmra.mrb[0].mxu0 %v2242
          %v2414 = vpop.f32.mrb[0].mxu0
          %v2415 = vadd.f32 %v2290, %v2414
          %v2416 = vpop.f32.mrb[0].mxu0
          %v2417 = vpop.f32.mrb[0].mxu0
          %v2418 = vadd.f32 %v2290, %v2417
          %v2419 = vpop.f32.mrb[0].mxu0
          %2420 = vmatprep.mubr.bf16.mxu0 0
          %2421 = vmatmul.mubr.bf16.gmra.mrb[0].mxu0 %v2243
          %v2422 = vpop.f32.mrb[0].mxu0
          %v2423 = vadd.f32 %v2290, %v2422
          %v2424 = vpop.f32.mrb[0].mxu0
          %v2425 = vpop.f32.mrb[0].mxu0
          %v2426 = vadd.f32 %v2290, %v2425
          %v2427 = vpop.f32.mrb[0].mxu0
          %2428 = vmatprep.mubr.bf16.mxu0 0
          %2429 = vmatmul.mubr.bf16.gmra.mrb[0].mxu0 %v2244
          %v2430 = vpop.f32.mrb[0].mxu0
          %v2431 = vadd.f32 %v2290, %v2430
          %v2432 = vpop.f32.mrb[0].mxu0
          %v2433 = vpop.f32.mrb[0].mxu0
          %v2434 = vadd.f32 %v2290, %v2433
          %v2435 = vpop.f32.mrb[0].mxu0
          %2436 = vmatprep.mubr.bf16.mxu0 0
          %2437 = vmatmul.mubr.bf16.gmra.mrb[0].mxu0 %v2245
          %v2438 = vpop.f32.mrb[0].mxu0
          %v2439 = vadd.f32 %v2290, %v2438
          %v2440 = vpop.f32.mrb[0].mxu0
          %v2441 = vpop.f32.mrb[0].mxu0
          %v2442 = vadd.f32 %v2290, %v2441
          %v2443 = vpop.f32.mrb[0].mxu0
          %2444 = vmatprep.mubr.bf16.mxu0 0
          %2445 = vmatmul.mubr.bf16.gmra.mrb[0].mxu0 %v2246
          %v2446 = vpop.f32.mrb[0].mxu0
          %v2447 = vadd.f32 %v2290, %v2446
          %v2448 = vpop.f32.mrb[0].mxu0
          %v2449 = vpop.f32.mrb[0].mxu0
          %v2450 = vadd.f32 %v2290, %v2449
          %v2451 = vpop.f32.mrb[0].mxu0
          %2452 = vmatprep.mubr.bf16.mxu0 0
          %2453 = vmatmul.mubr.bf16.gmra.mrb[0].mxu0 %v2247
          %v2454 = vpop.f32.mrb[0].mxu0
          %v2455 = vadd.f32 %v2290, %v2454
          %v2456 = vpop.f32.mrb[0].mxu0
          %v2457 = vpop.f32.mrb[0].mxu0
          %v2458 = vadd.f32 %v2290, %v2457
          %v2459 = vpop.f32.mrb[0].mxu0
          %2460 = vmatprep.mubr.bf16.mxu0 0
          %2461 = vmatmul.mubr.bf16.gmra.mrb[0].mxu0 %v2248
          %v2462 = vpop.f32.mrb[0].mxu0
          %v2463 = vadd.f32 %v2290, %v2462
          %v2464 = vpop.f32.mrb[0].mxu0
          %v2465 = vpop.f32.mrb[0].mxu0
          %v2466 = vadd.f32 %v2290, %v2465
          %v2467 = vpop.f32.mrb[0].mxu0
          %2468 = vmatprep.mubr.bf16.mxu0 0
          %2469 = vmatmul.mubr.bf16.gmra.mrb[0].mxu0 %v2249
          %v2470 = vpop.f32.mrb[0].mxu0
          %v2471 = vadd.f32 %v2290, %v2470
          %v2472 = vpop.f32.mrb[0].mxu0
          %v2473 = vpop.f32.mrb[0].mxu0
          %v2474 = vadd.f32 %v2290, %v2473
          %v2475 = vpop.f32.mrb[0].mxu0
          %2476 = vmatprep.mubr.bf16.mxu0 0
          %2477 = vmatmul.mubr.bf16.gmra.mrb[0].mxu0 %v2250
          %v2478 = vpop.f32.mrb[0].mxu0
          %v2479 = vadd.f32 %v2290, %v2478
          %v2480 = vpop.f32.mrb[0].mxu0
          %v2481 = vpop.f32.mrb[0].mxu0
          %v2482 = vadd.f32 %v2290, %v2481
          %v2483 = vpop.f32.mrb[0].mxu0
          %2484 = vmatprep.mubr.bf16.mxu0 0
          %2485 = vmatmul.mubr.bf16.gmra.mrb[0].mxu0 %v2251
          %v2486 = vpop.f32.mrb[0].mxu0
          %v2487 = vadd.f32 %v2290, %v2486
          %v2488 = vpop.f32.mrb[0].mxu0
          %v2489 = vpop.f32.mrb[0].mxu0
          %v2490 = vadd.f32 %v2290, %v2489
          %v2491 = vpop.f32.mrb[0].mxu0
          %2492 = vmatprep.mubr.bf16.mxu0 0
          %2493 = vmatmul.mubr.bf16.gmra.mrb[0].mxu0 %v2252
          %v2494 = vpop.f32.mrb[0].mxu0
          %v2495 = vadd.f32 %v2290, %v2494
          %v2496 = vpop.f32.mrb[0].mxu0
          %v2497 = vpop.f32.mrb[0].mxu0
          %v2498 = vadd.f32 %v2290, %v2497
          %v2499 = vpop.f32.mrb[0].mxu0
          %2500 = vmatprep.mubr.bf16.mxu0 0
          %2501 = vmatmul.mubr.bf16.gmra.mrb[0].mxu0 %v2253
          %v2502 = vpop.f32.mrb[0].mxu0
          %v2503 = vadd.f32 %v2290, %v2502
          %v2504 = vpop.f32.mrb[0].mxu0
          %v2505 = vpop.f32.mrb[0].mxu0
          %v2506 = vadd.f32 %v2290, %v2505
          %v2507 = vpop.f32.mrb[0].mxu0
          %2508 = vmatprep.mubr.bf16.mxu0 0
          %2509 = vmatmul.mubr.bf16.gmra.mrb[0].mxu0 %v2254
          %v2510 = vpop.f32.mrb[0].mxu0
          %v2511 = vadd.f32 %v2290, %v2510
          %v2512 = vpop.f32.mrb[0].mxu0
          %v2513 = vpop.f32.mrb[0].mxu0
          %v2514 = vadd.f32 %v2290, %v2513
          %v2515 = vpop.f32.mrb[0].mxu0
          %2516 = vmatprep.mubr.bf16.mxu0 0
          %2517 = vmatmul.mubr.bf16.gmra.mrb[0].mxu0 %v2255
          %v2518 = vpop.f32.mrb[0].mxu0
          %v2519 = vadd.f32 %v2290, %v2518
          %v2520 = vpop.f32.mrb[0].mxu0
          %v2521 = vpop.f32.mrb[0].mxu0
          %v2522 = vadd.f32 %v2290, %v2521
          %v2523 = vpop.f32.mrb[0].mxu0
          %2524 = vmatprep.mubr.bf16.mxu0 0
          %2525 = vmatmul.mubr.bf16.gmra.mrb[0].mxu0 %v2256
          %v2526 = vpop.f32.mrb[0].mxu0
          %v2527 = vadd.f32 %v2290, %v2526
          %v2528 = vpop.f32.mrb[0].mxu0
          %v2529 = vpop.f32.mrb[0].mxu0
          %v2530 = vadd.f32 %v2290, %v2529
          %v2531 = vpop.f32.mrb[0].mxu0
          %2532 = vmatprep.mubr.bf16.mxu0 0
          %2533 = vmatmul.mubr.bf16.gmra.mrb[0].mxu0 %v2257
          %v2534 = vpop.f32.mrb[0].mxu0
          %v2535 = vadd.f32 %v2290, %v2534
          %v2536 = vpop.f32.mrb[0].mxu0
          %v2537 = vpop.f32.mrb[0].mxu0
          %v2538 = vadd.f32 %v2290, %v2537
          %v2539 = vpop.f32.mrb[0].mxu0
          %2540 = vmatprep.mubr.bf16.mxu0 0
          %2541 = vmatmul.mubr.bf16.gmra.mrb[0].mxu0 %v2258
          %v2542 = vpop.f32.mrb[0].mxu0
          %v2543 = vadd.f32 %v2290, %v2542
          %v2544 = vpop.f32.mrb[0].mxu0
          %v2545 = vpop.f32.mrb[0].mxu0
          %v2546 = vadd.f32 %v2290, %v2545
          %v2547 = vpop.f32.mrb[0].mxu0
          %2548 = vmatprep.mubr.bf16.mxu0 0
          %2549 = vmatmul.mubr.bf16.gmra.mrb[0].mxu0 %v2259
          %v2550 = vpop.f32.mrb[0].mxu0
          %v2551 = vadd.f32 %v2290, %v2550
          %v2552 = vpop.f32.mrb[0].mxu0
          %v2553 = vpop.f32.mrb[0].mxu0
          %v2554 = vadd.f32 %v2290, %v2553
          %v2555 = vpop.f32.mrb[0].mxu0
          %2556 = vmatprep.mubr.bf16.mxu0 0
          %2557 = vmatmul.mubr.bf16.gmra.mrb[0].mxu0 %v2260
          %v2558 = vpop.f32.mrb[0].mxu0
          %v2559 = vadd.f32 %v2290, %v2558
          %v2560 = vpop.f32.mrb[0].mxu0
          %v2561 = vpop.f32.mrb[0].mxu0
          %v2562 = vadd.f32 %v2290, %v2561
          %v2563 = vpop.f32.mrb[0].mxu0
          %2564 = vmatprep.mubr.bf16.mxu0 0
          %2565 = vmatmul.mubr.bf16.gmra.mrb[0].mxu0 %v2261
          %v2566 = vpop.f32.mrb[0].mxu0
          %v2567 = vadd.f32 %v2290, %v2566
          %v2568 = vpop.f32.mrb[0].mxu0
          %v2569 = vpop.f32.mrb[0].mxu0
          %v2570 = vadd.f32 %v2290, %v2569
          %v2571 = vpop.f32.mrb[0].mxu0
          %2572 = vmatprep.mubr.bf16.mxu0 0
          %2573 = vmatmul.mubr.bf16.gmra.mrb[0].mxu0 %v2262
          %v2574 = vpop.f32.mrb[0].mxu0
          %v2575 = vadd.f32 %v2290, %v2574
          %v2576 = vpop.f32.mrb[0].mxu0
          %v2577 = vpop.f32.mrb[0].mxu0
          %v2578 = vadd.f32 %v2290, %v2577
          %v2579 = vpop.f32.mrb[0].mxu0
          %2580 = vmatprep.mubr.bf16.mxu0 0
          %2581 = vmatmul.mubr.bf16.gmra.mrb[0].mxu0 %v2263
          %v2582 = vpop.f32.mrb[0].mxu0
          %v2583 = vadd.f32 %v2290, %v2582
          %v2584 = vpop.f32.mrb[0].mxu0
          %v2585 = vpop.f32.mrb[0].mxu0
          %v2586 = vadd.f32 %v2290, %v2585
          %v2587 = vpop.f32.mrb[0].mxu0
          %2588 = vmatprep.mubr.bf16.mxu0 0
          %2589 = vmatmul.mubr.bf16.gmra.mrb[0].mxu0 %v2264
          %v2590 = vpop.f32.mrb[0].mxu0
          %v2591 = vadd.f32 %v2290, %v2590
          %v2592 = vpop.f32.mrb[0].mxu0
          %v2593 = vpop.f32.mrb[0].mxu0
          %v2594 = vadd.f32 %v2290, %v2593
          %v2595 = vpop.f32.mrb[0].mxu0
          %2596 = vmatprep.mubr.bf16.mxu0 0
          %2597 = vmatmul.mubr.bf16.gmra.mrb[0].mxu0 %v2265
          %v2598 = vpop.f32.mrb[0].mxu0
          %v2599 = vadd.f32 %v2290, %v2598
          %v2600 = vpop.f32.mrb[0].mxu0
          %v2601 = vpop.f32.mrb[0].mxu0
          %v2602 = vadd.f32 %v2290, %v2601
          %v2603 = vpop.f32.mrb[0].mxu0
          %2604 = vmatprep.mubr.bf16.mxu0 0
          %2605 = vmatmul.mubr.bf16.gmra.mrb[0].mxu0 %v2266
          %v2606 = vpop.f32.mrb[0].mxu0
          %v2607 = vadd.f32 %v2290, %v2606
          %v2608 = vpop.f32.mrb[0].mxu0
          %v2609 = vpop.f32.mrb[0].mxu0
          %v2610 = vadd.f32 %v2290, %v2609
          %v2611 = vpop.f32.mrb[0].mxu0
          %2612 = vmatprep.mubr.bf16.mxu0 0
          %2613 = vmatmul.mubr.bf16.gmra.mrb[0].mxu0 %v2267
          %v2614 = vpop.f32.mrb[0].mxu0
          %v2615 = vadd.f32 %v2290, %v2614
          %v2616 = vpop.f32.mrb[0].mxu0
          %v2617 = vpop.f32.mrb[0].mxu0
          %v2618 = vadd.f32 %v2290, %v2617
          %v2619 = vpop.f32.mrb[0].mxu0
          %2620 = vmatprep.mubr.bf16.mxu0 0
          %2621 = vmatmul.mubr.bf16.gmra.mrb[0].mxu0 %v2268
          %v2622 = vpop.f32.mrb[0].mxu0
          %v2623 = vadd.f32 %v2290, %v2622
          %v2624 = vpop.f32.mrb[0].mxu0
          %v2625 = vpop.f32.mrb[0].mxu0
          %v2626 = vadd.f32 %v2290, %v2625
          %v2627 = vpop.f32.mrb[0].mxu0
          %2628 = vdwg.mxu0
          %v2629 = vpack.c.bf16 %v2378, %v2375
          %v2630 = vpack.c.bf16 %v2386, %v2383
          %v2631 = vpack.c.bf16 %v2394, %v2391
          %v2632 = vpack.c.bf16 %v2402, %v2399
          %v2633 = vpack.c.bf16 %v2410, %v2407
          %v2634 = vpack.c.bf16 %v2418, %v2415
          %v2635 = vpack.c.bf16 %v2426, %v2423
          %v2636 = vpack.c.bf16 %v2434, %v2431
          %v2637 = vpack.c.bf16 %v2442, %v2439
          %v2638 = vpack.c.bf16 %v2450, %v2447
          %v2639 = vpack.c.bf16 %v2458, %v2455
          %v2640 = vpack.c.bf16 %v2466, %v2463
          %v2641 = vpack.c.bf16 %v2474, %v2471
          %v2642 = vpack.c.bf16 %v2482, %v2479
          %v2643 = vpack.c.bf16 %v2490, %v2487
          %v2644 = vpack.c.bf16 %v2498, %v2495
          %v2645 = vpack.c.bf16 %v2506, %v2503
          %v2646 = vpack.c.bf16 %v2514, %v2511
          %v2647 = vpack.c.bf16 %v2522, %v2519
          %v2648 = vpack.c.bf16 %v2530, %v2527
          %v2649 = vpack.c.bf16 %v2538, %v2535
          %v2650 = vpack.c.bf16 %v2546, %v2543
          %v2651 = vpack.c.bf16 %v2554, %v2551
          %v2652 = vpack.c.bf16 %v2562, %v2559
          %v2653 = vpack.c.bf16 %v2570, %v2567
          %v2654 = vpack.c.bf16 %v2578, %v2575
          %v2655 = vpack.c.bf16 %v2586, %v2583
          %v2656 = vpack.c.bf16 %v2594, %v2591
          %v2657 = vpack.c.bf16 %v2602, %v2599
          %v2658 = vpack.c.bf16 %v2610, %v2607
          %v2659 = vpack.c.bf16 %v2618, %v2615
          %v2660 = vpack.c.bf16 %v2626, %v2623
          %v2693 = vunpack.c.l.b16 %v2629
          %v2694 = vunpack.c.h.b16 %v2629
          %v2695 = vunpack.c.l.b16 %v2630
          %v2696 = vunpack.c.h.b16 %v2630
          %v2697 = vunpack.c.l.b16 %v2631
          %v2698 = vunpack.c.h.b16 %v2631
          %v2699 = vunpack.c.l.b16 %v2632
          %v2700 = vunpack.c.h.b16 %v2632
          %v2701 = vunpack.c.l.b16 %v2633
          %v2702 = vunpack.c.h.b16 %v2633
          %v2703 = vunpack.c.l.b16 %v2634
          %v2704 = vunpack.c.h.b16 %v2634
          %v2705 = vunpack.c.l.b16 %v2635
          %v2706 = vunpack.c.h.b16 %v2635
          %v2707 = vunpack.c.l.b16 %v2636
          %v2708 = vunpack.c.h.b16 %v2636
          %v2709 = vunpack.c.l.b16 %v2637
          %v2710 = vunpack.c.h.b16 %v2637
          %v2711 = vunpack.c.l.b16 %v2638
          %v2712 = vunpack.c.h.b16 %v2638
          %v2713 = vunpack.c.l.b16 %v2639
          %v2714 = vunpack.c.h.b16 %v2639
          %v2715 = vunpack.c.l.b16 %v2640
          %v2716 = vunpack.c.h.b16 %v2640
          %v2717 = vunpack.c.l.b16 %v2641
          %v2718 = vunpack.c.h.b16 %v2641
          %v2719 = vunpack.c.l.b16 %v2642
          %v2720 = vunpack.c.h.b16 %v2642
          %v2721 = vunpack.c.l.b16 %v2643
          %v2722 = vunpack.c.h.b16 %v2643
          %v2723 = vunpack.c.l.b16 %v2644
          %v2724 = vunpack.c.h.b16 %v2644
          %v2725 = vunpack.c.l.b16 %v2645
          %v2726 = vunpack.c.h.b16 %v2645
          %v2727 = vunpack.c.l.b16 %v2646
          %v2728 = vunpack.c.h.b16 %v2646
          %v2729 = vunpack.c.l.b16 %v2647
          %v2730 = vunpack.c.h.b16 %v2647
          %v2731 = vunpack.c.l.b16 %v2648
          %v2732 = vunpack.c.h.b16 %v2648
          %v2733 = vunpack.c.l.b16 %v2649
          %v2734 = vunpack.c.h.b16 %v2649
          %v2735 = vunpack.c.l.b16 %v2650
          %v2736 = vunpack.c.h.b16 %v2650
          %v2737 = vunpack.c.l.b16 %v2651
          %v2738 = vunpack.c.h.b16 %v2651
          %v2739 = vunpack.c.l.b16 %v2652
          %v2740 = vunpack.c.h.b16 %v2652
          %v2741 = vunpack.c.l.b16 %v2653
          %v2742 = vunpack.c.h.b16 %v2653
          %v2743 = vunpack.c.l.b16 %v2654
          %v2744 = vunpack.c.h.b16 %v2654
          %v2745 = vunpack.c.l.b16 %v2655
          %v2746 = vunpack.c.h.b16 %v2655
          %v2747 = vunpack.c.l.b16 %v2656
          %v2748 = vunpack.c.h.b16 %v2656
          %v2749 = vunpack.c.l.b16 %v2657
          %v2750 = vunpack.c.h.b16 %v2657
          %v2751 = vunpack.c.l.b16 %v2658
          %v2752 = vunpack.c.h.b16 %v2658
          %v2753 = vunpack.c.l.b16 %v2659
          %v2754 = vunpack.c.h.b16 %v2659
          %v2755 = vunpack.c.l.b16 %v2660
          %v2756 = vunpack.c.h.b16 %v2660
          %v2757 = vpack.c.b16 %v2693, %v2693
          %v2758 = vpack.c.b16 %v2694, %v2694
          %v2759 = vpack.c.b16 %v2695, %v2695
          %v2760 = vpack.c.b16 %v2696, %v2696
          %v2761 = vpack.c.b16 %v2697, %v2697
          %v2762 = vpack.c.b16 %v2698, %v2698
          %v2763 = vpack.c.b16 %v2699, %v2699
          %v2764 = vpack.c.b16 %v2700, %v2700
          %v2765 = vpack.c.b16 %v2701, %v2701
          %v2766 = vpack.c.b16 %v2702, %v2702
          %v2767 = vpack.c.b16 %v2703, %v2703
          %v2768 = vpack.c.b16 %v2704, %v2704
          %v2769 = vpack.c.b16 %v2705, %v2705
          %v2770 = vpack.c.b16 %v2706, %v2706
          %v2771 = vpack.c.b16 %v2707, %v2707
          %v2772 = vpack.c.b16 %v2708, %v2708
          %v2773 = vpack.c.b16 %v2709, %v2709
          %v2774 = vpack.c.b16 %v2710, %v2710
          %v2775 = vpack.c.b16 %v2711, %v2711
          %v2776 = vpack.c.b16 %v2712, %v2712
          %v2777 = vpack.c.b16 %v2713, %v2713
          %v2778 = vpack.c.b16 %v2714, %v2714
          %v2779 = vpack.c.b16 %v2715, %v2715
          %v2780 = vpack.c.b16 %v2716, %v2716
          %v2781 = vpack.c.b16 %v2717, %v2717
          %v2782 = vpack.c.b16 %v2718, %v2718
          %v2783 = vpack.c.b16 %v2719, %v2719
          %v2784 = vpack.c.b16 %v2720, %v2720
          %v2785 = vpack.c.b16 %v2721, %v2721
          %v2786 = vpack.c.b16 %v2722, %v2722
          %v2787 = vpack.c.b16 %v2723, %v2723
          %v2788 = vpack.c.b16 %v2724, %v2724
          %v2789 = vpack.c.b16 %v2725, %v2725
          %v2790 = vpack.c.b16 %v2726, %v2726
          %v2791 = vpack.c.b16 %v2727, %v2727
          %v2792 = vpack.c.b16 %v2728, %v2728
          %v2793 = vpack.c.b16 %v2729, %v2729
          %v2794 = vpack.c.b16 %v2730, %v2730
          %v2795 = vpack.c.b16 %v2731, %v2731
          %v2796 = vpack.c.b16 %v2732, %v2732
          %v2797 = vpack.c.b16 %v2733, %v2733
          %v2798 = vpack.c.b16 %v2734, %v2734
          %v2799 = vpack.c.b16 %v2735, %v2735
          %v2800 = vpack.c.b16 %v2736, %v2736
          %v2801 = vpack.c.b16 %v2737, %v2737
          %v2802 = vpack.c.b16 %v2738, %v2738
          %v2803 = vpack.c.b16 %v2739, %v2739
          %v2804 = vpack.c.b16 %v2740, %v2740
          %v2805 = vpack.c.b16 %v2741, %v2741
          %v2806 = vpack.c.b16 %v2742, %v2742
          %v2807 = vpack.c.b16 %v2743, %v2743
          %v2808 = vpack.c.b16 %v2744, %v2744
          %v2809 = vpack.c.b16 %v2745, %v2745
          %v2810 = vpack.c.b16 %v2746, %v2746
          %v2811 = vpack.c.b16 %v2747, %v2747
          %v2812 = vpack.c.b16 %v2748, %v2748
          %v2813 = vpack.c.b16 %v2749, %v2749
          %v2814 = vpack.c.b16 %v2750, %v2750
          %v2815 = vpack.c.b16 %v2751, %v2751
          %v2816 = vpack.c.b16 %v2752, %v2752
          %v2817 = vpack.c.b16 %v2753, %v2753
          %v2818 = vpack.c.b16 %v2754, %v2754
          %v2819 = vpack.c.b16 %v2755, %v2755
          %v2820 = vpack.c.b16 %v2756, %v2756
          %2885 = vst [vmem:[%s299] sm:$0xf] %v2757
          %2886 = vst [vmem:[%s299 + $0x4] sm:$0xf] %v2758
          %2887 = vst [vmem:[%s299 + $0x8] sm:$0xf] %v2759
          %2888 = vst [vmem:[%s299 + $0xc] sm:$0xf] %v2760
          %2889 = vst [vmem:[%s299 + $0x10] sm:$0xf] %v2761
          %2890 = vst [vmem:[%s299 + $0x14] sm:$0xf] %v2762
          %2891 = vst [vmem:[%s299 + $0x18] sm:$0xf] %v2763
          %2892 = vst [vmem:[%s299 + $0x1c] sm:$0xf] %v2764
          %2893 = vst [vmem:[%s299 + $0x20] sm:$0xf] %v2765
          %2894 = vst [vmem:[%s299 + $0x24] sm:$0xf] %v2766
          %2895 = vst [vmem:[%s299 + $0x28] sm:$0xf] %v2767
          %2896 = vst [vmem:[%s299 + $0x2c] sm:$0xf] %v2768
          %2897 = vst [vmem:[%s299 + $0x30] sm:$0xf] %v2769
          %2898 = vst [vmem:[%s299 + $0x34] sm:$0xf] %v2770
          %2899 = vst [vmem:[%s299 + $0x38] sm:$0xf] %v2771
          %2900 = vst [vmem:[%s299 + $0x3c] sm:$0xf] %v2772
          %2901 = vst [vmem:[%s299 + $0x40] sm:$0xf] %v2773
          %2902 = vst [vmem:[%s299 + $0x44] sm:$0xf] %v2774
          %2903 = vst [vmem:[%s299 + $0x48] sm:$0xf] %v2775
          %2904 = vst [vmem:[%s299 + $0x4c] sm:$0xf] %v2776
          %2905 = vst [vmem:[%s299 + $0x50] sm:$0xf] %v2777
          %2906 = vst [vmem:[%s299 + $0x54] sm:$0xf] %v2778
          %2907 = vst [vmem:[%s299 + $0x58] sm:$0xf] %v2779
          %2908 = vst [vmem:[%s299 + $0x5c] sm:$0xf] %v2780
          %2909 = vst [vmem:[%s299 + $0x60] sm:$0xf] %v2781
          %2910 = vst [vmem:[%s299 + $0x64] sm:$0xf] %v2782
          %2911 = vst [vmem:[%s299 + $0x68] sm:$0xf] %v2783
          %2912 = vst [vmem:[%s299 + $0x6c] sm:$0xf] %v2784
          %2913 = vst [vmem:[%s299 + $0x70] sm:$0xf] %v2785
          %2914 = vst [vmem:[%s299 + $0x74] sm:$0xf] %v2786
          %2915 = vst [vmem:[%s299 + $0x78] sm:$0xf] %v2787
          %2916 = vst [vmem:[%s299 + $0x7c] sm:$0xf] %v2788
          %2917 = vst [vmem:[%s299 + $0x80] sm:$0xf] %v2789
          %2918 = vst [vmem:[%s299 + $0x84] sm:$0xf] %v2790
          %2919 = vst [vmem:[%s299 + $0x88] sm:$0xf] %v2791
          %2920 = vst [vmem:[%s299 + $0x8c] sm:$0xf] %v2792
          %2921 = vst [vmem:[%s299 + $0x90] sm:$0xf] %v2793
          %2922 = vst [vmem:[%s299 + $0x94] sm:$0xf] %v2794
          %2923 = vst [vmem:[%s299 + $0x98] sm:$0xf] %v2795
          %2924 = vst [vmem:[%s299 + $0x9c] sm:$0xf] %v2796
          %2925 = vst [vmem:[%s299 + $0xa0] sm:$0xf] %v2797
          %2926 = vst [vmem:[%s299 + $0xa4] sm:$0xf] %v2798
          %2927 = vst [vmem:[%s299 + $0xa8] sm:$0xf] %v2799
          %2928 = vst [vmem:[%s299 + $0xac] sm:$0xf] %v2800
          %2929 = vst [vmem:[%s299 + $0xb0] sm:$0xf] %v2801
          %2930 = vst [vmem:[%s299 + $0xb4] sm:$0xf] %v2802
          %2931 = vst [vmem:[%s299 + $0xb8] sm:$0xf] %v2803
          %2932 = vst [vmem:[%s299 + $0xbc] sm:$0xf] %v2804
          %2933 = vst [vmem:[%s299 + $0xc0] sm:$0xf] %v2805
          %2934 = vst [vmem:[%s299 + $0xc4] sm:$0xf] %v2806
          %2935 = vst [vmem:[%s299 + $0xc8] sm:$0xf] %v2807
          %2936 = vst [vmem:[%s299 + $0xcc] sm:$0xf] %v2808
          %2937 = vst [vmem:[%s299 + $0xd0] sm:$0xf] %v2809
          %2938 = vst [vmem:[%s299 + $0xd4] sm:$0xf] %v2810
          %2939 = vst [vmem:[%s299 + $0xd8] sm:$0xf] %v2811
          %2940 = vst [vmem:[%s299 + $0xdc] sm:$0xf] %v2812
          %2941 = vst [vmem:[%s299 + $0xe0] sm:$0xf] %v2813
          %2942 = vst [vmem:[%s299 + $0xe4] sm:$0xf] %v2814
          %2943 = vst [vmem:[%s299 + $0xe8] sm:$0xf] %v2815
          %2944 = vst [vmem:[%s299 + $0xec] sm:$0xf] %v2816
          %2945 = vst [vmem:[%s299 + $0xf0] sm:$0xf] %v2817
          %2946 = vst [vmem:[%s299 + $0xf4] sm:$0xf] %v2818
          %2947 = vst [vmem:[%s299 + $0xf8] sm:$0xf] %v2819
          %2948 = vst [vmem:[%s299 + $0xfc] sm:$0xf] %v2820
        $region52: #{gcn_forward.2} parent=35 // pred_fallthru
          _
        %s2949 = smul.u32 64, %s30
        %p2950 = scmp.lt.s32.totalorder %s2949, 127
        %s2951 = scalar_select %p2950, %s2949, 127
        %s2952 = smul.addr %s2951, 4
        %s2953 = scalar_lea.vmem %s6, %s2952
        // Predicated region
        $region53: #{gcn_forward.2} parent=35 // pred_check
          %p2954 = pneg %p164
        $region54: #{gcn_forward.2} parent=35 // pred_check_branch
          %2956 = sbr.rel (%p2954) target = $region56
        $region55: #{gcn_forward.2} parent=35 // pred_region
          %s2957 = smul.u32 64, %s30
        $region56: #{gcn_forward.2} parent=35 // pred_fallthru
          _
      $region36: #{gcn_forward.2} parent=5 // pred_fallthru
        _
      %p2958 = scmp.le.s32.totalorder 2, %s21
      // Predicated region
      $region57: #{gcn_forward.2} parent=5 // pred_check
        %p2959 = pneg %p2958
      $region58: #{gcn_forward.2} parent=5 // pred_check_branch
        %2961 = sbr.rel (%p2959) target = $region60
      $region59: #{gcn_forward.2} parent=5 // pred_region
        %s2962 = ssub.s32 %s21, 2
        // Predicated region
        $region61: #{gcn_forward.2} parent=59 // pred_check
          %p2963 = pneg %p170
        $region62: #{gcn_forward.2} parent=59 // pred_check_branch
          %2965 = sbr.rel (%p2963) target = $region64
        $region63: #{gcn_forward.2} parent=59 // pred_region
          %s2966 = smul.u32 64, %s32
          %p2967 = scmp.lt.s32.totalorder %s2966, 127
          %s2968 = scalar_select %p2967, %s2966, 127
          %s2969 = smul.addr %s2968, 4
          %s2970 = scalar_lea.vmem %s6, %s2969
        $region64: #{gcn_forward.2} parent=59 // pred_fallthru
          _
      $region60: #{gcn_forward.2} parent=5 // pred_fallthru
        _
    $region6: #{gcn_forward.2} parent=1 // loop_footer
      %s25 = sadd.s32 1, %s21
    $region7: #{gcn_forward.2} parent=1 // loop_footer_branch
      %20 = sbr.rel target = $region3
    $region8: #{gcn_forward.2} parent=1 // loop_exit
      _
    %2971 = vsyncpa [#allocation7], 1
    %s2972 = scalar_lea.sflag [#allocation7], 1
    %2973 = vsyncpa %s2972, 1

</llo_original>
